<compile_context>
chip_gen: v7x
topology: tpu7x:2x2x1
jax: 0.10.0
libtpu: 0.0.40
codegen_flags: <defaults>
</compile_context>

<pallas_src>
import functools

import numpy as np
import jax
import jax.numpy as jnp
from jax import lax
from jax.experimental import pallas as pl
from jax.experimental.pallas import tpu as pltpu

_ROW_TARGET = 512                  # ~output rows of the (rows, 2*Cout) matmul per step
_VMEM_LIMIT = 48 * 1024 * 1024     # flat scoped-VMEM cap (per-step working set ~ few MiB)
_CONV_BF16 = False                 # bf16 operands + f32 accumulate in the conv matmuls


def _pick_row_block(h, w, batch):
    """Row-tile height th (>=2); th*w ~ _ROW_TARGET output rows per grid step.
    h need NOT be divisible by th (ragged rows are padded and sliced off)."""
    th = max(2, _ROW_TARGET // max(w, 1))
    th = min(th, max(h, 2))
    if batch == 1 and h >= 4:
        # Keep >=2 row tiles so both v7x TensorCores get work at batch==1.
        th = min(th, -(-h // 2))
    return th


# --------------------------- Pallas kernels --------------------------------
def _cconv3_kernel(xa_ref, xb_ref, w_ref, b_ref, o_ref, patch_ref, *,
                   th, w, cin2, cout2, compute_dtype):
    # xa_ref : (th,  W+2, 2*Cin)  padded-image rows [i*th, (i+1)*th)
    # xb_ref : (th,  W+2, 2*Cin)  padded-image rows [(i+1)*th, ...) (first 2 used)
    # w_ref  : (9*2*Cin, 2*Cout)  K-fused block weights, tap-major along K
    # b_ref  : (1, 2*Cout)
    # o_ref  : (th, W, 2*Cout)
    # patch_ref: (th*W, 9*2*Cin)  VMEM im2col patch -> ONE MXU matmul
    win = jnp.concatenate([xa_ref[...], xb_ref[0:2]], axis=0)     # (th+2, W+2, 2Cin)
    win = win.astype(compute_dtype)
    for di in range(3):                       # static unroll over the 3 row taps
        slab = win[di:di + th]                # free slice along the H axis
        for dj in range(3):                   # column shifts: value slices (XLU)
            t = di * 3 + dj
            patch_ref[:, t * cin2:(t + 1) * cin2] = (
                slab[:, dj:dj + w, :].reshape(th * w, cin2))
    acc = jnp.dot(patch_ref[...], w_ref[...], preferred_element_type=jnp.float32)
    o_ref[...] = (acc + b_ref[...]).reshape(th, w, cout2)


def _cconv1_kernel(x_ref, w_ref, b_ref, o_ref, *, th, w, cin2, cout2,
                   compute_dtype):
    # 1x1 complex conv: one (th*W, 2Cin) x (2Cin, 2Cout) matmul + bias.
    x = x_ref[...].astype(compute_dtype).reshape(th * w, cin2)
    acc = jnp.dot(x, w_ref[...], preferred_element_type=jnp.float32)
    o_ref[...] = (acc + b_ref[...]).reshape(th, w, cout2)


# --------------------------- conv wrappers ----------------------------------
def _stacked_weight(wr, wi):
    # (k,k,Cin,Cout) x2 -> (k*k, 2*Cin, 2*Cout) block matrix [[Wr,Wi],[-Wi,Wr]]
    k = wr.shape[0]
    cin, cout = wr.shape[2], wr.shape[3]
    top = jnp.concatenate([wr, wi], axis=-1)
    bot = jnp.concatenate([-wi, wr], axis=-1)
    return jnp.concatenate([top, bot], axis=2).reshape(k * k, 2 * cin, 2 * cout)


def _stacked_bias(br, bi):
    return jnp.concatenate([br, bi])[None, :]


def complex_conv_pallas(x, p):
    """Channel-stacked complex conv on the MXU: (B,H,W,2Cin) -> (B,H,W,2Cout)."""
    B, H, W, cin2 = x.shape
    ksz = p['ksz']
    cout2 = 2 * p['wr'].shape[-1]
    cdt = jnp.bfloat16 if _CONV_BF16 else jnp.float32

    th = _pick_row_block(H, W, B)
    n_i = -(-H // th)            # ragged H allowed; extra rows sliced off below
    ho = n_i * th

    w2 = _stacked_weight(p['wr'], p['wi']).reshape(ksz * ksz * cin2, cout2)
    w2 = w2.astype(cdt)
    b2 = _stacked_bias(p['br'], p['bi'])
    cparams = pltpu.CompilerParams(
        dimension_semantics=("parallel", "parallel"),
        vmem_limit_bytes=_VMEM_LIMIT)

    if ksz == 1:
        xp = x if ho == H else jnp.pad(x, ((0, 0), (0, ho - H), (0, 0), (0, 0)))
        kern = functools.partial(_cconv1_kernel, th=th, w=W, cin2=cin2,
                                 cout2=cout2, compute_dtype=cdt)
        out = pl.pallas_call(
            kern,
            out_shape=jax.ShapeDtypeStruct((B, ho, W, cout2), jnp.float32),
            grid_spec=pltpu.PrefetchScalarGridSpec(
                num_scalar_prefetch=0, grid=(B, n_i),
                in_specs=[
                    pl.BlockSpec((None, th, W, cin2), lambda b, i: (b, i, 0, 0)),
                    pl.BlockSpec((cin2, cout2), lambda b, i: (0, 0)),
                    pl.BlockSpec((1, cout2), lambda b, i: (0, 0)),
                ],
                out_specs=pl.BlockSpec((None, th, W, cout2),
                                       lambda b, i: (b, i, 0, 0))),
            compiler_params=cparams,
        )(xp, w2, b2)
    else:
        # Halo tiling along H: the padded image has (n_i + 1) row tiles of th
        # rows; step i consumes tile i plus the first 2 rows of tile i+1, so
        # the same array is passed twice with shifted index maps (overlapping
        # windows without manual DMA, per-step VMEM = a few row tiles).
        hp_ext = (n_i + 1) * th            # >= H + 2 since th >= 2
        wp = W + 2
        # TODO(synk): in-kernel boundary masking would remove this padded HBM copy.
        xp = jnp.pad(x, ((0, 0), (1, hp_ext - H - 1), (1, 1), (0, 0)))
        kern = functools.partial(_cconv3_kernel, th=th, w=W, cin2=cin2,
                                 cout2=cout2, compute_dtype=cdt)
        out = pl.pallas_call(
            kern,
            out_shape=jax.ShapeDtypeStruct((B, ho, W, cout2), jnp.float32),
            grid_spec=pltpu.PrefetchScalarGridSpec(
                num_scalar_prefetch=0, grid=(B, n_i),
                in_specs=[
                    pl.BlockSpec((None, th, wp, cin2), lambda b, i: (b, i, 0, 0)),
                    pl.BlockSpec((None, th, wp, cin2), lambda b, i: (b, i + 1, 0, 0)),
                    pl.BlockSpec((ksz * ksz * cin2, cout2), lambda b, i: (0, 0)),
                    pl.BlockSpec((1, cout2), lambda b, i: (0, 0)),
                ],
                out_specs=pl.BlockSpec((None, th, W, cout2),
                                       lambda b, i: (b, i, 0, 0)),
                scratch_shapes=[pltpu.VMEM((th * W, ksz * ksz * cin2), cdt)]),
            compiler_params=cparams,
        )(xp, xp, w2, b2)

    return out if ho == H else out[:, :H]


def complex_conv_xla(x, p):
    # Degenerate / half-lane shapes (tiny Cin, Cout=1, 64-wide sides): one real
    # XLA conv on the stacked layout with the same block weight matrix.
    ksz, pad = p['ksz'], p['pad']
    wr, wi = p['wr'], p['wi']
    top = jnp.concatenate([wr, wi], axis=-1)
    bot = jnp.concatenate([-wi, wr], axis=-1)
    w_full = jnp.concatenate([top, bot], axis=2)          # (k,k,2Cin,2Cout)
    b2 = jnp.concatenate([p['br'], p['bi']])
    out = lax.conv_general_dilated(
        x, w_full, window_strides=(1, 1), padding=[(pad, pad), (pad, pad)],
        dimension_numbers=('NHWC', 'HWIO', 'NHWC'))
    return out + b2


def complex_conv(x, p):
    _, _, W, cin2 = x.shape
    cout2 = 2 * p['wr'].shape[-1]
    # Lane-dense gate: both sides must be multiples of 128 lanes (avoids
    # vst.msk partial stores / half-empty LHS vregs) and W must keep the
    # (th, W, C) -> (th*W, C) reshape sublane-aligned.
    if (cin2 % 128 == 0 and cout2 % 128 == 0 and W % 8 == 0
            and p['ksz'] in (1, 3)):
        return complex_conv_pallas(x, p)
    return complex_conv_xla(x, p)


# ------------------------------ JAX glue ------------------------------------
def to_stacked(x_t):
    """(B,C,H,W,2) torch layout -> (B,H,W,2C) channel-stacked [re | im]."""
    re = jnp.transpose(x_t[..., 0], (0, 2, 3, 1))
    im = jnp.transpose(x_t[..., 1], (0, 2, 3, 1))
    return jnp.concatenate([re, im], axis=-1)


def cat_stacked(a, b):
    ca_, cb = a.shape[-1] // 2, b.shape[-1] // 2
    return jnp.concatenate([a[..., :ca_], b[..., :cb],
                            a[..., ca_:], b[..., cb:]], axis=-1)


def _fft2c(re, im):
    xc = re + 1j * im
    xc = jnp.fft.ifftshift(xc, axes=(1, 2))
    xc = jnp.fft.fft2(xc, axes=(1, 2), norm='ortho')
    xc = jnp.fft.fftshift(xc, axes=(1, 2))
    return jnp.real(xc).astype(jnp.float32), jnp.imag(xc).astype(jnp.float32)


def _ifft2c(re, im):
    xc = re + 1j * im
    xc = jnp.fft.ifftshift(xc, axes=(1, 2))
    xc = jnp.fft.ifft2(xc, axes=(1, 2), norm='ortho')
    xc = jnp.fft.fftshift(xc, axes=(1, 2))
    return jnp.real(xc).astype(jnp.float32), jnp.imag(xc).astype(jnp.float32)


def fft2c_stacked(x):
    c = x.shape[-1] // 2
    re, im = _fft2c(x[..., :c], x[..., c:])
    return jnp.concatenate([re, im], axis=-1)


def ifft2c_stacked(x):
    c = x.shape[-1] // 2
    re, im = _ifft2c(x[..., :c], x[..., c:])
    return jnp.concatenate([re, im], axis=-1)


def ca_layer(x, p):
    c = x.shape[-1] // 2
    x_abs = x[..., :c] ** 2 + x[..., c:] ** 2     # |z|^2 per complex channel
    y = x_abs.mean(axis=(1, 2))                   # adaptive avg pool -> (B,C)
    y = jnp.maximum(jnp.dot(y, p['w1']), 0.0)
    y = jax.nn.sigmoid(jnp.dot(y, p['w2']))       # (B,C)
    y = jnp.concatenate([y, y], axis=-1)[:, None, None, :]
    return x * y


def _sa_conv3(y, w, b):
    # 3x3 2->1 real conv + bias: 18 shifted FMAs on the VPU via XLA
    # (deliberately kept off the MXU/complex-matmul path).
    B, H, W, _ = y.shape
    yp = jnp.pad(y, ((0, 0), (1, 1), (1, 1), (0, 0)))
    out = jnp.full((B, H, W), b[0], jnp.float32)
    for di in range(3):
        for dj in range(3):
            patch = yp[:, di:di + H, dj:dj + W, :]
            out = out + jnp.einsum('bhwc,c->bhw', patch, w[di, dj, :, 0])
    return out[..., None]


def sa_layer(x, error, p):
    ce = error.shape[-1] // 2
    e_abs = error[..., :ce] ** 2 + error[..., ce:] ** 2
    y = jnp.concatenate([e_abs.mean(axis=-1, keepdims=True),
                         e_abs.max(axis=-1, keepdims=True)], axis=-1)
    s = jax.nn.sigmoid(_sa_conv3(y, p['w'], p['b']))      # (B,H,W,1)
    return x * s


def rcab(x, p, error=None):
    x_k = fft2c_stacked(x)
    res_k = ca_layer(complex_conv(x_k, p['conv1_k']), p['ca_k'])
    res = ca_layer(complex_conv(x, p['conv1']), p['ca'])
    if p['flag'] != 'HF':
        res_k = sa_layer(res_k, fft2c_stacked(error), p['sa_k'])
        res = sa_layer(res, error, p['sa'])
    return res + x + ifft2c_stacked(res_k)


# --------------------------- parameter init ---------------------------------
def cconv_p(key, cin, cout, ksz):
    ks = jax.random.split(key, 4)
    s = 1.0 / np.sqrt(cin * ksz * ksz)
    return {
        'wr': jax.random.normal(ks[0], (ksz, ksz, cin, cout), jnp.float32) * s,
        'wi': jax.random.normal(ks[1], (ksz, ksz, cin, cout), jnp.float32) * s,
        'br': jax.random.normal(ks[2], (cout,), jnp.float32) * s,
        'bi': jax.random.normal(ks[3], (cout,), jnp.float32) * s,
        'ksz': ksz, 'pad': ksz // 2,
    }


def ca_p(key, c, red):
    k1, k2 = jax.random.split(key)
    return {
        'w1': jax.random.normal(k1, (c, c // red), jnp.float32) / np.sqrt(c),
        'w2': jax.random.normal(k2, (c // red, c), jnp.float32) / np.sqrt(c // red),
    }


def sa_p(key):
    k1, k2 = jax.random.split(key)
    s = 1.0 / np.sqrt(2 * 9)
    return {'w': jax.random.normal(k1, (3, 3, 2, 1), jnp.float32) * s,
            'b': jax.random.normal(k2, (1,), jnp.float32) * s}


def rcab_p(key, flag, num_feat=64, reduction=4):
    ks = jax.random.split(key, 6)
    p = {'conv1': cconv_p(ks[0], num_feat, num_feat, 3),
         'conv1_k': cconv_p(ks[1], num_feat, num_feat, 1),
         'ca': ca_p(ks[2], num_feat, reduction),
         'ca_k': ca_p(ks[3], num_feat, reduction),
         'flag': flag}
    if flag != 'HF':
        p['sa'] = sa_p(ks[4])
        p['sa_k'] = sa_p(ks[5])
    return p


def init_fgnetl_params(key, in_c=1, num_feat=64):
    ks = list(jax.random.split(key, 20))
    it = iter(ks)
    p = {}
    p['HF0'] = cconv_p(next(it), in_c, num_feat // 2, 3)
    p['HF1'] = cconv_p(next(it), num_feat // 2, num_feat, 3)
    p['HF2'] = rcab_p(next(it), 'HF')
    p['HF3'] = rcab_p(next(it), 'HF')
    p['aHF0'] = cconv_p(next(it), num_feat, num_feat // 2, 3)
    p['aHF1'] = cconv_p(next(it), num_feat // 2, 1, 3)
    p['fe0'] = cconv_p(next(it), in_c * 2, num_feat, 3)
    p['fe1'] = cconv_p(next(it), num_feat, num_feat, 3)
    for name in ('b1', 'b2', 'b3', 'b4', 'b5'):
        p[name] = rcab_p(next(it), 'Recon')
    p['l0'] = cconv_p(next(it), num_feat, num_feat, 3)
    p['l1'] = cconv_p(next(it), num_feat, 1, 3)
    # TODO(synk): self.convHFLast (ComplexPool(1,1)) is unused in forward; omitted.
    return p


# ------------------------------ forward -------------------------------------
def fgnetl_forward(params, x_t, k_t, mask):
    x = to_stacked(x_t)                  # (B,H,W,2)  [re | im]
    kp = to_stacked(k_t)

    # HF branch
    h = complex_conv(x, params['HF0'])
    h = complex_conv(h, params['HF1'])
    h = rcab(h, params['HF2'])
    x_HF = rcab(h, params['HF3'])

    o = complex_conv(x_HF, params['aHF0'])
    out1 = complex_conv(o, params['aHF1'])            # (B,H,W,2), cout=1

    x0 = complex_conv(cat_stacked(x, out1), params['fe0'])
    x0 = complex_conv(x0, params['fe1'])
    x0 = x0 + x_HF

    out1_s = jax.nn.sigmoid(out1)

    x1 = x0 + rcab(x0, params['b1'], out1_s)
    x2 = x1 + rcab(x1, params['b2'], out1_s)
    x3 = x2 + rcab(x2, params['b3'], out1_s)
    x4 = x3 + rcab(x3, params['b4'], out1_s)
    x5 = x4 + rcab(x4, params['b5'], out1_s)

    out = complex_conv(x5, params['l0'])
    out = complex_conv(out, params['l1'])             # (B,H,W,2), cout=1

    # DC(output, k, mask): the elementwise blend is left to XLA so it fuses
    # with the surrounding FFTs (a standalone kernel would block fusion).
    pre_r, pre_i = _fft2c(out[..., 0], out[..., 1])
    m = mask[..., 0]
    ans_r = pre_r + (kp[..., 0] - pre_r) * m
    ans_i = pre_i + (kp[..., 1] - pre_i) * m
    rec_r, rec_i = _ifft2c(ans_r, ans_i)
    dc_out = jnp.stack([rec_r, rec_i], axis=-1)       # (B,H,W,2)

    out1_t = jnp.stack([out1[..., 0], out1[..., 1]], axis=-1)[:, None]  # (B,1,H,W,2)
    return dc_out, out1_t


# -------------------------------- main ---------------------------------------
if __name__ == "__main__":
    B, H, W = 2, 16, 16
    key = jax.random.PRNGKey(0)
    kx, kk, km, kparam = jax.random.split(key, 4)
    x = jax.random.normal(kx, (B, 1, H, W, 2), jnp.float32)
    k = jax.random.normal(kk, (B, 1, H, W, 2), jnp.float32)
    mask = (jax.random.uniform(km, (B, H, W, 1)) < 0.5).astype(jnp.float32)

    params = init_fgnetl_params(kparam, in_c=1, num_feat=64)

    fwd = jax.jit(lambda xx, kk_, mm: fgnetl_forward(params, xx, kk_, mm))
    dc_out, out1 = fwd(x, k, mask)
    jax.block_until_ready((dc_out, out1))

    assert dc_out.shape == (B, H, W, 2)
    assert out1.shape == (B, 1, H, W, 2)
    assert bool(jnp.all(jnp.isfinite(dc_out))) and bool(jnp.all(jnp.isfinite(out1)))
    print("KERNEL_OK")
</pallas_src>

<mosaic_0001>
module attributes {stable_mosaic.version = 11 : i64} {
  func.func @_cconv1_kernel(%arg0: i32, %arg1: i32, %arg2: memref<1x16x16x128xf32, #tpu.memory_space<vmem>>, %arg3: memref<128x128xf32, #tpu.memory_space<vmem>>, %arg4: memref<1x128xf32, #tpu.memory_space<vmem>>, %arg5: memref<1x16x16x128xf32, #tpu.memory_space<vmem>>) attributes {dimension_semantics = [#tpu.dimension_semantics<parallel>, #tpu.dimension_semantics<parallel>], iteration_bounds = array<i64: 2, 1>, scalar_prefetch = 0 : i64, scratch_operands = 0 : i64, tpu.core_type = #tpu.core_type<tc>, window_params = [{transform_indices = @transform_0, window_bounds = array<i64: 1, 16, 16, 128>}, {pipeline_mode = #tpu.pipeline_mode<synchronous>, transform_indices = @transform_1, window_bounds = array<i64: 128, 128>}, {pipeline_mode = #tpu.pipeline_mode<synchronous>, transform_indices = @transform_2, window_bounds = array<i64: 1, 128>}, {transform_indices = @transform_3, window_bounds = array<i64: 1, 16, 16, 128>}]} {
    %c0 = arith.constant 0 : index
    %c0_0 = arith.constant 0 : index
    %c0_1 = arith.constant 0 : index
    %c0_2 = arith.constant 0 : index
    %0 = vector.load %arg2[%c0, %c0_0, %c0_1, %c0_2] : memref<1x16x16x128xf32, #tpu.memory_space<vmem>>, vector<1x16x16x128xf32>
    %1 = vector.shape_cast %0 : vector<1x16x16x128xf32> to vector<16x16x128xf32>
    %2 = vector.shape_cast %1 : vector<16x16x128xf32> to vector<256x128xf32>
    %c0_3 = arith.constant 0 : index
    %c0_4 = arith.constant 0 : index
    %3 = vector.load %arg3[%c0_3, %c0_4] : memref<128x128xf32, #tpu.memory_space<vmem>>, vector<128x128xf32>
    %cst = arith.constant dense<0.000000e+00> : vector<256x128xf32>
    %4 = tpu.matmul %2, %3, %cst {dimension_numbers = #tpu.dot_dimension_numbers<[1], [0], [0], [1], [0, 0, 1, 1], [], []>} : vector<256x128xf32>, vector<128x128xf32>, vector<256x128xf32> -> vector<256x128xf32>
    %c0_5 = arith.constant 0 : index
    %c0_6 = arith.constant 0 : index
    %5 = vector.load %arg4[%c0_5, %c0_6] : memref<1x128xf32, #tpu.memory_space<vmem>>, vector<1x128xf32>
    %6 = vector.broadcast %5 : vector<1x128xf32> to vector<256x128xf32>
    %7 = arith.addf %4, %6 : vector<256x128xf32>
    %8 = vector.shape_cast %7 : vector<256x128xf32> to vector<16x16x128xf32>
    %c0_7 = arith.constant 0 : index
    %c0_8 = arith.constant 0 : index
    %c0_9 = arith.constant 0 : index
    %c0_10 = arith.constant 0 : index
    %9 = vector.load %arg5[%c0_7, %c0_8, %c0_9, %c0_10] : memref<1x16x16x128xf32, #tpu.memory_space<vmem>>, vector<1x16x16x128xf32>
    %10 = vector.shape_cast %9 : vector<1x16x16x128xf32> to vector<16x16x128xf32>
    %11 = vector.shape_cast %8 : vector<16x16x128xf32> to vector<1x16x16x128xf32>
    tpu.vector_store %arg5[%c0_7, %c0_8, %c0_9, %c0_10], %11 {strides = array<i32>} : memref<1x16x16x128xf32, #tpu.memory_space<vmem>>, vector<1x16x16x128xf32>,
    return
  }
  func.func @transform_0(%arg0: i32, %arg1: i32) -> (i32, i32, i32, i32) {
    %c0_i32 = arith.constant 0 : i32
    %c0_i32_0 = arith.constant 0 : i32
    %c0_i32_1 = arith.constant 0 : i32
    return %arg0, %arg1, %c0_i32, %c0_i32_0 : i32, i32, i32, i32
  }
  func.func @transform_1(%arg0: i32, %arg1: i32) -> (i32, i32) {
    %c0_i32 = arith.constant 0 : i32
    %c0_i32_0 = arith.constant 0 : i32
    %c0_i32_1 = arith.constant 0 : i32
    return %c0_i32, %c0_i32_0 : i32, i32
  }
  func.func @transform_2(%arg0: i32, %arg1: i32) -> (i32, i32) {
    %c0_i32 = arith.constant 0 : i32
    %c0_i32_0 = arith.constant 0 : i32
    %c0_i32_1 = arith.constant 0 : i32
    return %c0_i32, %c0_i32_0 : i32, i32
  }
  func.func @transform_3(%arg0: i32, %arg1: i32) -> (i32, i32, i32, i32) {
    %c0_i32 = arith.constant 0 : i32
    %c0_i32_0 = arith.constant 0 : i32
    %c0_i32_1 = arith.constant 0 : i32
    return %arg0, %arg1, %c0_i32, %c0_i32_0 : i32, i32, i32, i32
  }
}

module attributes {stable_mosaic.version = 11 : i64} {
  func.func @_cconv3_kernel(%arg0: i32, %arg1: i32, %arg2: memref<1x16x18x128xf32, #tpu.memory_space<vmem>>, %arg3: memref<1x16x18x128xf32, #tpu.memory_space<vmem>>, %arg4: memref<1152x128xf32, #tpu.memory_space<vmem>>, %arg5: memref<1x128xf32, #tpu.memory_space<vmem>>, %arg6: memref<1x16x16x128xf32, #tpu.memory_space<vmem>>, %arg7: memref<256x1152xf32, #tpu.memory_space<vmem>>) attributes {dimension_semantics = [#tpu.dimension_semantics<parallel>, #tpu.dimension_semantics<parallel>], iteration_bounds = array<i64: 2, 1>, scalar_prefetch = 0 : i64, scratch_operands = 1 : i64, tpu.core_type = #tpu.core_type<tc>, window_params = [{transform_indices = @transform_0, window_bounds = array<i64: 1, 16, 18, 128>}, {transform_indices = @transform_1, window_bounds = array<i64: 1, 16, 18, 128>}, {pipeline_mode = #tpu.pipeline_mode<synchronous>, transform_indices = @transform_2, window_bounds = array<i64: 1152, 128>}, {pipeline_mode = #tpu.pipeline_mode<synchronous>, transform_indices = @transform_3, window_bounds = array<i64: 1, 128>}, {transform_indices = @transform_4, window_bounds = array<i64: 1, 16, 16, 128>}]} {
    %c0 = arith.constant 0 : index
    %c0_0 = arith.constant 0 : index
    %c0_1 = arith.constant 0 : index
    %c0_2 = arith.constant 0 : index
    %0 = vector.load %arg2[%c0, %c0_0, %c0_1, %c0_2] : memref<1x16x18x128xf32, #tpu.memory_space<vmem>>, vector<1x16x18x128xf32>
    %1 = vector.shape_cast %0 : vector<1x16x18x128xf32> to vector<16x18x128xf32>
    %c0_3 = arith.constant 0 : index
    %c0_4 = arith.constant 0 : index
    %c0_5 = arith.constant 0 : index
    %c0_6 = arith.constant 0 : index
    %2 = vector.load %arg3[%c0_3, %c0_4, %c0_5, %c0_6] : memref<1x16x18x128xf32, #tpu.memory_space<vmem>>, vector<1x2x18x128xf32>
    %3 = vector.shape_cast %2 : vector<1x2x18x128xf32> to vector<2x18x128xf32>
    %4 = tpu.concatenate %1, %3 in 0 : vector<16x18x128xf32>, vector<2x18x128xf32> -> vector<18x18x128xf32>
    %5 = vector.extract_strided_slice %4 {offsets = [0, 0, 0], sizes = [16, 18, 128], strides = [1, 1, 1]} : vector<18x18x128xf32> to vector<16x18x128xf32>
    %6 = vector.extract_strided_slice %5 {offsets = [0, 0, 0], sizes = [16, 16, 128], strides = [1, 1, 1]} : vector<16x18x128xf32> to vector<16x16x128xf32>
    %7 = vector.shape_cast %6 : vector<16x16x128xf32> to vector<256x128xf32>
    %c0_7 = arith.constant 0 : index
    %c0_8 = arith.constant 0 : index
    %8 = vector.load %arg7[%c0_7, %c0_8] : memref<256x1152xf32, #tpu.memory_space<vmem>>, vector<256x128xf32>
    tpu.vector_store %arg7[%c0_7, %c0_8], %7 {strides = array<i32>} : memref<256x1152xf32, #tpu.memory_space<vmem>>, vector<256x128xf32>,
    %9 = vector.extract_strided_slice %5 {offsets = [0, 1, 0], sizes = [16, 16, 128], strides = [1, 1, 1]} : vector<16x18x128xf32> to vector<16x16x128xf32>
    %10 = vector.shape_cast %9 : vector<16x16x128xf32> to vector<256x128xf32>
    %c0_9 = arith.constant 0 : index
    %c128 = arith.constant 128 : index
    %11 = vector.load %arg7[%c0_9, %c128] : memref<256x1152xf32, #tpu.memory_space<vmem>>, vector<256x128xf32>
    tpu.vector_store %arg7[%c0_9, %c128], %10 {strides = array<i32>} : memref<256x1152xf32, #tpu.memory_space<vmem>>, vector<256x128xf32>,
    %12 = vector.extract_strided_slice %5 {offsets = [0, 2, 0], sizes = [16, 16, 128], strides = [1, 1, 1]} : vector<16x18x128xf32> to vector<16x16x128xf32>
    %13 = vector.shape_cast %12 : vector<16x16x128xf32> to vector<256x128xf32>
    %c0_10 = arith.constant 0 : index
    %c256 = arith.constant 256 : index
    %14 = vector.load %arg7[%c0_10, %c256] : memref<256x1152xf32, #tpu.memory_space<vmem>>, vector<256x128xf32>
    tpu.vector_store %arg7[%c0_10, %c256], %13 {strides = array<i32>} : memref<256x1152xf32, #tpu.memory_space<vmem>>, vector<256x128xf32>,
    %15 = vector.extract_strided_slice %4 {offsets = [1, 0, 0], sizes = [16, 18, 128], strides = [1, 1, 1]} : vector<18x18x128xf32> to vector<16x18x128xf32>
    %16 = vector.extract_strided_slice %15 {offsets = [0, 0, 0], sizes = [16, 16, 128], strides = [1, 1, 1]} : vector<16x18x128xf32> to vector<16x16x128xf32>
    %17 = vector.shape_cast %16 : vector<16x16x128xf32> to vector<256x128xf32>
    %c0_11 = arith.constant 0 : index
    %c384 = arith.constant 384 : index
    %18 = vector.load %arg7[%c0_11, %c384] : memref<256x1152xf32, #tpu.memory_space<vmem>>, vector<256x128xf32>
    tpu.vector_store %arg7[%c0_11, %c384], %17 {strides = array<i32>} : memref<256x1152xf32, #tpu.memory_space<vmem>>, vector<256x128xf32>,
    %19 = vector.extract_strided_slice %15 {offsets = [0, 1, 0], sizes = [16, 16, 128], strides = [1, 1, 1]} : vector<16x18x128xf32> to vector<16x16x128xf32>
    %20 = vector.shape_cast %19 : vector<16x16x128xf32> to vector<256x128xf32>
    %c0_12 = arith.constant 0 : index
    %c512 = arith.constant 512 : index
    %21 = vector.load %arg7[%c0_12, %c512] : memref<256x1152xf32, #tpu.memory_space<vmem>>, vector<256x128xf32>
    tpu.vector_store %arg7[%c0_12, %c512], %20 {strides = array<i32>} : memref<256x1152xf32, #tpu.memory_space<vmem>>, vector<256x128xf32>,
    %22 = vector.extract_strided_slice %15 {offsets = [0, 2, 0], sizes = [16, 16, 128], strides = [1, 1, 1]} : vector<16x18x128xf32> to vector<16x16x128xf32>
    %23 = vector.shape_cast %22 : vector<16x16x128xf32> to vector<256x128xf32>
    %c0_13 = arith.constant 0 : index
    %c640 = arith.constant 640 : index
    %24 = vector.load %arg7[%c0_13, %c640] : memref<256x1152xf32, #tpu.memory_space<vmem>>, vector<256x128xf32>
    tpu.vector_store %arg7[%c0_13, %c640], %23 {strides = array<i32>} : memref<256x1152xf32, #tpu.memory_space<vmem>>, vector<256x128xf32>,
    %25 = vector.extract_strided_slice %4 {offsets = [2, 0, 0], sizes = [16, 18, 128], strides = [1, 1, 1]} : vector<18x18x128xf32> to vector<16x18x128xf32>
    %26 = vector.extract_strided_slice %25 {offsets = [0, 0, 0], sizes = [16, 16, 128], strides = [1, 1, 1]} : vector<16x18x128xf32> to vector<16x16x128xf32>
    %27 = vector.shape_cast %26 : vector<16x16x128xf32> to vector<256x128xf32>
    %c0_14 = arith.constant 0 : index
    %c768 = arith.constant 768 : index
    %28 = vector.load %arg7[%c0_14, %c768] : memref<256x1152xf32, #tpu.memory_space<vmem>>, vector<256x128xf32>
    tpu.vector_store %arg7[%c0_14, %c768], %27 {strides = array<i32>} : memref<256x1152xf32, #tpu.memory_space<vmem>>, vector<256x128xf32>,
    %29 = vector.extract_strided_slice %25 {offsets = [0, 1, 0], sizes = [16, 16, 128], strides = [1, 1, 1]} : vector<16x18x128xf32> to vector<16x16x128xf32>
    %30 = vector.shape_cast %29 : vector<16x16x128xf32> to vector<256x128xf32>
    %c0_15 = arith.constant 0 : index
    %c896 = arith.constant 896 : index
    %31 = vector.load %arg7[%c0_15, %c896] : memref<256x1152xf32, #tpu.memory_space<vmem>>, vector<256x128xf32>
    tpu.vector_store %arg7[%c0_15, %c896], %30 {strides = array<i32>} : memref<256x1152xf32, #tpu.memory_space<vmem>>, vector<256x128xf32>,
    %32 = vector.extract_strided_slice %25 {offsets = [0, 2, 0], sizes = [16, 16, 128], strides = [1, 1, 1]} : vector<16x18x128xf32> to vector<16x16x128xf32>
    %33 = vector.shape_cast %32 : vector<16x16x128xf32> to vector<256x128xf32>
    %c0_16 = arith.constant 0 : index
    %c1024 = arith.constant 1024 : index
    %34 = vector.load %arg7[%c0_16, %c1024] : memref<256x1152xf32, #tpu.memory_space<vmem>>, vector<256x128xf32>
    tpu.vector_store %arg7[%c0_16, %c1024], %33 {strides = array<i32>} : memref<256x1152xf32, #tpu.memory_space<vmem>>, vector<256x128xf32>,
    %c0_17 = arith.constant 0 : index
    %c0_18 = arith.constant 0 : index
    %35 = vector.load %arg7[%c0_17, %c0_18] : memref<256x1152xf32, #tpu.memory_space<vmem>>, vector<256x1152xf32>
    %c0_19 = arith.constant 0 : index
    %c0_20 = arith.constant 0 : index
    %36 = vector.load %arg4[%c0_19, %c0_20] : memref<1152x128xf32, #tpu.memory_space<vmem>>, vector<1152x128xf32>
    %cst = arith.constant dense<0.000000e+00> : vector<256x128xf32>
    %37 = tpu.matmul %35, %36, %cst {dimension_numbers = #tpu.dot_dimension_numbers<[1], [0], [0], [1], [0, 0, 1, 1], [], []>} : vector<256x1152xf32>, vector<1152x128xf32>, vector<256x128xf32> -> vector<256x128xf32>
    %c0_21 = arith.constant 0 : index
    %c0_22 = arith.constant 0 : index
    %38 = vector.load %arg5[%c0_21, %c0_22] : memref<1x128xf32, #tpu.memory_space<vmem>>, vector<1x128xf32>
    %39 = vector.broadcast %38 : vector<1x128xf32> to vector<256x128xf32>
    %40 = arith.addf %37, %39 : vector<256x128xf32>
    %41 = vector.shape_cast %40 : vector<256x128xf32> to vector<16x16x128xf32>
    %c0_23 = arith.constant 0 : index
    %c0_24 = arith.constant 0 : index
    %c0_25 = arith.constant 0 : index
    %c0_26 = arith.constant 0 : index
    %42 = vector.load %arg6[%c0_23, %c0_24, %c0_25, %c0_26] : memref<1x16x16x128xf32, #tpu.memory_space<vmem>>, vector<1x16x16x128xf32>
    %43 = vector.shape_cast %42 : vector<1x16x16x128xf32> to vector<16x16x128xf32>
    %44 = vector.shape_cast %41 : vector<16x16x128xf32> to vector<1x16x16x128xf32>
    tpu.vector_store %arg6[%c0_23, %c0_24, %c0_25, %c0_26], %44 {strides = array<i32>} : memref<1x16x16x128xf32, #tpu.memory_space<vmem>>, vector<1x16x16x128xf32>,
    return
  }
  func.func @transform_0(%arg0: i32, %arg1: i32) -> (i32, i32, i32, i32) {
    %c0_i32 = arith.constant 0 : i32
    %c0_i32_0 = arith.constant 0 : i32
    %c0_i32_1 = arith.constant 0 : i32
    return %arg0, %arg1, %c0_i32, %c0_i32_0 : i32, i32, i32, i32
  }
  func.func @transform_1(%arg0: i32, %arg1: i32) -> (i32, i32, i32, i32) {
    %c1_i32 = arith.constant 1 : i32
    %0 = arith.addi %arg1, %c1_i32 : i32
    %c0_i32 = arith.constant 0 : i32
    %c0_i32_0 = arith.constant 0 : i32
    %c0_i32_1 = arith.constant 0 : i32
    return %arg0, %0, %c0_i32, %c0_i32_0 : i32, i32, i32, i32
  }
  func.func @transform_2(%arg0: i32, %arg1: i32) -> (i32, i32) {
    %c0_i32 = arith.constant 0 : i32
    %c0_i32_0 = arith.constant 0 : i32
    %c0_i32_1 = arith.constant 0 : i32
    return %c0_i32, %c0_i32_0 : i32, i32
  }
  func.func @transform_3(%arg0: i32, %arg1: i32) -> (i32, i32) {
    %c0_i32 = arith.constant 0 : i32
    %c0_i32_0 = arith.constant 0 : i32
    %c0_i32_1 = arith.constant 0 : i32
    return %c0_i32, %c0_i32_0 : i32, i32
  }
  func.func @transform_4(%arg0: i32, %arg1: i32) -> (i32, i32, i32, i32) {
    %c0_i32 = arith.constant 0 : i32
    %c0_i32_0 = arith.constant 0 : i32
    %c0_i32_1 = arith.constant 0 : i32
    return %arg0, %arg1, %c0_i32, %c0_i32_0 : i32, i32, i32, i32
  }
}

</mosaic_0001>

<llo_original>
// kernel: _lambda_.17
$region0: #{_lambda_.17}
  #allocation0 [shape = 'u32[]', space=smem, size = 0x4, offset = 0x4, fixed_abs, tag = 'smem constant byte address 0x4 - core index']
  #allocation1 [shape = 'u32[144,128]{1,0:T(1,128)}', space=vmem, size = 0x12000, scoped, tag = 'internal scratch']
  %s0 = inlined_call_operand.vmem [shape: f32[2,16,16,128], index: 0, kind: input, shape index: {}]
  %s1 = inlined_call_operand.vmem [shape: f32[128,128], index: 1, kind: input, shape index: {}]
  %s2 = inlined_call_operand.vmem [shape: f32[1,128], index: 2, kind: input, shape index: {}]
  %s3 = inlined_call_operand.vmem [shape: f32[2,16,16,128], index: 3, kind: output, shape index: {}]
  %s4 = sld [smem:[#allocation0]]
  $region45: #{_lambda_.17} parent=0
    _
  %s6 = ssub.s32 1, %s4
  %s7 = scalar_select 0, %s6, %s4
  loop: start=0, step=1, limit=4
  $region2: #{_lambda_.17} parent=0 // loop_pre_header
    _
  $region3: #{_lambda_.17} parent=0 // loop_header
    %s9 = sphi 0, %s13
    %p10 = scmp.ge.s32.totalorder %s9, 4
    %s16 = sphi 0, %s28
    %s17 = sphi 0, %s24
    %s18 = sphi 0, %s16
    %s19 = sphi 0, %s17
    %s20 = sphi 0, %s18
    %s21 = sphi 0, %s19
    %s33 = sphi 0, %s35
    %s36 = sphi 0, %s33
    %s37 = sphi 0, %s36
    %s53 = sphi 0, %s37
    %s57 = sphi 0, %s57
    %s59 = sphi 0, %s57
    %s60 = sphi 0, %s59
    %s74 = sphi 0, %s60
    %s78 = sphi 0, %s78
    %s80 = sphi 0, %s78
    %s81 = sphi 0, %s80
    %s95 = sphi 0, %s81
    %s103 = sphi 0, %s105
    %s106 = sphi 0, %s103
    %s107 = sphi 0, %s106
    %s123 = sphi 0, %s107
  $region4: #{_lambda_.17} parent=0 // loop_header_branch
    %12 = sbr.rel (%p10) target = $region8
  $region5: #{_lambda_.17} parent=0 // loop_body
    %s14 = ssub.s32 %s9, 1
    %s15 = ssub.s32 %s9, 2
    %s22 = sadd.s32 1, %s17
    %p23 = scmp.ge.s32.totalorder %s22, 1
    %s24 = scalar_select %p23, 0, %s22
    %s25 = sadd.s32 1, %s16
    %s26 = scalar_select %p23, %s25, %s16
    %p27 = scmp.ge.s32.totalorder %s26, 2
    %s28 = scalar_select %p27, 0, %s26
    %s29 = ssub.s32 %s16, %s28
    %s30 = ssub.s32 %s17, %s24
    %s31 = sor.u32 %s29, %s30
    %p32 = scmp.eq.s32.totalorder %s31, 0
    %s34 = sadd.s32 %s33, 1
    %s35 = scalar_select %p32, %s33, %s34
    %p38 = pneg %p32
    %p39 = scmp.eq.s32.totalorder %s9, 1
    %p40 = por %p38, %p39
    %p41 = scmp.ne.s32.totalorder %s33, %s36
    %p42 = scmp.eq.s32.totalorder %s9, 0
    %p43 = por %p41, %p42
    %p44 = scmp.ne.s32.totalorder %s33, %s36
    %p45 = scmp.eq.s32.totalorder %s14, 1
    %p46 = por %p44, %p45
    %p47 = scmp.ne.s32.totalorder %s36, %s37
    %p48 = scmp.eq.s32.totalorder %s14, 0
    %p49 = por %p47, %p48
    %p50 = scmp.ne.s32.totalorder %s36, %s37
    %p51 = scmp.eq.s32.totalorder %s15, 1
    %p52 = por %p50, %p51
    %p54 = scmp.ne.s32.totalorder %s37, %s53
    %p55 = scmp.eq.s32.totalorder %s15, 0
    %p56 = por %p54, %p55
    %s58 = sadd.s32 %s57, 1
    %p61 = scmp.eq.s32.totalorder %s9, 1
    %p62 = scmp.ne.s32.totalorder %s57, %s59
    %p63 = scmp.eq.s32.totalorder %s9, 0
    %p64 = por %p62, %p63
    %p65 = scmp.ne.s32.totalorder %s57, %s59
    %p66 = scmp.eq.s32.totalorder %s14, 1
    %p67 = por %p65, %p66
    %p68 = scmp.ne.s32.totalorder %s59, %s60
    %p69 = scmp.eq.s32.totalorder %s14, 0
    %p70 = por %p68, %p69
    %p71 = scmp.ne.s32.totalorder %s59, %s60
    %p72 = scmp.eq.s32.totalorder %s15, 1
    %p73 = por %p71, %p72
    %p75 = scmp.ne.s32.totalorder %s60, %s74
    %p76 = scmp.eq.s32.totalorder %s15, 0
    %p77 = por %p75, %p76
    %s79 = sadd.s32 %s78, 1
    %p82 = scmp.eq.s32.totalorder %s9, 1
    %p83 = scmp.ne.s32.totalorder %s78, %s80
    %p84 = scmp.eq.s32.totalorder %s9, 0
    %p85 = por %p83, %p84
    %p86 = scmp.ne.s32.totalorder %s78, %s80
    %p87 = scmp.eq.s32.totalorder %s14, 1
    %p88 = por %p86, %p87
    %p89 = scmp.ne.s32.totalorder %s80, %s81
    %p90 = scmp.eq.s32.totalorder %s14, 0
    %p91 = por %p89, %p90
    %p92 = scmp.ne.s32.totalorder %s80, %s81
    %p93 = scmp.eq.s32.totalorder %s15, 1
    %p94 = por %p92, %p93
    %p96 = scmp.ne.s32.totalorder %s81, %s95
    %p97 = scmp.eq.s32.totalorder %s15, 0
    %p98 = por %p96, %p97
    %s99 = ssub.s32 %s16, %s28
    %s100 = ssub.s32 %s17, %s24
    %s101 = sor.u32 %s99, %s100
    %p102 = scmp.eq.s32.totalorder %s101, 0
    %s104 = sadd.s32 %s103, 1
    %s105 = scalar_select %p102, %s103, %s104
    %p108 = pneg %p102
    %p109 = scmp.eq.s32.totalorder %s9, 1
    %p110 = por %p108, %p109
    %p111 = scmp.ne.s32.totalorder %s103, %s106
    %p112 = scmp.eq.s32.totalorder %s9, 0
    %p113 = por %p111, %p112
    %p114 = scmp.ne.s32.totalorder %s103, %s106
    %p115 = scmp.eq.s32.totalorder %s14, 1
    %p116 = por %p114, %p115
    %p117 = scmp.ne.s32.totalorder %s106, %s107
    %p118 = scmp.eq.s32.totalorder %s14, 0
    %p119 = por %p117, %p118
    %p120 = scmp.ne.s32.totalorder %s106, %s107
    %p121 = scmp.eq.s32.totalorder %s15, 1
    %p122 = por %p120, %p121
    %p124 = scmp.ne.s32.totalorder %s107, %s123
    %p125 = scmp.eq.s32.totalorder %s15, 0
    %p126 = por %p124, %p125
    %p127 = scmp.le.s32.totalorder 1, %s9
    %p128 = scmp.lt.s32.totalorder %s9, 3
    %p129 = pnand %p127, %p128
    %p130 = pneg %p129
    // Predicated region
    $region9: #{_lambda_.17} parent=5 // pred_check
      _
    $region10: #{_lambda_.17} parent=5 // pred_check_branch
      %132 = sbr.rel (%p129) target = $region12
    $region11: #{_lambda_.17} parent=5 // pred_region
      %s133 = ssub.s32 %s9, 1
      // Predicated region
      $region13: #{_lambda_.17} parent=11 // pred_check
        %p134 = pneg %p70
      $region14: #{_lambda_.17} parent=11 // pred_check_branch
        %136 = sbr.rel (%p134) target = $region16
      $region15: #{_lambda_.17} parent=11 // pred_region
        _
      $region16: #{_lambda_.17} parent=11 // pred_fallthru
        _
      // Predicated region
      $region17: #{_lambda_.17} parent=11 // pred_check
        %p137 = pneg %p91
      $region18: #{_lambda_.17} parent=11 // pred_check_branch
        %139 = sbr.rel (%p137) target = $region20
      $region19: #{_lambda_.17} parent=11 // pred_region
        _
      $region20: #{_lambda_.17} parent=11 // pred_fallthru
        _
    $region12: #{_lambda_.17} parent=5 // pred_fallthru
      _
    %p140 = scmp.lt.s32.totalorder %s9, 2
    // Predicated region
    $region21: #{_lambda_.17} parent=5 // pred_check
      %p141 = pneg %p140
    $region22: #{_lambda_.17} parent=5 // pred_check_branch
      %143 = sbr.rel (%p141) target = $region24
    $region23: #{_lambda_.17} parent=5 // pred_region
      // Predicated region
      $region25: #{_lambda_.17} parent=23 // pred_check
        %p144 = pneg %p43
      $region26: #{_lambda_.17} parent=23 // pred_check_branch
        %146 = sbr.rel (%p144) target = $region28
      $region27: #{_lambda_.17} parent=23 // pred_region
        %s147 = smul.u32 16, %s17
        %p148 = scmp.lt.s32.totalorder %s16, 1
        %s149 = scalar_select %p148, %s16, 1
        %p150 = scmp.lt.s32.totalorder %s147, 15
        %s151 = scalar_select %p150, %s147, 15
        %s152 = smul.addr %s151, 2
        %s153 = smul.addr %s149, 32
        %s154 = sadd.s32 %s152, %s153
        %s155 = smul.addr %s154, 8
        %s156 = scalar_lea.vmem %s0, %s155
        %s157 = smul.u32 16, %s17
      $region28: #{_lambda_.17} parent=23 // pred_fallthru
        _
    $region24: #{_lambda_.17} parent=5 // pred_fallthru
      _
    %p158 = scmp.le.s32.totalorder 1, %s9
    %p159 = scmp.lt.s32.totalorder %s9, 3
    %p160 = pnand %p158, %p159
    %p161 = pneg %p160
    // Predicated region
    $region29: #{_lambda_.17} parent=5 // pred_check
      _
    $region30: #{_lambda_.17} parent=5 // pred_check_branch
      %163 = sbr.rel (%p160) target = $region32
    $region31: #{_lambda_.17} parent=5 // pred_region
      %s164 = ssub.s32 %s9, 1
      %s165 = smul.u32 16, %s19
      %p166 = scmp.lt.s32.totalorder %s18, 1
      %s167 = scalar_select %p166, %s18, 1
      %p168 = scmp.lt.s32.totalorder %s165, 15
      %s169 = scalar_select %p168, %s165, 15
      %s170 = smul.addr %s169, 2
      %s171 = smul.addr %s167, 32
      %s172 = sadd.s32 %s170, %s171
      %s173 = smul.addr %s172, 8
      %s174 = scalar_lea.vmem %s0, %s173
      %p175 = pneg %p49
      %p176 = pneg %p46
      %p177 = pneg %p70
      %p178 = pneg %p67
      %p179 = pneg %p91
      %p180 = pneg %p88
      %p181 = pneg %p119
      %p182 = pneg %p116
      %s183 = smul.u32 16, %s19
      %p184 = scmp.lt.s32.totalorder %s18, 1
      %s185 = scalar_select %p184, %s18, 1
      %p186 = scmp.lt.s32.totalorder %s183, 15
      %s187 = scalar_select %p186, %s183, 15
      %s188 = smul.addr %s187, 2
      %s189 = smul.addr %s185, 32
      %s190 = sadd.s32 %s188, %s189
      %s191 = smul.addr %s190, 8
      %s192 = scalar_lea.vmem %s3, %s191
      %s193 = smul.u32 16, %s19
      %p194 = scmp.lt.s32.totalorder %s18, 1
      %s195 = scalar_select %p194, %s18, 1
      %p196 = scmp.lt.s32.totalorder %s193, 15
      %s197 = scalar_select %p196, %s193, 15
      %s198 = smul.addr %s197, 2
      %s199 = smul.addr %s195, 32
      %s200 = sadd.s32 %s198, %s199
      %s201 = smul.addr %s200, 8
      %s202 = scalar_lea.vmem %s0, %s201
      %s203 = smul.u32 16, %s19
      %s204 = smul.u32 16, %s19
      %p205 = scmp.lt.s32.totalorder %s18, 1
      %s206 = scalar_select %p205, %s18, 1
      %p207 = scmp.lt.s32.totalorder %s204, 15
      %s208 = scalar_select %p207, %s204, 15
      %s209 = smul.addr %s208, 2
      %s210 = smul.addr %s206, 32
      %s211 = sadd.s32 %s209, %s210
      %s212 = smul.addr %s211, 8
      %s213 = scalar_lea.vmem %s3, %s212
      %s214 = smul.u32 16, %s19
      %v215 = vld [vmem:[%s202] sm:$0xff]
      %v216 = vld [vmem:[%s202 + $0x8] sm:$0xff]
      %v217 = vld [vmem:[%s202 + $0x10] sm:$0xff]
      %v218 = vld [vmem:[%s202 + $0x18] sm:$0xff]
      %v219 = vld [vmem:[%s202 + $0x20] sm:$0xff]
      %v220 = vld [vmem:[%s202 + $0x28] sm:$0xff]
      %v221 = vld [vmem:[%s202 + $0x30] sm:$0xff]
      %v222 = vld [vmem:[%s202 + $0x38] sm:$0xff]
      %v223 = vld [vmem:[%s202 + $0x40] sm:$0xff]
      %v224 = vld [vmem:[%s202 + $0x48] sm:$0xff]
      %v225 = vld [vmem:[%s202 + $0x50] sm:$0xff]
      %v226 = vld [vmem:[%s202 + $0x58] sm:$0xff]
      %v227 = vld [vmem:[%s202 + $0x60] sm:$0xff]
      %v228 = vld [vmem:[%s202 + $0x68] sm:$0xff]
      %v229 = vld [vmem:[%s202 + $0x70] sm:$0xff]
      %v230 = vld [vmem:[%s202 + $0x78] sm:$0xff]
      %v231 = vld [vmem:[%s202 + $0x80] sm:$0xff]
      %v232 = vld [vmem:[%s202 + $0x88] sm:$0xff]
      %v233 = vld [vmem:[%s202 + $0x90] sm:$0xff]
      %v234 = vld [vmem:[%s202 + $0x98] sm:$0xff]
      %v235 = vld [vmem:[%s202 + $0xa0] sm:$0xff]
      %v236 = vld [vmem:[%s202 + $0xa8] sm:$0xff]
      %v237 = vld [vmem:[%s202 + $0xb0] sm:$0xff]
      %v238 = vld [vmem:[%s202 + $0xb8] sm:$0xff]
      %v239 = vld [vmem:[%s202 + $0xc0] sm:$0xff]
      %v240 = vld [vmem:[%s202 + $0xc8] sm:$0xff]
      %v241 = vld [vmem:[%s202 + $0xd0] sm:$0xff]
      %v242 = vld [vmem:[%s202 + $0xd8] sm:$0xff]
      %v243 = vld [vmem:[%s202 + $0xe0] sm:$0xff]
      %v244 = vld [vmem:[%s202 + $0xe8] sm:$0xff]
      %v245 = vld [vmem:[%s202 + $0xf0] sm:$0xff]
      %v246 = vld [vmem:[%s202 + $0xf8] sm:$0xff]
      %v247 = vld [vmem:[%s1] sm:$0xff]
      %v248 = vld [vmem:[%s1 + $0x8] sm:$0xff]
      %v249 = vld [vmem:[%s1 + $0x10] sm:$0xff]
      %v250 = vld [vmem:[%s1 + $0x18] sm:$0xff]
      %v251 = vld [vmem:[%s1 + $0x20] sm:$0xff]
      %v252 = vld [vmem:[%s1 + $0x28] sm:$0xff]
      %v253 = vld [vmem:[%s1 + $0x30] sm:$0xff]
      %v254 = vld [vmem:[%s1 + $0x38] sm:$0xff]
      %v255 = vld [vmem:[%s1 + $0x40] sm:$0xff]
      %v256 = vld [vmem:[%s1 + $0x48] sm:$0xff]
      %v257 = vld [vmem:[%s1 + $0x50] sm:$0xff]
      %v258 = vld [vmem:[%s1 + $0x58] sm:$0xff]
      %v259 = vld [vmem:[%s1 + $0x60] sm:$0xff]
      %v260 = vld [vmem:[%s1 + $0x68] sm:$0xff]
      %v261 = vld [vmem:[%s1 + $0x70] sm:$0xff]
      %v262 = vld [vmem:[%s1 + $0x78] sm:$0xff]
      %v263 = vld [vmem:[%s2] sm:$0x1]
      %v265 = vlaneseq
      %v266 = vshrl.u32 %v265, 7
      %v267 = vsub.s32 0, %v266
      %v268 = vrot.slane %v263, %v267
      %270 = vmatprep.subr.mxu0 0.0
      %271 = vmatpush1.msra.mxu0 %v247
      %272 = vmatprep.subr.mxu0 0.0
      %273 = vmatpush1.msra.mxu0 %v248
      %274 = vmatprep.subr.mxu0 0.0
      %275 = vmatpush1.msra.mxu0 %v249
      %276 = vmatprep.subr.mxu0 0.0
      %277 = vmatpush1.msra.mxu0 %v250
      %278 = vmatprep.subr.mxu0 0.0
      %279 = vmatpush1.msra.mxu0 %v251
      %280 = vmatprep.subr.mxu0 0.0
      %281 = vmatpush1.msra.mxu0 %v252
      %282 = vmatprep.subr.mxu0 0.0
      %283 = vmatpush1.msra.mxu0 %v253
      %284 = vmatprep.subr.mxu0 0.0
      %285 = vmatpush1.msra.mxu0 %v254
      %286 = vmatprep.subr.mxu0 0.0
      %287 = vmatpush1.msra.mxu0 %v255
      %288 = vmatprep.subr.mxu0 0.0
      %289 = vmatpush1.msra.mxu0 %v256
      %290 = vmatprep.subr.mxu0 0.0
      %291 = vmatpush1.msra.mxu0 %v257
      %292 = vmatprep.subr.mxu0 0.0
      %293 = vmatpush1.msra.mxu0 %v258
      %294 = vmatprep.subr.mxu0 0.0
      %295 = vmatpush1.msra.mxu0 %v259
      %296 = vmatprep.subr.mxu0 0.0
      %297 = vmatpush1.msra.mxu0 %v260
      %298 = vmatprep.subr.mxu0 0.0
      %299 = vmatpush1.msra.mxu0 %v261
      %300 = vmatprep.subr.mxu0 0.0
      %301 = vmatpush1.msra.mxu0 %v262
      %302 = vmatprep.subr.mxu0 0.0
      %303 = vmatpush1.msra.mxu0 0.0
      %304 = vmatprep.subr.mxu0 0.0
      %305 = vmatpush1.msra.mxu0 0.0
      %306 = vmatprep.subr.mxu0 0.0
      %307 = vmatpush1.msra.mxu0 0.0
      %308 = vmatprep.subr.mxu0 0.0
      %309 = vmatpush1.msra.mxu0 0.0
      %310 = vmatprep.subr.mxu0 0.0
      %311 = vmatpush1.msra.mxu0 0.0
      %312 = vmatprep.subr.mxu0 0.0
      %313 = vmatpush1.msra.mxu0 0.0
      %314 = vmatprep.subr.mxu0 0.0
      %315 = vmatpush1.msra.mxu0 0.0
      %316 = vmatprep.subr.mxu0 0.0
      %317 = vmatpush1.msra.mxu0 0.0
      %318 = vmatprep.subr.mxu0 0.0
      %319 = vmatpush1.msra.mxu0 0.0
      %320 = vmatprep.subr.mxu0 0.0
      %321 = vmatpush1.msra.mxu0 0.0
      %322 = vmatprep.subr.mxu0 0.0
      %323 = vmatpush1.msra.mxu0 0.0
      %324 = vmatprep.subr.mxu0 0.0
      %325 = vmatpush1.msra.mxu0 0.0
      %326 = vmatprep.subr.mxu0 0.0
      %327 = vmatpush1.msra.mxu0 0.0
      %328 = vmatprep.subr.mxu0 0.0
      %329 = vmatpush1.msra.mxu0 0.0
      %330 = vmatprep.subr.mxu0 0.0
      %331 = vmatpush1.msra.mxu0 0.0
      %332 = vmatprep.subr.mxu0 0.0
      %333 = vmatpush1.msra.mxu0 0.0
      %334 = vmatprep.mubr.f32.mxu0 0.0
      %335 = vmatmul.mubr.f32.gmra.mrb[0].mxu0 %v215
      %v336 = vpop.f32.mrb[0].mxu0
      %v337 = vadd.f32 %v268, %v336
      %v338 = vpop.f32.mrb[0].mxu0
      %339 = vmatprep.mubr.f32.mxu0 0.0
      %340 = vmatmul.mubr.f32.gmra.mrb[0].mxu0 %v216
      %v341 = vpop.f32.mrb[0].mxu0
      %v342 = vadd.f32 %v268, %v341
      %v343 = vpop.f32.mrb[0].mxu0
      %344 = vmatprep.mubr.f32.mxu0 0.0
      %345 = vmatmul.mubr.f32.gmra.mrb[0].mxu0 %v217
      %v346 = vpop.f32.mrb[0].mxu0
      %v347 = vadd.f32 %v268, %v346
      %v348 = vpop.f32.mrb[0].mxu0
      %349 = vmatprep.mubr.f32.mxu0 0.0
      %350 = vmatmul.mubr.f32.gmra.mrb[0].mxu0 %v218
      %v351 = vpop.f32.mrb[0].mxu0
      %v352 = vadd.f32 %v268, %v351
      %v353 = vpop.f32.mrb[0].mxu0
      %354 = vmatprep.mubr.f32.mxu0 0.0
      %355 = vmatmul.mubr.f32.gmra.mrb[0].mxu0 %v219
      %v356 = vpop.f32.mrb[0].mxu0
      %v357 = vadd.f32 %v268, %v356
      %v358 = vpop.f32.mrb[0].mxu0
      %359 = vmatprep.mubr.f32.mxu0 0.0
      %360 = vmatmul.mubr.f32.gmra.mrb[0].mxu0 %v220
      %v361 = vpop.f32.mrb[0].mxu0
      %v362 = vadd.f32 %v268, %v361
      %v363 = vpop.f32.mrb[0].mxu0
      %364 = vmatprep.mubr.f32.mxu0 0.0
      %365 = vmatmul.mubr.f32.gmra.mrb[0].mxu0 %v221
      %v366 = vpop.f32.mrb[0].mxu0
      %v367 = vadd.f32 %v268, %v366
      %v368 = vpop.f32.mrb[0].mxu0
      %369 = vmatprep.mubr.f32.mxu0 0.0
      %370 = vmatmul.mubr.f32.gmra.mrb[0].mxu0 %v222
      %v371 = vpop.f32.mrb[0].mxu0
      %v372 = vadd.f32 %v268, %v371
      %v373 = vpop.f32.mrb[0].mxu0
      %374 = vmatprep.mubr.f32.mxu0 0.0
      %375 = vmatmul.mubr.f32.gmra.mrb[0].mxu0 %v223
      %v376 = vpop.f32.mrb[0].mxu0
      %v377 = vadd.f32 %v268, %v376
      %v378 = vpop.f32.mrb[0].mxu0
      %379 = vmatprep.mubr.f32.mxu0 0.0
      %380 = vmatmul.mubr.f32.gmra.mrb[0].mxu0 %v224
      %v381 = vpop.f32.mrb[0].mxu0
      %v382 = vadd.f32 %v268, %v381
      %v383 = vpop.f32.mrb[0].mxu0
      %384 = vmatprep.mubr.f32.mxu0 0.0
      %385 = vmatmul.mubr.f32.gmra.mrb[0].mxu0 %v225
      %v386 = vpop.f32.mrb[0].mxu0
      %v387 = vadd.f32 %v268, %v386
      %v388 = vpop.f32.mrb[0].mxu0
      %389 = vmatprep.mubr.f32.mxu0 0.0
      %390 = vmatmul.mubr.f32.gmra.mrb[0].mxu0 %v226
      %v391 = vpop.f32.mrb[0].mxu0
      %v392 = vadd.f32 %v268, %v391
      %v393 = vpop.f32.mrb[0].mxu0
      %394 = vmatprep.mubr.f32.mxu0 0.0
      %395 = vmatmul.mubr.f32.gmra.mrb[0].mxu0 %v227
      %v396 = vpop.f32.mrb[0].mxu0
      %v397 = vadd.f32 %v268, %v396
      %v398 = vpop.f32.mrb[0].mxu0
      %399 = vmatprep.mubr.f32.mxu0 0.0
      %400 = vmatmul.mubr.f32.gmra.mrb[0].mxu0 %v228
      %v401 = vpop.f32.mrb[0].mxu0
      %v402 = vadd.f32 %v268, %v401
      %v403 = vpop.f32.mrb[0].mxu0
      %404 = vmatprep.mubr.f32.mxu0 0.0
      %405 = vmatmul.mubr.f32.gmra.mrb[0].mxu0 %v229
      %v406 = vpop.f32.mrb[0].mxu0
      %v407 = vadd.f32 %v268, %v406
      %v408 = vpop.f32.mrb[0].mxu0
      %409 = vmatprep.mubr.f32.mxu0 0.0
      %410 = vmatmul.mubr.f32.gmra.mrb[0].mxu0 %v230
      %v411 = vpop.f32.mrb[0].mxu0
      %v412 = vadd.f32 %v268, %v411
      %v413 = vpop.f32.mrb[0].mxu0
      %414 = vmatprep.mubr.f32.mxu0 0.0
      %415 = vmatmul.mubr.f32.gmra.mrb[0].mxu0 %v231
      %v416 = vpop.f32.mrb[0].mxu0
      %v417 = vadd.f32 %v268, %v416
      %v418 = vpop.f32.mrb[0].mxu0
      %419 = vmatprep.mubr.f32.mxu0 0.0
      %420 = vmatmul.mubr.f32.gmra.mrb[0].mxu0 %v232
      %v421 = vpop.f32.mrb[0].mxu0
      %v422 = vadd.f32 %v268, %v421
      %v423 = vpop.f32.mrb[0].mxu0
      %424 = vmatprep.mubr.f32.mxu0 0.0
      %425 = vmatmul.mubr.f32.gmra.mrb[0].mxu0 %v233
      %v426 = vpop.f32.mrb[0].mxu0
      %v427 = vadd.f32 %v268, %v426
      %v428 = vpop.f32.mrb[0].mxu0
      %429 = vmatprep.mubr.f32.mxu0 0.0
      %430 = vmatmul.mubr.f32.gmra.mrb[0].mxu0 %v234
      %v431 = vpop.f32.mrb[0].mxu0
      %v432 = vadd.f32 %v268, %v431
      %v433 = vpop.f32.mrb[0].mxu0
      %434 = vmatprep.mubr.f32.mxu0 0.0
      %435 = vmatmul.mubr.f32.gmra.mrb[0].mxu0 %v235
      %v436 = vpop.f32.mrb[0].mxu0
      %v437 = vadd.f32 %v268, %v436
      %v438 = vpop.f32.mrb[0].mxu0
      %439 = vmatprep.mubr.f32.mxu0 0.0
      %440 = vmatmul.mubr.f32.gmra.mrb[0].mxu0 %v236
      %v441 = vpop.f32.mrb[0].mxu0
      %v442 = vadd.f32 %v268, %v441
      %v443 = vpop.f32.mrb[0].mxu0
      %444 = vmatprep.mubr.f32.mxu0 0.0
      %445 = vmatmul.mubr.f32.gmra.mrb[0].mxu0 %v237
      %v446 = vpop.f32.mrb[0].mxu0
      %v447 = vadd.f32 %v268, %v446
      %v448 = vpop.f32.mrb[0].mxu0
      %449 = vmatprep.mubr.f32.mxu0 0.0
      %450 = vmatmul.mubr.f32.gmra.mrb[0].mxu0 %v238
      %v451 = vpop.f32.mrb[0].mxu0
      %v452 = vadd.f32 %v268, %v451
      %v453 = vpop.f32.mrb[0].mxu0
      %454 = vmatprep.mubr.f32.mxu0 0.0
      %455 = vmatmul.mubr.f32.gmra.mrb[0].mxu0 %v239
      %v456 = vpop.f32.mrb[0].mxu0
      %v457 = vadd.f32 %v268, %v456
      %v458 = vpop.f32.mrb[0].mxu0
      %459 = vmatprep.mubr.f32.mxu0 0.0
      %460 = vmatmul.mubr.f32.gmra.mrb[0].mxu0 %v240
      %v461 = vpop.f32.mrb[0].mxu0
      %v462 = vadd.f32 %v268, %v461
      %v463 = vpop.f32.mrb[0].mxu0
      %464 = vmatprep.mubr.f32.mxu0 0.0
      %465 = vmatmul.mubr.f32.gmra.mrb[0].mxu0 %v241
      %v466 = vpop.f32.mrb[0].mxu0
      %v467 = vadd.f32 %v268, %v466
      %v468 = vpop.f32.mrb[0].mxu0
      %469 = vmatprep.mubr.f32.mxu0 0.0
      %470 = vmatmul.mubr.f32.gmra.mrb[0].mxu0 %v242
      %v471 = vpop.f32.mrb[0].mxu0
      %v472 = vadd.f32 %v268, %v471
      %v473 = vpop.f32.mrb[0].mxu0
      %474 = vmatprep.mubr.f32.mxu0 0.0
      %475 = vmatmul.mubr.f32.gmra.mrb[0].mxu0 %v243
      %v476 = vpop.f32.mrb[0].mxu0
      %v477 = vadd.f32 %v268, %v476
      %v478 = vpop.f32.mrb[0].mxu0
      %479 = vmatprep.mubr.f32.mxu0 0.0
      %480 = vmatmul.mubr.f32.gmra.mrb[0].mxu0 %v244
      %v481 = vpop.f32.mrb[0].mxu0
      %v482 = vadd.f32 %v268, %v481
      %v483 = vpop.f32.mrb[0].mxu0
      %484 = vmatprep.mubr.f32.mxu0 0.0
      %485 = vmatmul.mubr.f32.gmra.mrb[0].mxu0 %v245
      %v486 = vpop.f32.mrb[0].mxu0
      %v487 = vadd.f32 %v268, %v486
      %v488 = vpop.f32.mrb[0].mxu0
      %489 = vmatprep.mubr.f32.mxu0 0.0
      %490 = vmatmul.mubr.f32.gmra.mrb[0].mxu0 %v246
      %v491 = vpop.f32.mrb[0].mxu0
      %v492 = vadd.f32 %v268, %v491
      %v493 = vpop.f32.mrb[0].mxu0
      %494 = vdwg.mxu0
      %495 = vst [vmem:[%s213] sm:$0xff] %v337
      %496 = vst [vmem:[%s213 + $0x8] sm:$0xff] %v342
      %497 = vst [vmem:[%s213 + $0x10] sm:$0xff] %v347
      %498 = vst [vmem:[%s213 + $0x18] sm:$0xff] %v352
      %499 = vst [vmem:[%s213 + $0x20] sm:$0xff] %v357
      %500 = vst [vmem:[%s213 + $0x28] sm:$0xff] %v362
      %501 = vst [vmem:[%s213 + $0x30] sm:$0xff] %v367
      %502 = vst [vmem:[%s213 + $0x38] sm:$0xff] %v372
      %503 = vst [vmem:[%s213 + $0x40] sm:$0xff] %v377
      %504 = vst [vmem:[%s213 + $0x48] sm:$0xff] %v382
      %505 = vst [vmem:[%s213 + $0x50] sm:$0xff] %v387
      %506 = vst [vmem:[%s213 + $0x58] sm:$0xff] %v392
      %507 = vst [vmem:[%s213 + $0x60] sm:$0xff] %v397
      %508 = vst [vmem:[%s213 + $0x68] sm:$0xff] %v402
      %509 = vst [vmem:[%s213 + $0x70] sm:$0xff] %v407
      %510 = vst [vmem:[%s213 + $0x78] sm:$0xff] %v412
      %511 = vst [vmem:[%s213 + $0x80] sm:$0xff] %v417
      %512 = vst [vmem:[%s213 + $0x88] sm:$0xff] %v422
      %513 = vst [vmem:[%s213 + $0x90] sm:$0xff] %v427
      %514 = vst [vmem:[%s213 + $0x98] sm:$0xff] %v432
      %515 = vst [vmem:[%s213 + $0xa0] sm:$0xff] %v437
      %516 = vst [vmem:[%s213 + $0xa8] sm:$0xff] %v442
      %517 = vst [vmem:[%s213 + $0xb0] sm:$0xff] %v447
      %518 = vst [vmem:[%s213 + $0xb8] sm:$0xff] %v452
      %519 = vst [vmem:[%s213 + $0xc0] sm:$0xff] %v457
      %520 = vst [vmem:[%s213 + $0xc8] sm:$0xff] %v462
      %521 = vst [vmem:[%s213 + $0xd0] sm:$0xff] %v467
      %522 = vst [vmem:[%s213 + $0xd8] sm:$0xff] %v472
      %523 = vst [vmem:[%s213 + $0xe0] sm:$0xff] %v477
      %524 = vst [vmem:[%s213 + $0xe8] sm:$0xff] %v482
      %525 = vst [vmem:[%s213 + $0xf0] sm:$0xff] %v487
      %526 = vst [vmem:[%s213 + $0xf8] sm:$0xff] %v492
      %s527 = smul.u32 16, %s19
      %p528 = scmp.lt.s32.totalorder %s18, 1
      %s529 = scalar_select %p528, %s18, 1
      %p530 = scmp.lt.s32.totalorder %s527, 15
      %s531 = scalar_select %p530, %s527, 15
      %s532 = smul.addr %s531, 2
      %s533 = smul.addr %s529, 32
      %s534 = sadd.s32 %s532, %s533
      %s535 = smul.addr %s534, 8
      %s536 = scalar_lea.vmem %s3, %s535
      // Predicated region
      $region33: #{_lambda_.17} parent=31 // pred_check
        %p537 = pneg %p116
      $region34: #{_lambda_.17} parent=31 // pred_check_branch
        %539 = sbr.rel (%p537) target = $region36
      $region35: #{_lambda_.17} parent=31 // pred_region
        %s540 = smul.u32 16, %s19
      $region36: #{_lambda_.17} parent=31 // pred_fallthru
        _
    $region32: #{_lambda_.17} parent=5 // pred_fallthru
      _
    %p541 = scmp.le.s32.totalorder 2, %s9
    // Predicated region
    $region37: #{_lambda_.17} parent=5 // pred_check
      %p542 = pneg %p541
    $region38: #{_lambda_.17} parent=5 // pred_check_branch
      %544 = sbr.rel (%p542) target = $region40
    $region39: #{_lambda_.17} parent=5 // pred_region
      %s545 = ssub.s32 %s9, 2
      // Predicated region
      $region41: #{_lambda_.17} parent=39 // pred_check
        %p546 = pneg %p122
      $region42: #{_lambda_.17} parent=39 // pred_check_branch
        %548 = sbr.rel (%p546) target = $region44
      $region43: #{_lambda_.17} parent=39 // pred_region
        %s549 = smul.u32 16, %s21
        %p550 = scmp.lt.s32.totalorder %s20, 1
        %s551 = scalar_select %p550, %s20, 1
        %p552 = scmp.lt.s32.totalorder %s549, 15
        %s553 = scalar_select %p552, %s549, 15
        %s554 = smul.addr %s553, 2
        %s555 = smul.addr %s551, 32
        %s556 = sadd.s32 %s554, %s555
        %s557 = smul.addr %s556, 8
        %s558 = scalar_lea.vmem %s3, %s557
      $region44: #{_lambda_.17} parent=39 // pred_fallthru
        _
    $region40: #{_lambda_.17} parent=5 // pred_fallthru
      _
  $region6: #{_lambda_.17} parent=0 // loop_footer
    %s13 = sadd.s32 1, %s9
  $region7: #{_lambda_.17} parent=0 // loop_footer_branch
    %8 = sbr.rel target = $region3
  $region8: #{_lambda_.17} parent=0 // loop_exit
    _

// kernel: _lambda_.16
$region0: #{_lambda_.16}
  #allocation0 [shape = 'u32[]', space=smem, size = 0x4, offset = 0x4, fixed_abs, tag = 'smem constant byte address 0x4 - core index']
  #allocation1 [shape = 'u32[144,128]{1,0:T(1,128)}', space=vmem, size = 0x12000, scoped, tag = 'internal scratch']
  #allocation2 [shape = 'f32[256,1152]{1,0:T(8,128)}', space=vmem, size = 0x120000, scoped, tag = 'scratch operand']
  %s0 = inlined_call_operand.vmem [shape: f32[2,32,18,128], index: 0, kind: input, shape index: {}, may-alias: {0,1}]
  %s1 = inlined_call_operand.vmem [shape: f32[2,32,18,128], index: 1, kind: input, shape index: {}, may-alias: {0,1}]
  %s2 = inlined_call_operand.vmem [shape: f32[1152,128], index: 2, kind: input, shape index: {}]
  %s3 = inlined_call_operand.vmem [shape: f32[1,128], index: 3, kind: input, shape index: {}]
  %s4 = inlined_call_operand.vmem [shape: f32[2,16,16,128], index: 4, kind: output, shape index: {}]
  %s5 = sld [smem:[#allocation0]]
  $region49: #{_lambda_.16} parent=0
    _
  %s7 = ssub.s32 1, %s5
  %s8 = scalar_select 0, %s7, %s5
  loop: start=0, step=1, limit=4
  $region2: #{_lambda_.16} parent=0 // loop_pre_header
    _
  $region3: #{_lambda_.16} parent=0 // loop_header
    %s10 = sphi 0, %s14
    %p11 = scmp.ge.s32.totalorder %s10, 4
    %s17 = sphi 0, %s29
    %s18 = sphi 0, %s25
    %s19 = sphi 0, %s17
    %s20 = sphi 0, %s18
    %s21 = sphi 0, %s19
    %s22 = sphi 0, %s20
    %s34 = sphi 0, %s36
    %s37 = sphi 0, %s34
    %s38 = sphi 0, %s37
    %s54 = sphi 0, %s38
    %s64 = sphi 0, %s66
    %s67 = sphi 0, %s64
    %s68 = sphi 0, %s67
    %s84 = sphi 0, %s68
    %s88 = sphi 0, %s88
    %s90 = sphi 0, %s88
    %s91 = sphi 0, %s90
    %s105 = sphi 0, %s91
    %s109 = sphi 0, %s109
    %s111 = sphi 0, %s109
    %s112 = sphi 0, %s111
    %s126 = sphi 0, %s112
    %s134 = sphi 0, %s136
    %s137 = sphi 0, %s134
    %s138 = sphi 0, %s137
    %s154 = sphi 0, %s138
  $region4: #{_lambda_.16} parent=0 // loop_header_branch
    %13 = sbr.rel (%p11) target = $region8
  $region5: #{_lambda_.16} parent=0 // loop_body
    %s15 = ssub.s32 %s10, 1
    %s16 = ssub.s32 %s10, 2
    %s23 = sadd.s32 1, %s18
    %p24 = scmp.ge.s32.totalorder %s23, 1
    %s25 = scalar_select %p24, 0, %s23
    %s26 = sadd.s32 1, %s17
    %s27 = scalar_select %p24, %s26, %s17
    %p28 = scmp.ge.s32.totalorder %s27, 2
    %s29 = scalar_select %p28, 0, %s27
    %s30 = ssub.s32 %s17, %s29
    %s31 = ssub.s32 %s18, %s25
    %s32 = sor.u32 %s30, %s31
    %p33 = scmp.eq.s32.totalorder %s32, 0
    %s35 = sadd.s32 %s34, 1
    %s36 = scalar_select %p33, %s34, %s35
    %p39 = pneg %p33
    %p40 = scmp.eq.s32.totalorder %s10, 1
    %p41 = por %p39, %p40
    %p42 = scmp.ne.s32.totalorder %s34, %s37
    %p43 = scmp.eq.s32.totalorder %s10, 0
    %p44 = por %p42, %p43
    %p45 = scmp.ne.s32.totalorder %s34, %s37
    %p46 = scmp.eq.s32.totalorder %s15, 1
    %p47 = por %p45, %p46
    %p48 = scmp.ne.s32.totalorder %s37, %s38
    %p49 = scmp.eq.s32.totalorder %s15, 0
    %p50 = por %p48, %p49
    %p51 = scmp.ne.s32.totalorder %s37, %s38
    %p52 = scmp.eq.s32.totalorder %s16, 1
    %p53 = por %p51, %p52
    %p55 = scmp.ne.s32.totalorder %s38, %s54
    %p56 = scmp.eq.s32.totalorder %s16, 0
    %p57 = por %p55, %p56
    %s58 = sadd.s32 %s18, 1
    %s59 = sadd.s32 %s25, 1
    %s60 = ssub.s32 %s17, %s29
    %s61 = ssub.s32 %s58, %s59
    %s62 = sor.u32 %s60, %s61
    %p63 = scmp.eq.s32.totalorder %s62, 0
    %s65 = sadd.s32 %s64, 1
    %s66 = scalar_select %p63, %s64, %s65
    %p69 = pneg %p63
    %p70 = scmp.eq.s32.totalorder %s10, 1
    %p71 = por %p69, %p70
    %p72 = scmp.ne.s32.totalorder %s64, %s67
    %p73 = scmp.eq.s32.totalorder %s10, 0
    %p74 = por %p72, %p73
    %p75 = scmp.ne.s32.totalorder %s64, %s67
    %p76 = scmp.eq.s32.totalorder %s15, 1
    %p77 = por %p75, %p76
    %p78 = scmp.ne.s32.totalorder %s67, %s68
    %p79 = scmp.eq.s32.totalorder %s15, 0
    %p80 = por %p78, %p79
    %p81 = scmp.ne.s32.totalorder %s67, %s68
    %p82 = scmp.eq.s32.totalorder %s16, 1
    %p83 = por %p81, %p82
    %p85 = scmp.ne.s32.totalorder %s68, %s84
    %p86 = scmp.eq.s32.totalorder %s16, 0
    %p87 = por %p85, %p86
    %s89 = sadd.s32 %s88, 1
    %p92 = scmp.eq.s32.totalorder %s10, 1
    %p93 = scmp.ne.s32.totalorder %s88, %s90
    %p94 = scmp.eq.s32.totalorder %s10, 0
    %p95 = por %p93, %p94
    %p96 = scmp.ne.s32.totalorder %s88, %s90
    %p97 = scmp.eq.s32.totalorder %s15, 1
    %p98 = por %p96, %p97
    %p99 = scmp.ne.s32.totalorder %s90, %s91
    %p100 = scmp.eq.s32.totalorder %s15, 0
    %p101 = por %p99, %p100
    %p102 = scmp.ne.s32.totalorder %s90, %s91
    %p103 = scmp.eq.s32.totalorder %s16, 1
    %p104 = por %p102, %p103
    %p106 = scmp.ne.s32.totalorder %s91, %s105
    %p107 = scmp.eq.s32.totalorder %s16, 0
    %p108 = por %p106, %p107
    %s110 = sadd.s32 %s109, 1
    %p113 = scmp.eq.s32.totalorder %s10, 1
    %p114 = scmp.ne.s32.totalorder %s109, %s111
    %p115 = scmp.eq.s32.totalorder %s10, 0
    %p116 = por %p114, %p115
    %p117 = scmp.ne.s32.totalorder %s109, %s111
    %p118 = scmp.eq.s32.totalorder %s15, 1
    %p119 = por %p117, %p118
    %p120 = scmp.ne.s32.totalorder %s111, %s112
    %p121 = scmp.eq.s32.totalorder %s15, 0
    %p122 = por %p120, %p121
    %p123 = scmp.ne.s32.totalorder %s111, %s112
    %p124 = scmp.eq.s32.totalorder %s16, 1
    %p125 = por %p123, %p124
    %p127 = scmp.ne.s32.totalorder %s112, %s126
    %p128 = scmp.eq.s32.totalorder %s16, 0
    %p129 = por %p127, %p128
    %s130 = ssub.s32 %s17, %s29
    %s131 = ssub.s32 %s18, %s25
    %s132 = sor.u32 %s130, %s131
    %p133 = scmp.eq.s32.totalorder %s132, 0
    %s135 = sadd.s32 %s134, 1
    %s136 = scalar_select %p133, %s134, %s135
    %p139 = pneg %p133
    %p140 = scmp.eq.s32.totalorder %s10, 1
    %p141 = por %p139, %p140
    %p142 = scmp.ne.s32.totalorder %s134, %s137
    %p143 = scmp.eq.s32.totalorder %s10, 0
    %p144 = por %p142, %p143
    %p145 = scmp.ne.s32.totalorder %s134, %s137
    %p146 = scmp.eq.s32.totalorder %s15, 1
    %p147 = por %p145, %p146
    %p148 = scmp.ne.s32.totalorder %s137, %s138
    %p149 = scmp.eq.s32.totalorder %s15, 0
    %p150 = por %p148, %p149
    %p151 = scmp.ne.s32.totalorder %s137, %s138
    %p152 = scmp.eq.s32.totalorder %s16, 1
    %p153 = por %p151, %p152
    %p155 = scmp.ne.s32.totalorder %s138, %s154
    %p156 = scmp.eq.s32.totalorder %s16, 0
    %p157 = por %p155, %p156
    %p158 = scmp.le.s32.totalorder 1, %s10
    %p159 = scmp.lt.s32.totalorder %s10, 3
    %p160 = pnand %p158, %p159
    %p161 = pneg %p160
    // Predicated region
    $region9: #{_lambda_.16} parent=5 // pred_check
      _
    $region10: #{_lambda_.16} parent=5 // pred_check_branch
      %163 = sbr.rel (%p160) target = $region12
    $region11: #{_lambda_.16} parent=5 // pred_region
      %s164 = ssub.s32 %s10, 1
      // Predicated region
      $region13: #{_lambda_.16} parent=11 // pred_check
        %p165 = pneg %p101
      $region14: #{_lambda_.16} parent=11 // pred_check_branch
        %167 = sbr.rel (%p165) target = $region16
      $region15: #{_lambda_.16} parent=11 // pred_region
        _
      $region16: #{_lambda_.16} parent=11 // pred_fallthru
        _
      // Predicated region
      $region17: #{_lambda_.16} parent=11 // pred_check
        %p168 = pneg %p122
      $region18: #{_lambda_.16} parent=11 // pred_check_branch
        %170 = sbr.rel (%p168) target = $region20
      $region19: #{_lambda_.16} parent=11 // pred_region
        _
      $region20: #{_lambda_.16} parent=11 // pred_fallthru
        _
    $region12: #{_lambda_.16} parent=5 // pred_fallthru
      _
    %p171 = scmp.lt.s32.totalorder %s10, 2
    // Predicated region
    $region21: #{_lambda_.16} parent=5 // pred_check
      %p172 = pneg %p171
    $region22: #{_lambda_.16} parent=5 // pred_check_branch
      %174 = sbr.rel (%p172) target = $region24
    $region23: #{_lambda_.16} parent=5 // pred_region
      // Predicated region
      $region25: #{_lambda_.16} parent=23 // pred_check
        %p175 = pneg %p44
      $region26: #{_lambda_.16} parent=23 // pred_check_branch
        %177 = sbr.rel (%p175) target = $region28
      $region27: #{_lambda_.16} parent=23 // pred_region
        %s178 = smul.u32 16, %s18
        %p179 = scmp.lt.s32.totalorder %s17, 1
        %s180 = scalar_select %p179, %s17, 1
        %p181 = scmp.lt.s32.totalorder %s178, 31
        %s182 = scalar_select %p181, %s178, 31
        %s183 = smul.addr %s182, 3
        %s184 = smul.addr %s180, 96
        %s185 = sadd.s32 %s183, %s184
        %s186 = smul.addr %s185, 8
        %s187 = scalar_lea.vmem %s0, %s186
        %s188 = smul.u32 16, %s18
      $region28: #{_lambda_.16} parent=23 // pred_fallthru
        _
      // Predicated region
      $region29: #{_lambda_.16} parent=23 // pred_check
        %p189 = pneg %p74
      $region30: #{_lambda_.16} parent=23 // pred_check_branch
        %191 = sbr.rel (%p189) target = $region32
      $region31: #{_lambda_.16} parent=23 // pred_region
        %s192 = sadd.s32 %s18, 1
        %s193 = smul.u32 16, %s192
        %p194 = scmp.lt.s32.totalorder %s17, 1
        %s195 = scalar_select %p194, %s17, 1
        %p196 = scmp.lt.s32.totalorder %s193, 31
        %s197 = scalar_select %p196, %s193, 31
        %s198 = smul.addr %s197, 3
        %s199 = smul.addr %s195, 96
        %s200 = sadd.s32 %s198, %s199
        %s201 = smul.addr %s200, 8
        %s202 = scalar_lea.vmem %s1, %s201
        %s203 = sadd.s32 %s18, 1
        %s204 = smul.u32 16, %s203
      $region32: #{_lambda_.16} parent=23 // pred_fallthru
        _
    $region24: #{_lambda_.16} parent=5 // pred_fallthru
      _
    %p205 = scmp.le.s32.totalorder 1, %s10
    %p206 = scmp.lt.s32.totalorder %s10, 3
    %p207 = pnand %p205, %p206
    %p208 = pneg %p207
    // Predicated region
    $region33: #{_lambda_.16} parent=5 // pred_check
      _
    $region34: #{_lambda_.16} parent=5 // pred_check_branch
      %210 = sbr.rel (%p207) target = $region36
    $region35: #{_lambda_.16} parent=5 // pred_region
      %s211 = ssub.s32 %s10, 1
      %s212 = smul.u32 16, %s20
      %p213 = scmp.lt.s32.totalorder %s19, 1
      %s214 = scalar_select %p213, %s19, 1
      %p215 = scmp.lt.s32.totalorder %s212, 31
      %s216 = scalar_select %p215, %s212, 31
      %s217 = smul.addr %s216, 3
      %s218 = smul.addr %s214, 96
      %s219 = sadd.s32 %s217, %s218
      %s220 = smul.addr %s219, 8
      %s221 = scalar_lea.vmem %s0, %s220
      %p222 = pneg %p50
      %p223 = pneg %p47
      %s224 = sadd.s32 %s20, 1
      %s225 = smul.u32 16, %s224
      %p226 = scmp.lt.s32.totalorder %s19, 1
      %s227 = scalar_select %p226, %s19, 1
      %p228 = scmp.lt.s32.totalorder %s225, 31
      %s229 = scalar_select %p228, %s225, 31
      %s230 = smul.addr %s229, 3
      %s231 = smul.addr %s227, 96
      %s232 = sadd.s32 %s230, %s231
      %s233 = smul.addr %s232, 8
      %s234 = scalar_lea.vmem %s1, %s233
      %p235 = pneg %p80
      %p236 = pneg %p77
      %p237 = pneg %p101
      %p238 = pneg %p98
      %p239 = pneg %p122
      %p240 = pneg %p119
      %p241 = pneg %p150
      %p242 = pneg %p147
      %s243 = smul.u32 16, %s20
      %p244 = scmp.lt.s32.totalorder %s19, 1
      %s245 = scalar_select %p244, %s19, 1
      %p246 = scmp.lt.s32.totalorder %s243, 15
      %s247 = scalar_select %p246, %s243, 15
      %s248 = smul.addr %s247, 2
      %s249 = smul.addr %s245, 32
      %s250 = sadd.s32 %s248, %s249
      %s251 = smul.addr %s250, 8
      %s252 = scalar_lea.vmem %s4, %s251
      %s253 = smul.u32 16, %s20
      %p254 = scmp.lt.s32.totalorder %s19, 1
      %s255 = scalar_select %p254, %s19, 1
      %p256 = scmp.lt.s32.totalorder %s253, 31
      %s257 = scalar_select %p256, %s253, 31
      %s258 = smul.addr %s257, 3
      %s259 = smul.addr %s255, 96
      %s260 = sadd.s32 %s258, %s259
      %s261 = smul.addr %s260, 8
      %s262 = scalar_lea.vmem %s0, %s261
      %s263 = smul.u32 16, %s20
      %s264 = sadd.s32 %s20, 1
      %s265 = smul.u32 16, %s264
      %p266 = scmp.lt.s32.totalorder %s19, 1
      %s267 = scalar_select %p266, %s19, 1
      %p268 = scmp.lt.s32.totalorder %s265, 31
      %s269 = scalar_select %p268, %s265, 31
      %s270 = smul.addr %s269, 3
      %s271 = smul.addr %s267, 96
      %s272 = sadd.s32 %s270, %s271
      %s273 = smul.addr %s272, 8
      %s274 = scalar_lea.vmem %s1, %s273
      %s275 = sadd.s32 %s20, 1
      %s276 = smul.u32 16, %s275
      %s277 = smul.u32 16, %s20
      %p278 = scmp.lt.s32.totalorder %s19, 1
      %s279 = scalar_select %p278, %s19, 1
      %p280 = scmp.lt.s32.totalorder %s277, 15
      %s281 = scalar_select %p280, %s277, 15
      %s282 = smul.addr %s281, 2
      %s283 = smul.addr %s279, 32
      %s284 = sadd.s32 %s282, %s283
      %s285 = smul.addr %s284, 8
      %s286 = scalar_lea.vmem %s4, %s285
      %s287 = smul.u32 16, %s20
      %v288 = vld [vmem:[%s262] sm:$0xff]
      %v289 = vld [vmem:[%s262 + $0x8] sm:$0xff]
      %v290 = vld [vmem:[%s262 + $0x10] sm:$0x3]
      %v291 = vld [vmem:[%s262 + $0x18] sm:$0xff]
      %v292 = vld [vmem:[%s262 + $0x20] sm:$0xff]
      %v293 = vld [vmem:[%s262 + $0x28] sm:$0x3]
      %v294 = vld [vmem:[%s262 + $0x30] sm:$0xff]
      %v295 = vld [vmem:[%s262 + $0x38] sm:$0xff]
      %v296 = vld [vmem:[%s262 + $0x40] sm:$0x3]
      %v297 = vld [vmem:[%s262 + $0x48] sm:$0xff]
      %v298 = vld [vmem:[%s262 + $0x50] sm:$0xff]
      %v299 = vld [vmem:[%s262 + $0x58] sm:$0x3]
      %v300 = vld [vmem:[%s262 + $0x60] sm:$0xff]
      %v301 = vld [vmem:[%s262 + $0x68] sm:$0xff]
      %v302 = vld [vmem:[%s262 + $0x70] sm:$0x3]
      %v303 = vld [vmem:[%s262 + $0x78] sm:$0xff]
      %v304 = vld [vmem:[%s262 + $0x80] sm:$0xff]
      %v305 = vld [vmem:[%s262 + $0x88] sm:$0x3]
      %v306 = vld [vmem:[%s262 + $0x90] sm:$0xff]
      %v307 = vld [vmem:[%s262 + $0x98] sm:$0xff]
      %v308 = vld [vmem:[%s262 + $0xa0] sm:$0x3]
      %v309 = vld [vmem:[%s262 + $0xa8] sm:$0xff]
      %v310 = vld [vmem:[%s262 + $0xb0] sm:$0xff]
      %v311 = vld [vmem:[%s262 + $0xb8] sm:$0x3]
      %v312 = vld [vmem:[%s262 + $0xc0] sm:$0xff]
      %v313 = vld [vmem:[%s262 + $0xc8] sm:$0xff]
      %v314 = vld [vmem:[%s262 + $0xd0] sm:$0x3]
      %v315 = vld [vmem:[%s262 + $0xd8] sm:$0xff]
      %v316 = vld [vmem:[%s262 + $0xe0] sm:$0xff]
      %v317 = vld [vmem:[%s262 + $0xe8] sm:$0x3]
      %v318 = vld [vmem:[%s262 + $0xf0] sm:$0xff]
      %v319 = vld [vmem:[%s262 + $0xf8] sm:$0xff]
      %v320 = vld [vmem:[%s262 + $0x100] sm:$0x3]
      %v321 = vld [vmem:[%s262 + $0x108] sm:$0xff]
      %v322 = vld [vmem:[%s262 + $0x110] sm:$0xff]
      %v323 = vld [vmem:[%s262 + $0x118] sm:$0x3]
      %v324 = vld [vmem:[%s262 + $0x120] sm:$0xff]
      %v325 = vld [vmem:[%s262 + $0x128] sm:$0xff]
      %v326 = vld [vmem:[%s262 + $0x130] sm:$0x3]
      %v327 = vld [vmem:[%s262 + $0x138] sm:$0xff]
      %v328 = vld [vmem:[%s262 + $0x140] sm:$0xff]
      %v329 = vld [vmem:[%s262 + $0x148] sm:$0x3]
      %v330 = vld [vmem:[%s262 + $0x150] sm:$0xff]
      %v331 = vld [vmem:[%s262 + $0x158] sm:$0xff]
      %v332 = vld [vmem:[%s262 + $0x160] sm:$0x3]
      %v333 = vld [vmem:[%s262 + $0x168] sm:$0xff]
      %v334 = vld [vmem:[%s262 + $0x170] sm:$0xff]
      %v335 = vld [vmem:[%s262 + $0x178] sm:$0x3]
      %v336 = vld [vmem:[%s274] sm:$0xff]
      %v337 = vld [vmem:[%s274 + $0x8] sm:$0xff]
      %v338 = vld [vmem:[%s274 + $0x10] sm:$0x3]
      %v339 = vld [vmem:[%s274 + $0x18] sm:$0xff]
      %v340 = vld [vmem:[%s274 + $0x20] sm:$0xff]
      %v341 = vld [vmem:[%s274 + $0x28] sm:$0x3]
      %342 = vst [vmem:[#allocation2] sm:$0xff] %v288
      %343 = vst [vmem:[#allocation2 + $0x48] sm:$0xff] %v289
      %344 = vst [vmem:[#allocation2 + $0x90] sm:$0xff] %v291
      %345 = vst [vmem:[#allocation2 + $0xd8] sm:$0xff] %v292
      %346 = vst [vmem:[#allocation2 + $0x120] sm:$0xff] %v294
      %347 = vst [vmem:[#allocation2 + $0x168] sm:$0xff] %v295
      %348 = vst [vmem:[#allocation2 + $0x1b0] sm:$0xff] %v297
      %349 = vst [vmem:[#allocation2 + $0x1f8] sm:$0xff] %v298
      %350 = vst [vmem:[#allocation2 + $0x240] sm:$0xff] %v300
      %351 = vst [vmem:[#allocation2 + $0x288] sm:$0xff] %v301
      %352 = vst [vmem:[#allocation2 + $0x2d0] sm:$0xff] %v303
      %353 = vst [vmem:[#allocation2 + $0x318] sm:$0xff] %v304
      %354 = vst [vmem:[#allocation2 + $0x360] sm:$0xff] %v306
      %355 = vst [vmem:[#allocation2 + $0x3a8] sm:$0xff] %v307
      %356 = vst [vmem:[#allocation2 + $0x3f0] sm:$0xff] %v309
      %357 = vst [vmem:[#allocation2 + $0x438] sm:$0xff] %v310
      %358 = vst [vmem:[#allocation2 + $0x480] sm:$0xff] %v312
      %359 = vst [vmem:[#allocation2 + $0x4c8] sm:$0xff] %v313
      %360 = vst [vmem:[#allocation2 + $0x510] sm:$0xff] %v315
      %361 = vst [vmem:[#allocation2 + $0x558] sm:$0xff] %v316
      %362 = vst [vmem:[#allocation2 + $0x5a0] sm:$0xff] %v318
      %363 = vst [vmem:[#allocation2 + $0x5e8] sm:$0xff] %v319
      %364 = vst [vmem:[#allocation2 + $0x630] sm:$0xff] %v321
      %365 = vst [vmem:[#allocation2 + $0x678] sm:$0xff] %v322
      %366 = vst [vmem:[#allocation2 + $0x6c0] sm:$0xff] %v324
      %367 = vst [vmem:[#allocation2 + $0x708] sm:$0xff] %v325
      %368 = vst [vmem:[#allocation2 + $0x750] sm:$0xff] %v327
      %369 = vst [vmem:[#allocation2 + $0x798] sm:$0xff] %v328
      %370 = vst [vmem:[#allocation2 + $0x7e0] sm:$0xff] %v330
      %371 = vst [vmem:[#allocation2 + $0x828] sm:$0xff] %v331
      %372 = vst [vmem:[#allocation2 + $0x870] sm:$0xff] %v333
      %373 = vst [vmem:[#allocation2 + $0x8b8] sm:$0xff] %v334
      %vm422 = vcmask 1046528
      %v423 = vrot.slane %v288, 1
      %v424 = vrot.slane %v289, 1
      %v425 = vsel %vm422, %v423, %v424
      %v426 = vrot.slane %v290, 1
      %v427 = vsel %vm422, %v424, %v426
      %v428 = vrot.slane %v291, 1
      %v429 = vrot.slane %v292, 1
      %v430 = vsel %vm422, %v428, %v429
      %v431 = vrot.slane %v293, 1
      %v432 = vsel %vm422, %v429, %v431
      %v433 = vrot.slane %v294, 1
      %v434 = vrot.slane %v295, 1
      %v435 = vsel %vm422, %v433, %v434
      %v436 = vrot.slane %v296, 1
      %v437 = vsel %vm422, %v434, %v436
      %v438 = vrot.slane %v297, 1
      %v439 = vrot.slane %v298, 1
      %v440 = vsel %vm422, %v438, %v439
      %v441 = vrot.slane %v299, 1
      %v442 = vsel %vm422, %v439, %v441
      %v443 = vrot.slane %v300, 1
      %v444 = vrot.slane %v301, 1
      %v445 = vsel %vm422, %v443, %v444
      %v446 = vrot.slane %v302, 1
      %v447 = vsel %vm422, %v444, %v446
      %v448 = vrot.slane %v303, 1
      %v449 = vrot.slane %v304, 1
      %v450 = vsel %vm422, %v448, %v449
      %v451 = vrot.slane %v305, 1
      %v452 = vsel %vm422, %v449, %v451
      %v453 = vrot.slane %v306, 1
      %v454 = vrot.slane %v307, 1
      %v455 = vsel %vm422, %v453, %v454
      %v456 = vrot.slane %v308, 1
      %v457 = vsel %vm422, %v454, %v456
      %v458 = vrot.slane %v309, 1
      %v459 = vrot.slane %v310, 1
      %v460 = vsel %vm422, %v458, %v459
      %v461 = vrot.slane %v311, 1
      %v462 = vsel %vm422, %v459, %v461
      %v463 = vrot.slane %v312, 1
      %v464 = vrot.slane %v313, 1
      %v465 = vsel %vm422, %v463, %v464
      %v466 = vrot.slane %v314, 1
      %v467 = vsel %vm422, %v464, %v466
      %v468 = vrot.slane %v315, 1
      %v469 = vrot.slane %v316, 1
      %v470 = vsel %vm422, %v468, %v469
      %v471 = vrot.slane %v317, 1
      %v472 = vsel %vm422, %v469, %v471
      %v473 = vrot.slane %v318, 1
      %v474 = vrot.slane %v319, 1
      %v475 = vsel %vm422, %v473, %v474
      %v476 = vrot.slane %v320, 1
      %v477 = vsel %vm422, %v474, %v476
      %v478 = vrot.slane %v321, 1
      %v479 = vrot.slane %v322, 1
      %v480 = vsel %vm422, %v478, %v479
      %v481 = vrot.slane %v323, 1
      %v482 = vsel %vm422, %v479, %v481
      %v483 = vrot.slane %v324, 1
      %v484 = vrot.slane %v325, 1
      %v485 = vsel %vm422, %v483, %v484
      %v486 = vrot.slane %v326, 1
      %v487 = vsel %vm422, %v484, %v486
      %v488 = vrot.slane %v327, 1
      %v489 = vrot.slane %v328, 1
      %v490 = vsel %vm422, %v488, %v489
      %v491 = vrot.slane %v329, 1
      %v492 = vsel %vm422, %v489, %v491
      %v493 = vrot.slane %v330, 1
      %v494 = vrot.slane %v331, 1
      %v495 = vsel %vm422, %v493, %v494
      %v496 = vrot.slane %v332, 1
      %v497 = vsel %vm422, %v494, %v496
      %v498 = vrot.slane %v333, 1
      %v499 = vrot.slane %v334, 1
      %v500 = vsel %vm422, %v498, %v499
      %v501 = vrot.slane %v335, 1
      %v502 = vsel %vm422, %v499, %v501
      %535 = vst [vmem:[#allocation2 + $0x8] sm:$0xff] %v425
      %536 = vst [vmem:[#allocation2 + $0x50] sm:$0xff] %v427
      %537 = vst [vmem:[#allocation2 + $0x98] sm:$0xff] %v430
      %538 = vst [vmem:[#allocation2 + $0xe0] sm:$0xff] %v432
      %539 = vst [vmem:[#allocation2 + $0x128] sm:$0xff] %v435
      %540 = vst [vmem:[#allocation2 + $0x170] sm:$0xff] %v437
      %541 = vst [vmem:[#allocation2 + $0x1b8] sm:$0xff] %v440
      %542 = vst [vmem:[#allocation2 + $0x200] sm:$0xff] %v442
      %543 = vst [vmem:[#allocation2 + $0x248] sm:$0xff] %v445
      %544 = vst [vmem:[#allocation2 + $0x290] sm:$0xff] %v447
      %545 = vst [vmem:[#allocation2 + $0x2d8] sm:$0xff] %v450
      %546 = vst [vmem:[#allocation2 + $0x320] sm:$0xff] %v452
      %547 = vst [vmem:[#allocation2 + $0x368] sm:$0xff] %v455
      %548 = vst [vmem:[#allocation2 + $0x3b0] sm:$0xff] %v457
      %549 = vst [vmem:[#allocation2 + $0x3f8] sm:$0xff] %v460
      %550 = vst [vmem:[#allocation2 + $0x440] sm:$0xff] %v462
      %551 = vst [vmem:[#allocation2 + $0x488] sm:$0xff] %v465
      %552 = vst [vmem:[#allocation2 + $0x4d0] sm:$0xff] %v467
      %553 = vst [vmem:[#allocation2 + $0x518] sm:$0xff] %v470
      %554 = vst [vmem:[#allocation2 + $0x560] sm:$0xff] %v472
      %555 = vst [vmem:[#allocation2 + $0x5a8] sm:$0xff] %v475
      %556 = vst [vmem:[#allocation2 + $0x5f0] sm:$0xff] %v477
      %557 = vst [vmem:[#allocation2 + $0x638] sm:$0xff] %v480
      %558 = vst [vmem:[#allocation2 + $0x680] sm:$0xff] %v482
      %559 = vst [vmem:[#allocation2 + $0x6c8] sm:$0xff] %v485
      %560 = vst [vmem:[#allocation2 + $0x710] sm:$0xff] %v487
      %561 = vst [vmem:[#allocation2 + $0x758] sm:$0xff] %v490
      %562 = vst [vmem:[#allocation2 + $0x7a0] sm:$0xff] %v492
      %563 = vst [vmem:[#allocation2 + $0x7e8] sm:$0xff] %v495
      %564 = vst [vmem:[#allocation2 + $0x830] sm:$0xff] %v497
      %565 = vst [vmem:[#allocation2 + $0x878] sm:$0xff] %v500
      %566 = vst [vmem:[#allocation2 + $0x8c0] sm:$0xff] %v502
      %vm567 = vcmask 1045504
      %v568 = vrot.slane %v288, 2
      %v569 = vrot.slane %v289, 2
      %v570 = vsel %vm567, %v568, %v569
      %v571 = vrot.slane %v290, 2
      %v572 = vsel %vm567, %v569, %v571
      %v573 = vrot.slane %v291, 2
      %v574 = vrot.slane %v292, 2
      %v575 = vsel %vm567, %v573, %v574
      %v576 = vrot.slane %v293, 2
      %v577 = vsel %vm567, %v574, %v576
      %v578 = vrot.slane %v294, 2
      %v579 = vrot.slane %v295, 2
      %v580 = vsel %vm567, %v578, %v579
      %v581 = vrot.slane %v296, 2
      %v582 = vsel %vm567, %v579, %v581
      %v583 = vrot.slane %v297, 2
      %v584 = vrot.slane %v298, 2
      %v585 = vsel %vm567, %v583, %v584
      %v586 = vrot.slane %v299, 2
      %v587 = vsel %vm567, %v584, %v586
      %v588 = vrot.slane %v300, 2
      %v589 = vrot.slane %v301, 2
      %v590 = vsel %vm567, %v588, %v589
      %v591 = vrot.slane %v302, 2
      %v592 = vsel %vm567, %v589, %v591
      %v593 = vrot.slane %v303, 2
      %v594 = vrot.slane %v304, 2
      %v595 = vsel %vm567, %v593, %v594
      %v596 = vrot.slane %v305, 2
      %v597 = vsel %vm567, %v594, %v596
      %v598 = vrot.slane %v306, 2
      %v599 = vrot.slane %v307, 2
      %v600 = vsel %vm567, %v598, %v599
      %v601 = vrot.slane %v308, 2
      %v602 = vsel %vm567, %v599, %v601
      %v603 = vrot.slane %v309, 2
      %v604 = vrot.slane %v310, 2
      %v605 = vsel %vm567, %v603, %v604
      %v606 = vrot.slane %v311, 2
      %v607 = vsel %vm567, %v604, %v606
      %v608 = vrot.slane %v312, 2
      %v609 = vrot.slane %v313, 2
      %v610 = vsel %vm567, %v608, %v609
      %v611 = vrot.slane %v314, 2
      %v612 = vsel %vm567, %v609, %v611
      %v613 = vrot.slane %v315, 2
      %v614 = vrot.slane %v316, 2
      %v615 = vsel %vm567, %v613, %v614
      %v616 = vrot.slane %v317, 2
      %v617 = vsel %vm567, %v614, %v616
      %v618 = vrot.slane %v318, 2
      %v619 = vrot.slane %v319, 2
      %v620 = vsel %vm567, %v618, %v619
      %v621 = vrot.slane %v320, 2
      %v622 = vsel %vm567, %v619, %v621
      %v623 = vrot.slane %v321, 2
      %v624 = vrot.slane %v322, 2
      %v625 = vsel %vm567, %v623, %v624
      %v626 = vrot.slane %v323, 2
      %v627 = vsel %vm567, %v624, %v626
      %v628 = vrot.slane %v324, 2
      %v629 = vrot.slane %v325, 2
      %v630 = vsel %vm567, %v628, %v629
      %v631 = vrot.slane %v326, 2
      %v632 = vsel %vm567, %v629, %v631
      %v633 = vrot.slane %v327, 2
      %v634 = vrot.slane %v328, 2
      %v635 = vsel %vm567, %v633, %v634
      %v636 = vrot.slane %v329, 2
      %v637 = vsel %vm567, %v634, %v636
      %v638 = vrot.slane %v330, 2
      %v639 = vrot.slane %v331, 2
      %v640 = vsel %vm567, %v638, %v639
      %v641 = vrot.slane %v332, 2
      %v642 = vsel %vm567, %v639, %v641
      %v643 = vrot.slane %v333, 2
      %v644 = vrot.slane %v334, 2
      %v645 = vsel %vm567, %v643, %v644
      %v646 = vrot.slane %v335, 2
      %v647 = vsel %vm567, %v644, %v646
      %680 = vst [vmem:[#allocation2 + $0x10] sm:$0xff] %v570
      %681 = vst [vmem:[#allocation2 + $0x58] sm:$0xff] %v572
      %682 = vst [vmem:[#allocation2 + $0xa0] sm:$0xff] %v575
      %683 = vst [vmem:[#allocation2 + $0xe8] sm:$0xff] %v577
      %684 = vst [vmem:[#allocation2 + $0x130] sm:$0xff] %v580
      %685 = vst [vmem:[#allocation2 + $0x178] sm:$0xff] %v582
      %686 = vst [vmem:[#allocation2 + $0x1c0] sm:$0xff] %v585
      %687 = vst [vmem:[#allocation2 + $0x208] sm:$0xff] %v587
      %688 = vst [vmem:[#allocation2 + $0x250] sm:$0xff] %v590
      %689 = vst [vmem:[#allocation2 + $0x298] sm:$0xff] %v592
      %690 = vst [vmem:[#allocation2 + $0x2e0] sm:$0xff] %v595
      %691 = vst [vmem:[#allocation2 + $0x328] sm:$0xff] %v597
      %692 = vst [vmem:[#allocation2 + $0x370] sm:$0xff] %v600
      %693 = vst [vmem:[#allocation2 + $0x3b8] sm:$0xff] %v602
      %694 = vst [vmem:[#allocation2 + $0x400] sm:$0xff] %v605
      %695 = vst [vmem:[#allocation2 + $0x448] sm:$0xff] %v607
      %696 = vst [vmem:[#allocation2 + $0x490] sm:$0xff] %v610
      %697 = vst [vmem:[#allocation2 + $0x4d8] sm:$0xff] %v612
      %698 = vst [vmem:[#allocation2 + $0x520] sm:$0xff] %v615
      %699 = vst [vmem:[#allocation2 + $0x568] sm:$0xff] %v617
      %700 = vst [vmem:[#allocation2 + $0x5b0] sm:$0xff] %v620
      %701 = vst [vmem:[#allocation2 + $0x5f8] sm:$0xff] %v622
      %702 = vst [vmem:[#allocation2 + $0x640] sm:$0xff] %v625
      %703 = vst [vmem:[#allocation2 + $0x688] sm:$0xff] %v627
      %704 = vst [vmem:[#allocation2 + $0x6d0] sm:$0xff] %v630
      %705 = vst [vmem:[#allocation2 + $0x718] sm:$0xff] %v632
      %706 = vst [vmem:[#allocation2 + $0x760] sm:$0xff] %v635
      %707 = vst [vmem:[#allocation2 + $0x7a8] sm:$0xff] %v637
      %708 = vst [vmem:[#allocation2 + $0x7f0] sm:$0xff] %v640
      %709 = vst [vmem:[#allocation2 + $0x838] sm:$0xff] %v642
      %710 = vst [vmem:[#allocation2 + $0x880] sm:$0xff] %v645
      %711 = vst [vmem:[#allocation2 + $0x8c8] sm:$0xff] %v647
      %712 = vst [vmem:[#allocation2 + $0x18] sm:$0xff] %v291
      %713 = vst [vmem:[#allocation2 + $0x60] sm:$0xff] %v292
      %714 = vst [vmem:[#allocation2 + $0xa8] sm:$0xff] %v294
      %715 = vst [vmem:[#allocation2 + $0xf0] sm:$0xff] %v295
      %716 = vst [vmem:[#allocation2 + $0x138] sm:$0xff] %v297
      %717 = vst [vmem:[#allocation2 + $0x180] sm:$0xff] %v298
      %718 = vst [vmem:[#allocation2 + $0x1c8] sm:$0xff] %v300
      %719 = vst [vmem:[#allocation2 + $0x210] sm:$0xff] %v301
      %720 = vst [vmem:[#allocation2 + $0x258] sm:$0xff] %v303
      %721 = vst [vmem:[#allocation2 + $0x2a0] sm:$0xff] %v304
      %722 = vst [vmem:[#allocation2 + $0x2e8] sm:$0xff] %v306
      %723 = vst [vmem:[#allocation2 + $0x330] sm:$0xff] %v307
      %724 = vst [vmem:[#allocation2 + $0x378] sm:$0xff] %v309
      %725 = vst [vmem:[#allocation2 + $0x3c0] sm:$0xff] %v310
      %726 = vst [vmem:[#allocation2 + $0x408] sm:$0xff] %v312
      %727 = vst [vmem:[#allocation2 + $0x450] sm:$0xff] %v313
      %728 = vst [vmem:[#allocation2 + $0x498] sm:$0xff] %v315
      %729 = vst [vmem:[#allocation2 + $0x4e0] sm:$0xff] %v316
      %730 = vst [vmem:[#allocation2 + $0x528] sm:$0xff] %v318
      %731 = vst [vmem:[#allocation2 + $0x570] sm:$0xff] %v319
      %732 = vst [vmem:[#allocation2 + $0x5b8] sm:$0xff] %v321
      %733 = vst [vmem:[#allocation2 + $0x600] sm:$0xff] %v322
      %734 = vst [vmem:[#allocation2 + $0x648] sm:$0xff] %v324
      %735 = vst [vmem:[#allocation2 + $0x690] sm:$0xff] %v325
      %736 = vst [vmem:[#allocation2 + $0x6d8] sm:$0xff] %v327
      %737 = vst [vmem:[#allocation2 + $0x720] sm:$0xff] %v328
      %738 = vst [vmem:[#allocation2 + $0x768] sm:$0xff] %v330
      %739 = vst [vmem:[#allocation2 + $0x7b0] sm:$0xff] %v331
      %740 = vst [vmem:[#allocation2 + $0x7f8] sm:$0xff] %v333
      %741 = vst [vmem:[#allocation2 + $0x840] sm:$0xff] %v334
      %742 = vst [vmem:[#allocation2 + $0x888] sm:$0xff] %v336
      %743 = vst [vmem:[#allocation2 + $0x8d0] sm:$0xff] %v337
      %v747 = vrot.slane %v336, 1
      %v748 = vrot.slane %v337, 1
      %v749 = vsel %vm422, %v747, %v748
      %v750 = vrot.slane %v338, 1
      %v751 = vsel %vm422, %v748, %v750
      %754 = vst [vmem:[#allocation2 + $0x20] sm:$0xff] %v430
      %755 = vst [vmem:[#allocation2 + $0x68] sm:$0xff] %v432
      %756 = vst [vmem:[#allocation2 + $0xb0] sm:$0xff] %v435
      %757 = vst [vmem:[#allocation2 + $0xf8] sm:$0xff] %v437
      %758 = vst [vmem:[#allocation2 + $0x140] sm:$0xff] %v440
      %759 = vst [vmem:[#allocation2 + $0x188] sm:$0xff] %v442
      %760 = vst [vmem:[#allocation2 + $0x1d0] sm:$0xff] %v445
      %761 = vst [vmem:[#allocation2 + $0x218] sm:$0xff] %v447
      %762 = vst [vmem:[#allocation2 + $0x260] sm:$0xff] %v450
      %763 = vst [vmem:[#allocation2 + $0x2a8] sm:$0xff] %v452
      %764 = vst [vmem:[#allocation2 + $0x2f0] sm:$0xff] %v455
      %765 = vst [vmem:[#allocation2 + $0x338] sm:$0xff] %v457
      %766 = vst [vmem:[#allocation2 + $0x380] sm:$0xff] %v460
      %767 = vst [vmem:[#allocation2 + $0x3c8] sm:$0xff] %v462
      %768 = vst [vmem:[#allocation2 + $0x410] sm:$0xff] %v465
      %769 = vst [vmem:[#allocation2 + $0x458] sm:$0xff] %v467
      %770 = vst [vmem:[#allocation2 + $0x4a0] sm:$0xff] %v470
      %771 = vst [vmem:[#allocation2 + $0x4e8] sm:$0xff] %v472
      %772 = vst [vmem:[#allocation2 + $0x530] sm:$0xff] %v475
      %773 = vst [vmem:[#allocation2 + $0x578] sm:$0xff] %v477
      %774 = vst [vmem:[#allocation2 + $0x5c0] sm:$0xff] %v480
      %775 = vst [vmem:[#allocation2 + $0x608] sm:$0xff] %v482
      %776 = vst [vmem:[#allocation2 + $0x650] sm:$0xff] %v485
      %777 = vst [vmem:[#allocation2 + $0x698] sm:$0xff] %v487
      %778 = vst [vmem:[#allocation2 + $0x6e0] sm:$0xff] %v490
      %779 = vst [vmem:[#allocation2 + $0x728] sm:$0xff] %v492
      %780 = vst [vmem:[#allocation2 + $0x770] sm:$0xff] %v495
      %781 = vst [vmem:[#allocation2 + $0x7b8] sm:$0xff] %v497
      %782 = vst [vmem:[#allocation2 + $0x800] sm:$0xff] %v500
      %783 = vst [vmem:[#allocation2 + $0x848] sm:$0xff] %v502
      %784 = vst [vmem:[#allocation2 + $0x890] sm:$0xff] %v749
      %785 = vst [vmem:[#allocation2 + $0x8d8] sm:$0xff] %v751
      %v786 = vrot.slane %v336, 2
      %v787 = vrot.slane %v337, 2
      %v788 = vsel %vm567, %v786, %v787
      %v789 = vrot.slane %v338, 2
      %v790 = vsel %vm567, %v787, %v789
      %793 = vst [vmem:[#allocation2 + $0x28] sm:$0xff] %v575
      %794 = vst [vmem:[#allocation2 + $0x70] sm:$0xff] %v577
      %795 = vst [vmem:[#allocation2 + $0xb8] sm:$0xff] %v580
      %796 = vst [vmem:[#allocation2 + $0x100] sm:$0xff] %v582
      %797 = vst [vmem:[#allocation2 + $0x148] sm:$0xff] %v585
      %798 = vst [vmem:[#allocation2 + $0x190] sm:$0xff] %v587
      %799 = vst [vmem:[#allocation2 + $0x1d8] sm:$0xff] %v590
      %800 = vst [vmem:[#allocation2 + $0x220] sm:$0xff] %v592
      %801 = vst [vmem:[#allocation2 + $0x268] sm:$0xff] %v595
      %802 = vst [vmem:[#allocation2 + $0x2b0] sm:$0xff] %v597
      %803 = vst [vmem:[#allocation2 + $0x2f8] sm:$0xff] %v600
      %804 = vst [vmem:[#allocation2 + $0x340] sm:$0xff] %v602
      %805 = vst [vmem:[#allocation2 + $0x388] sm:$0xff] %v605
      %806 = vst [vmem:[#allocation2 + $0x3d0] sm:$0xff] %v607
      %807 = vst [vmem:[#allocation2 + $0x418] sm:$0xff] %v610
      %808 = vst [vmem:[#allocation2 + $0x460] sm:$0xff] %v612
      %809 = vst [vmem:[#allocation2 + $0x4a8] sm:$0xff] %v615
      %810 = vst [vmem:[#allocation2 + $0x4f0] sm:$0xff] %v617
      %811 = vst [vmem:[#allocation2 + $0x538] sm:$0xff] %v620
      %812 = vst [vmem:[#allocation2 + $0x580] sm:$0xff] %v622
      %813 = vst [vmem:[#allocation2 + $0x5c8] sm:$0xff] %v625
      %814 = vst [vmem:[#allocation2 + $0x610] sm:$0xff] %v627
      %815 = vst [vmem:[#allocation2 + $0x658] sm:$0xff] %v630
      %816 = vst [vmem:[#allocation2 + $0x6a0] sm:$0xff] %v632
      %817 = vst [vmem:[#allocation2 + $0x6e8] sm:$0xff] %v635
      %818 = vst [vmem:[#allocation2 + $0x730] sm:$0xff] %v637
      %819 = vst [vmem:[#allocation2 + $0x778] sm:$0xff] %v640
      %820 = vst [vmem:[#allocation2 + $0x7c0] sm:$0xff] %v642
      %821 = vst [vmem:[#allocation2 + $0x808] sm:$0xff] %v645
      %822 = vst [vmem:[#allocation2 + $0x850] sm:$0xff] %v647
      %823 = vst [vmem:[#allocation2 + $0x898] sm:$0xff] %v788
      %824 = vst [vmem:[#allocation2 + $0x8e0] sm:$0xff] %v790
      %825 = vst [vmem:[#allocation2 + $0x30] sm:$0xff] %v294
      %826 = vst [vmem:[#allocation2 + $0x78] sm:$0xff] %v295
      %827 = vst [vmem:[#allocation2 + $0xc0] sm:$0xff] %v297
      %828 = vst [vmem:[#allocation2 + $0x108] sm:$0xff] %v298
      %829 = vst [vmem:[#allocation2 + $0x150] sm:$0xff] %v300
      %830 = vst [vmem:[#allocation2 + $0x198] sm:$0xff] %v301
      %831 = vst [vmem:[#allocation2 + $0x1e0] sm:$0xff] %v303
      %832 = vst [vmem:[#allocation2 + $0x228] sm:$0xff] %v304
      %833 = vst [vmem:[#allocation2 + $0x270] sm:$0xff] %v306
      %834 = vst [vmem:[#allocation2 + $0x2b8] sm:$0xff] %v307
      %835 = vst [vmem:[#allocation2 + $0x300] sm:$0xff] %v309
      %836 = vst [vmem:[#allocation2 + $0x348] sm:$0xff] %v310
      %837 = vst [vmem:[#allocation2 + $0x390] sm:$0xff] %v312
      %838 = vst [vmem:[#allocation2 + $0x3d8] sm:$0xff] %v313
      %839 = vst [vmem:[#allocation2 + $0x420] sm:$0xff] %v315
      %840 = vst [vmem:[#allocation2 + $0x468] sm:$0xff] %v316
      %841 = vst [vmem:[#allocation2 + $0x4b0] sm:$0xff] %v318
      %842 = vst [vmem:[#allocation2 + $0x4f8] sm:$0xff] %v319
      %843 = vst [vmem:[#allocation2 + $0x540] sm:$0xff] %v321
      %844 = vst [vmem:[#allocation2 + $0x588] sm:$0xff] %v322
      %845 = vst [vmem:[#allocation2 + $0x5d0] sm:$0xff] %v324
      %846 = vst [vmem:[#allocation2 + $0x618] sm:$0xff] %v325
      %847 = vst [vmem:[#allocation2 + $0x660] sm:$0xff] %v327
      %848 = vst [vmem:[#allocation2 + $0x6a8] sm:$0xff] %v328
      %849 = vst [vmem:[#allocation2 + $0x6f0] sm:$0xff] %v330
      %850 = vst [vmem:[#allocation2 + $0x738] sm:$0xff] %v331
      %851 = vst [vmem:[#allocation2 + $0x780] sm:$0xff] %v333
      %852 = vst [vmem:[#allocation2 + $0x7c8] sm:$0xff] %v334
      %853 = vst [vmem:[#allocation2 + $0x810] sm:$0xff] %v336
      %854 = vst [vmem:[#allocation2 + $0x858] sm:$0xff] %v337
      %855 = vst [vmem:[#allocation2 + $0x8a0] sm:$0xff] %v339
      %856 = vst [vmem:[#allocation2 + $0x8e8] sm:$0xff] %v340
      %v860 = vrot.slane %v339, 1
      %v861 = vrot.slane %v340, 1
      %v862 = vsel %vm422, %v860, %v861
      %v863 = vrot.slane %v341, 1
      %v864 = vsel %vm422, %v861, %v863
      %867 = vst [vmem:[#allocation2 + $0x38] sm:$0xff] %v435
      %868 = vst [vmem:[#allocation2 + $0x80] sm:$0xff] %v437
      %869 = vst [vmem:[#allocation2 + $0xc8] sm:$0xff] %v440
      %870 = vst [vmem:[#allocation2 + $0x110] sm:$0xff] %v442
      %871 = vst [vmem:[#allocation2 + $0x158] sm:$0xff] %v445
      %872 = vst [vmem:[#allocation2 + $0x1a0] sm:$0xff] %v447
      %873 = vst [vmem:[#allocation2 + $0x1e8] sm:$0xff] %v450
      %874 = vst [vmem:[#allocation2 + $0x230] sm:$0xff] %v452
      %875 = vst [vmem:[#allocation2 + $0x278] sm:$0xff] %v455
      %876 = vst [vmem:[#allocation2 + $0x2c0] sm:$0xff] %v457
      %877 = vst [vmem:[#allocation2 + $0x308] sm:$0xff] %v460
      %878 = vst [vmem:[#allocation2 + $0x350] sm:$0xff] %v462
      %879 = vst [vmem:[#allocation2 + $0x398] sm:$0xff] %v465
      %880 = vst [vmem:[#allocation2 + $0x3e0] sm:$0xff] %v467
      %881 = vst [vmem:[#allocation2 + $0x428] sm:$0xff] %v470
      %882 = vst [vmem:[#allocation2 + $0x470] sm:$0xff] %v472
      %883 = vst [vmem:[#allocation2 + $0x4b8] sm:$0xff] %v475
      %884 = vst [vmem:[#allocation2 + $0x500] sm:$0xff] %v477
      %885 = vst [vmem:[#allocation2 + $0x548] sm:$0xff] %v480
      %886 = vst [vmem:[#allocation2 + $0x590] sm:$0xff] %v482
      %887 = vst [vmem:[#allocation2 + $0x5d8] sm:$0xff] %v485
      %888 = vst [vmem:[#allocation2 + $0x620] sm:$0xff] %v487
      %889 = vst [vmem:[#allocation2 + $0x668] sm:$0xff] %v490
      %890 = vst [vmem:[#allocation2 + $0x6b0] sm:$0xff] %v492
      %891 = vst [vmem:[#allocation2 + $0x6f8] sm:$0xff] %v495
      %892 = vst [vmem:[#allocation2 + $0x740] sm:$0xff] %v497
      %893 = vst [vmem:[#allocation2 + $0x788] sm:$0xff] %v500
      %894 = vst [vmem:[#allocation2 + $0x7d0] sm:$0xff] %v502
      %895 = vst [vmem:[#allocation2 + $0x818] sm:$0xff] %v749
      %896 = vst [vmem:[#allocation2 + $0x860] sm:$0xff] %v751
      %897 = vst [vmem:[#allocation2 + $0x8a8] sm:$0xff] %v862
      %898 = vst [vmem:[#allocation2 + $0x8f0] sm:$0xff] %v864
      %v899 = vrot.slane %v339, 2
      %v900 = vrot.slane %v340, 2
      %v901 = vsel %vm567, %v899, %v900
      %v902 = vrot.slane %v341, 2
      %v903 = vsel %vm567, %v900, %v902
      %906 = vst [vmem:[#allocation2 + $0x40] sm:$0xff] %v580
      %907 = vst [vmem:[#allocation2 + $0x88] sm:$0xff] %v582
      %908 = vst [vmem:[#allocation2 + $0xd0] sm:$0xff] %v585
      %909 = vst [vmem:[#allocation2 + $0x118] sm:$0xff] %v587
      %910 = vst [vmem:[#allocation2 + $0x160] sm:$0xff] %v590
      %911 = vst [vmem:[#allocation2 + $0x1a8] sm:$0xff] %v592
      %912 = vst [vmem:[#allocation2 + $0x1f0] sm:$0xff] %v595
      %913 = vst [vmem:[#allocation2 + $0x238] sm:$0xff] %v597
      %914 = vst [vmem:[#allocation2 + $0x280] sm:$0xff] %v600
      %915 = vst [vmem:[#allocation2 + $0x2c8] sm:$0xff] %v602
      %916 = vst [vmem:[#allocation2 + $0x310] sm:$0xff] %v605
      %917 = vst [vmem:[#allocation2 + $0x358] sm:$0xff] %v607
      %918 = vst [vmem:[#allocation2 + $0x3a0] sm:$0xff] %v610
      %919 = vst [vmem:[#allocation2 + $0x3e8] sm:$0xff] %v612
      %920 = vst [vmem:[#allocation2 + $0x430] sm:$0xff] %v615
      %921 = vst [vmem:[#allocation2 + $0x478] sm:$0xff] %v617
      %922 = vst [vmem:[#allocation2 + $0x4c0] sm:$0xff] %v620
      %923 = vst [vmem:[#allocation2 + $0x508] sm:$0xff] %v622
      %924 = vst [vmem:[#allocation2 + $0x550] sm:$0xff] %v625
      %925 = vst [vmem:[#allocation2 + $0x598] sm:$0xff] %v627
      %926 = vst [vmem:[#allocation2 + $0x5e0] sm:$0xff] %v630
      %927 = vst [vmem:[#allocation2 + $0x628] sm:$0xff] %v632
      %928 = vst [vmem:[#allocation2 + $0x670] sm:$0xff] %v635
      %929 = vst [vmem:[#allocation2 + $0x6b8] sm:$0xff] %v637
      %930 = vst [vmem:[#allocation2 + $0x700] sm:$0xff] %v640
      %931 = vst [vmem:[#allocation2 + $0x748] sm:$0xff] %v642
      %932 = vst [vmem:[#allocation2 + $0x790] sm:$0xff] %v645
      %933 = vst [vmem:[#allocation2 + $0x7d8] sm:$0xff] %v647
      %934 = vst [vmem:[#allocation2 + $0x820] sm:$0xff] %v788
      %935 = vst [vmem:[#allocation2 + $0x868] sm:$0xff] %v790
      %936 = vst [vmem:[#allocation2 + $0x8b0] sm:$0xff] %v901
      %937 = vst [vmem:[#allocation2 + $0x8f8] sm:$0xff] %v903
      %v938 = vld [vmem:[#allocation2] sm:$0xff]
      %v939 = vld [vmem:[#allocation2 + $0x8] sm:$0xff]
      %v940 = vld [vmem:[#allocation2 + $0x10] sm:$0xff]
      %v941 = vld [vmem:[#allocation2 + $0x18] sm:$0xff]
      %v942 = vld [vmem:[#allocation2 + $0x20] sm:$0xff]
      %v943 = vld [vmem:[#allocation2 + $0x28] sm:$0xff]
      %v944 = vld [vmem:[#allocation2 + $0x30] sm:$0xff]
      %v945 = vld [vmem:[#allocation2 + $0x38] sm:$0xff]
      %v946 = vld [vmem:[#allocation2 + $0x40] sm:$0xff]
      %v947 = vld [vmem:[#allocation2 + $0x48] sm:$0xff]
      %v948 = vld [vmem:[#allocation2 + $0x50] sm:$0xff]
      %v949 = vld [vmem:[#allocation2 + $0x58] sm:$0xff]
      %v950 = vld [vmem:[#allocation2 + $0x60] sm:$0xff]
      %v951 = vld [vmem:[#allocation2 + $0x68] sm:$0xff]
      %v952 = vld [vmem:[#allocation2 + $0x70] sm:$0xff]
      %v953 = vld [vmem:[#allocation2 + $0x78] sm:$0xff]
      %v954 = vld [vmem:[#allocation2 + $0x80] sm:$0xff]
      %v955 = vld [vmem:[#allocation2 + $0x88] sm:$0xff]
      %v956 = vld [vmem:[#allocation2 + $0x90] sm:$0xff]
      %v957 = vld [vmem:[#allocation2 + $0x98] sm:$0xff]
      %v958 = vld [vmem:[#allocation2 + $0xa0] sm:$0xff]
      %v959 = vld [vmem:[#allocation2 + $0xa8] sm:$0xff]
      %v960 = vld [vmem:[#allocation2 + $0xb0] sm:$0xff]
      %v961 = vld [vmem:[#allocation2 + $0xb8] sm:$0xff]
      %v962 = vld [vmem:[#allocation2 + $0xc0] sm:$0xff]
      %v963 = vld [vmem:[#allocation2 + $0xc8] sm:$0xff]
      %v964 = vld [vmem:[#allocation2 + $0xd0] sm:$0xff]
      %v965 = vld [vmem:[#allocation2 + $0xd8] sm:$0xff]
      %v966 = vld [vmem:[#allocation2 + $0xe0] sm:$0xff]
      %v967 = vld [vmem:[#allocation2 + $0xe8] sm:$0xff]
      %v968 = vld [vmem:[#allocation2 + $0xf0] sm:$0xff]
      %v969 = vld [vmem:[#allocation2 + $0xf8] sm:$0xff]
      %v970 = vld [vmem:[#allocation2 + $0x100] sm:$0xff]
      %v971 = vld [vmem:[#allocation2 + $0x108] sm:$0xff]
      %v972 = vld [vmem:[#allocation2 + $0x110] sm:$0xff]
      %v973 = vld [vmem:[#allocation2 + $0x118] sm:$0xff]
      %v974 = vld [vmem:[#allocation2 + $0x120] sm:$0xff]
      %v975 = vld [vmem:[#allocation2 + $0x128] sm:$0xff]
      %v976 = vld [vmem:[#allocation2 + $0x130] sm:$0xff]
      %v977 = vld [vmem:[#allocation2 + $0x138] sm:$0xff]
      %v978 = vld [vmem:[#allocation2 + $0x140] sm:$0xff]
      %v979 = vld [vmem:[#allocation2 + $0x148] sm:$0xff]
      %v980 = vld [vmem:[#allocation2 + $0x150] sm:$0xff]
      %v981 = vld [vmem:[#allocation2 + $0x158] sm:$0xff]
      %v982 = vld [vmem:[#allocation2 + $0x160] sm:$0xff]
      %v983 = vld [vmem:[#allocation2 + $0x168] sm:$0xff]
      %v984 = vld [vmem:[#allocation2 + $0x170] sm:$0xff]
      %v985 = vld [vmem:[#allocation2 + $0x178] sm:$0xff]
      %v986 = vld [vmem:[#allocation2 + $0x180] sm:$0xff]
      %v987 = vld [vmem:[#allocation2 + $0x188] sm:$0xff]
      %v988 = vld [vmem:[#allocation2 + $0x190] sm:$0xff]
      %v989 = vld [vmem:[#allocation2 + $0x198] sm:$0xff]
      %v990 = vld [vmem:[#allocation2 + $0x1a0] sm:$0xff]
      %v991 = vld [vmem:[#allocation2 + $0x1a8] sm:$0xff]
      %v992 = vld [vmem:[#allocation2 + $0x1b0] sm:$0xff]
      %v993 = vld [vmem:[#allocation2 + $0x1b8] sm:$0xff]
      %v994 = vld [vmem:[#allocation2 + $0x1c0] sm:$0xff]
      %v995 = vld [vmem:[#allocation2 + $0x1c8] sm:$0xff]
      %v996 = vld [vmem:[#allocation2 + $0x1d0] sm:$0xff]
      %v997 = vld [vmem:[#allocation2 + $0x1d8] sm:$0xff]
      %v998 = vld [vmem:[#allocation2 + $0x1e0] sm:$0xff]
      %v999 = vld [vmem:[#allocation2 + $0x1e8] sm:$0xff]
      %v1000 = vld [vmem:[#allocation2 + $0x1f0] sm:$0xff]
      %v1001 = vld [vmem:[#allocation2 + $0x1f8] sm:$0xff]
      %v1002 = vld [vmem:[#allocation2 + $0x200] sm:$0xff]
      %v1003 = vld [vmem:[#allocation2 + $0x208] sm:$0xff]
      %v1004 = vld [vmem:[#allocation2 + $0x210] sm:$0xff]
      %v1005 = vld [vmem:[#allocation2 + $0x218] sm:$0xff]
      %v1006 = vld [vmem:[#allocation2 + $0x220] sm:$0xff]
      %v1007 = vld [vmem:[#allocation2 + $0x228] sm:$0xff]
      %v1008 = vld [vmem:[#allocation2 + $0x230] sm:$0xff]
      %v1009 = vld [vmem:[#allocation2 + $0x238] sm:$0xff]
      %v1010 = vld [vmem:[#allocation2 + $0x240] sm:$0xff]
      %v1011 = vld [vmem:[#allocation2 + $0x248] sm:$0xff]
      %v1012 = vld [vmem:[#allocation2 + $0x250] sm:$0xff]
      %v1013 = vld [vmem:[#allocation2 + $0x258] sm:$0xff]
      %v1014 = vld [vmem:[#allocation2 + $0x260] sm:$0xff]
      %v1015 = vld [vmem:[#allocation2 + $0x268] sm:$0xff]
      %v1016 = vld [vmem:[#allocation2 + $0x270] sm:$0xff]
      %v1017 = vld [vmem:[#allocation2 + $0x278] sm:$0xff]
      %v1018 = vld [vmem:[#allocation2 + $0x280] sm:$0xff]
      %v1019 = vld [vmem:[#allocation2 + $0x288] sm:$0xff]
      %v1020 = vld [vmem:[#allocation2 + $0x290] sm:$0xff]
      %v1021 = vld [vmem:[#allocation2 + $0x298] sm:$0xff]
      %v1022 = vld [vmem:[#allocation2 + $0x2a0] sm:$0xff]
      %v1023 = vld [vmem:[#allocation2 + $0x2a8] sm:$0xff]
      %v1024 = vld [vmem:[#allocation2 + $0x2b0] sm:$0xff]
      %v1025 = vld [vmem:[#allocation2 + $0x2b8] sm:$0xff]
      %v1026 = vld [vmem:[#allocation2 + $0x2c0] sm:$0xff]
      %v1027 = vld [vmem:[#allocation2 + $0x2c8] sm:$0xff]
      %v1028 = vld [vmem:[#allocation2 + $0x2d0] sm:$0xff]
      %v1029 = vld [vmem:[#allocation2 + $0x2d8] sm:$0xff]
      %v1030 = vld [vmem:[#allocation2 + $0x2e0] sm:$0xff]
      %v1031 = vld [vmem:[#allocation2 + $0x2e8] sm:$0xff]
      %v1032 = vld [vmem:[#allocation2 + $0x2f0] sm:$0xff]
      %v1033 = vld [vmem:[#allocation2 + $0x2f8] sm:$0xff]
      %v1034 = vld [vmem:[#allocation2 + $0x300] sm:$0xff]
      %v1035 = vld [vmem:[#allocation2 + $0x308] sm:$0xff]
      %v1036 = vld [vmem:[#allocation2 + $0x310] sm:$0xff]
      %v1037 = vld [vmem:[#allocation2 + $0x318] sm:$0xff]
      %v1038 = vld [vmem:[#allocation2 + $0x320] sm:$0xff]
      %v1039 = vld [vmem:[#allocation2 + $0x328] sm:$0xff]
      %v1040 = vld [vmem:[#allocation2 + $0x330] sm:$0xff]
      %v1041 = vld [vmem:[#allocation2 + $0x338] sm:$0xff]
      %v1042 = vld [vmem:[#allocation2 + $0x340] sm:$0xff]
      %v1043 = vld [vmem:[#allocation2 + $0x348] sm:$0xff]
      %v1044 = vld [vmem:[#allocation2 + $0x350] sm:$0xff]
      %v1045 = vld [vmem:[#allocation2 + $0x358] sm:$0xff]
      %v1046 = vld [vmem:[#allocation2 + $0x360] sm:$0xff]
      %v1047 = vld [vmem:[#allocation2 + $0x368] sm:$0xff]
      %v1048 = vld [vmem:[#allocation2 + $0x370] sm:$0xff]
      %v1049 = vld [vmem:[#allocation2 + $0x378] sm:$0xff]
      %v1050 = vld [vmem:[#allocation2 + $0x380] sm:$0xff]
      %v1051 = vld [vmem:[#allocation2 + $0x388] sm:$0xff]
      %v1052 = vld [vmem:[#allocation2 + $0x390] sm:$0xff]
      %v1053 = vld [vmem:[#allocation2 + $0x398] sm:$0xff]
      %v1054 = vld [vmem:[#allocation2 + $0x3a0] sm:$0xff]
      %v1055 = vld [vmem:[#allocation2 + $0x3a8] sm:$0xff]
      %v1056 = vld [vmem:[#allocation2 + $0x3b0] sm:$0xff]
      %v1057 = vld [vmem:[#allocation2 + $0x3b8] sm:$0xff]
      %v1058 = vld [vmem:[#allocation2 + $0x3c0] sm:$0xff]
      %v1059 = vld [vmem:[#allocation2 + $0x3c8] sm:$0xff]
      %v1060 = vld [vmem:[#allocation2 + $0x3d0] sm:$0xff]
      %v1061 = vld [vmem:[#allocation2 + $0x3d8] sm:$0xff]
      %v1062 = vld [vmem:[#allocation2 + $0x3e0] sm:$0xff]
      %v1063 = vld [vmem:[#allocation2 + $0x3e8] sm:$0xff]
      %v1064 = vld [vmem:[#allocation2 + $0x3f0] sm:$0xff]
      %v1065 = vld [vmem:[#allocation2 + $0x3f8] sm:$0xff]
      %v1066 = vld [vmem:[#allocation2 + $0x400] sm:$0xff]
      %v1067 = vld [vmem:[#allocation2 + $0x408] sm:$0xff]
      %v1068 = vld [vmem:[#allocation2 + $0x410] sm:$0xff]
      %v1069 = vld [vmem:[#allocation2 + $0x418] sm:$0xff]
      %v1070 = vld [vmem:[#allocation2 + $0x420] sm:$0xff]
      %v1071 = vld [vmem:[#allocation2 + $0x428] sm:$0xff]
      %v1072 = vld [vmem:[#allocation2 + $0x430] sm:$0xff]
      %v1073 = vld [vmem:[#allocation2 + $0x438] sm:$0xff]
      %v1074 = vld [vmem:[#allocation2 + $0x440] sm:$0xff]
      %v1075 = vld [vmem:[#allocation2 + $0x448] sm:$0xff]
      %v1076 = vld [vmem:[#allocation2 + $0x450] sm:$0xff]
      %v1077 = vld [vmem:[#allocation2 + $0x458] sm:$0xff]
      %v1078 = vld [vmem:[#allocation2 + $0x460] sm:$0xff]
      %v1079 = vld [vmem:[#allocation2 + $0x468] sm:$0xff]
      %v1080 = vld [vmem:[#allocation2 + $0x470] sm:$0xff]
      %v1081 = vld [vmem:[#allocation2 + $0x478] sm:$0xff]
      %v1082 = vld [vmem:[#allocation2 + $0x480] sm:$0xff]
      %v1083 = vld [vmem:[#allocation2 + $0x488] sm:$0xff]
      %v1084 = vld [vmem:[#allocation2 + $0x490] sm:$0xff]
      %v1085 = vld [vmem:[#allocation2 + $0x498] sm:$0xff]
      %v1086 = vld [vmem:[#allocation2 + $0x4a0] sm:$0xff]
      %v1087 = vld [vmem:[#allocation2 + $0x4a8] sm:$0xff]
      %v1088 = vld [vmem:[#allocation2 + $0x4b0] sm:$0xff]
      %v1089 = vld [vmem:[#allocation2 + $0x4b8] sm:$0xff]
      %v1090 = vld [vmem:[#allocation2 + $0x4c0] sm:$0xff]
      %v1091 = vld [vmem:[#allocation2 + $0x4c8] sm:$0xff]
      %v1092 = vld [vmem:[#allocation2 + $0x4d0] sm:$0xff]
      %v1093 = vld [vmem:[#allocation2 + $0x4d8] sm:$0xff]
      %v1094 = vld [vmem:[#allocation2 + $0x4e0] sm:$0xff]
      %v1095 = vld [vmem:[#allocation2 + $0x4e8] sm:$0xff]
      %v1096 = vld [vmem:[#allocation2 + $0x4f0] sm:$0xff]
      %v1097 = vld [vmem:[#allocation2 + $0x4f8] sm:$0xff]
      %v1098 = vld [vmem:[#allocation2 + $0x500] sm:$0xff]
      %v1099 = vld [vmem:[#allocation2 + $0x508] sm:$0xff]
      %v1100 = vld [vmem:[#allocation2 + $0x510] sm:$0xff]
      %v1101 = vld [vmem:[#allocation2 + $0x518] sm:$0xff]
      %v1102 = vld [vmem:[#allocation2 + $0x520] sm:$0xff]
      %v1103 = vld [vmem:[#allocation2 + $0x528] sm:$0xff]
      %v1104 = vld [vmem:[#allocation2 + $0x530] sm:$0xff]
      %v1105 = vld [vmem:[#allocation2 + $0x538] sm:$0xff]
      %v1106 = vld [vmem:[#allocation2 + $0x540] sm:$0xff]
      %v1107 = vld [vmem:[#allocation2 + $0x548] sm:$0xff]
      %v1108 = vld [vmem:[#allocation2 + $0x550] sm:$0xff]
      %v1109 = vld [vmem:[#allocation2 + $0x558] sm:$0xff]
      %v1110 = vld [vmem:[#allocation2 + $0x560] sm:$0xff]
      %v1111 = vld [vmem:[#allocation2 + $0x568] sm:$0xff]
      %v1112 = vld [vmem:[#allocation2 + $0x570] sm:$0xff]
      %v1113 = vld [vmem:[#allocation2 + $0x578] sm:$0xff]
      %v1114 = vld [vmem:[#allocation2 + $0x580] sm:$0xff]
      %v1115 = vld [vmem:[#allocation2 + $0x588] sm:$0xff]
      %v1116 = vld [vmem:[#allocation2 + $0x590] sm:$0xff]
      %v1117 = vld [vmem:[#allocation2 + $0x598] sm:$0xff]
      %v1118 = vld [vmem:[#allocation2 + $0x5a0] sm:$0xff]
      %v1119 = vld [vmem:[#allocation2 + $0x5a8] sm:$0xff]
      %v1120 = vld [vmem:[#allocation2 + $0x5b0] sm:$0xff]
      %v1121 = vld [vmem:[#allocation2 + $0x5b8] sm:$0xff]
      %v1122 = vld [vmem:[#allocation2 + $0x5c0] sm:$0xff]
      %v1123 = vld [vmem:[#allocation2 + $0x5c8] sm:$0xff]
      %v1124 = vld [vmem:[#allocation2 + $0x5d0] sm:$0xff]
      %v1125 = vld [vmem:[#allocation2 + $0x5d8] sm:$0xff]
      %v1126 = vld [vmem:[#allocation2 + $0x5e0] sm:$0xff]
      %v1127 = vld [vmem:[#allocation2 + $0x5e8] sm:$0xff]
      %v1128 = vld [vmem:[#allocation2 + $0x5f0] sm:$0xff]
      %v1129 = vld [vmem:[#allocation2 + $0x5f8] sm:$0xff]
      %v1130 = vld [vmem:[#allocation2 + $0x600] sm:$0xff]
      %v1131 = vld [vmem:[#allocation2 + $0x608] sm:$0xff]
      %v1132 = vld [vmem:[#allocation2 + $0x610] sm:$0xff]
      %v1133 = vld [vmem:[#allocation2 + $0x618] sm:$0xff]
      %v1134 = vld [vmem:[#allocation2 + $0x620] sm:$0xff]
      %v1135 = vld [vmem:[#allocation2 + $0x628] sm:$0xff]
      %v1136 = vld [vmem:[#allocation2 + $0x630] sm:$0xff]
      %v1137 = vld [vmem:[#allocation2 + $0x638] sm:$0xff]
      %v1138 = vld [vmem:[#allocation2 + $0x640] sm:$0xff]
      %v1139 = vld [vmem:[#allocation2 + $0x648] sm:$0xff]
      %v1140 = vld [vmem:[#allocation2 + $0x650] sm:$0xff]
      %v1141 = vld [vmem:[#allocation2 + $0x658] sm:$0xff]
      %v1142 = vld [vmem:[#allocation2 + $0x660] sm:$0xff]
      %v1143 = vld [vmem:[#allocation2 + $0x668] sm:$0xff]
      %v1144 = vld [vmem:[#allocation2 + $0x670] sm:$0xff]
      %v1145 = vld [vmem:[#allocation2 + $0x678] sm:$0xff]
      %v1146 = vld [vmem:[#allocation2 + $0x680] sm:$0xff]
      %v1147 = vld [vmem:[#allocation2 + $0x688] sm:$0xff]
      %v1148 = vld [vmem:[#allocation2 + $0x690] sm:$0xff]
      %v1149 = vld [vmem:[#allocation2 + $0x698] sm:$0xff]
      %v1150 = vld [vmem:[#allocation2 + $0x6a0] sm:$0xff]
      %v1151 = vld [vmem:[#allocation2 + $0x6a8] sm:$0xff]
      %v1152 = vld [vmem:[#allocation2 + $0x6b0] sm:$0xff]
      %v1153 = vld [vmem:[#allocation2 + $0x6b8] sm:$0xff]
      %v1154 = vld [vmem:[#allocation2 + $0x6c0] sm:$0xff]
      %v1155 = vld [vmem:[#allocation2 + $0x6c8] sm:$0xff]
      %v1156 = vld [vmem:[#allocation2 + $0x6d0] sm:$0xff]
      %v1157 = vld [vmem:[#allocation2 + $0x6d8] sm:$0xff]
      %v1158 = vld [vmem:[#allocation2 + $0x6e0] sm:$0xff]
      %v1159 = vld [vmem:[#allocation2 + $0x6e8] sm:$0xff]
      %v1160 = vld [vmem:[#allocation2 + $0x6f0] sm:$0xff]
      %v1161 = vld [vmem:[#allocation2 + $0x6f8] sm:$0xff]
      %v1162 = vld [vmem:[#allocation2 + $0x700] sm:$0xff]
      %v1163 = vld [vmem:[#allocation2 + $0x708] sm:$0xff]
      %v1164 = vld [vmem:[#allocation2 + $0x710] sm:$0xff]
      %v1165 = vld [vmem:[#allocation2 + $0x718] sm:$0xff]
      %v1166 = vld [vmem:[#allocation2 + $0x720] sm:$0xff]
      %v1167 = vld [vmem:[#allocation2 + $0x728] sm:$0xff]
      %v1168 = vld [vmem:[#allocation2 + $0x730] sm:$0xff]
      %v1169 = vld [vmem:[#allocation2 + $0x738] sm:$0xff]
      %v1170 = vld [vmem:[#allocation2 + $0x740] sm:$0xff]
      %v1171 = vld [vmem:[#allocation2 + $0x748] sm:$0xff]
      %v1172 = vld [vmem:[#allocation2 + $0x750] sm:$0xff]
      %v1173 = vld [vmem:[#allocation2 + $0x758] sm:$0xff]
      %v1174 = vld [vmem:[#allocation2 + $0x760] sm:$0xff]
      %v1175 = vld [vmem:[#allocation2 + $0x768] sm:$0xff]
      %v1176 = vld [vmem:[#allocation2 + $0x770] sm:$0xff]
      %v1177 = vld [vmem:[#allocation2 + $0x778] sm:$0xff]
      %v1178 = vld [vmem:[#allocation2 + $0x780] sm:$0xff]
      %v1179 = vld [vmem:[#allocation2 + $0x788] sm:$0xff]
      %v1180 = vld [vmem:[#allocation2 + $0x790] sm:$0xff]
      %v1181 = vld [vmem:[#allocation2 + $0x798] sm:$0xff]
      %v1182 = vld [vmem:[#allocation2 + $0x7a0] sm:$0xff]
      %v1183 = vld [vmem:[#allocation2 + $0x7a8] sm:$0xff]
      %v1184 = vld [vmem:[#allocation2 + $0x7b0] sm:$0xff]
      %v1185 = vld [vmem:[#allocation2 + $0x7b8] sm:$0xff]
      %v1186 = vld [vmem:[#allocation2 + $0x7c0] sm:$0xff]
      %v1187 = vld [vmem:[#allocation2 + $0x7c8] sm:$0xff]
      %v1188 = vld [vmem:[#allocation2 + $0x7d0] sm:$0xff]
      %v1189 = vld [vmem:[#allocation2 + $0x7d8] sm:$0xff]
      %v1190 = vld [vmem:[#allocation2 + $0x7e0] sm:$0xff]
      %v1191 = vld [vmem:[#allocation2 + $0x7e8] sm:$0xff]
      %v1192 = vld [vmem:[#allocation2 + $0x7f0] sm:$0xff]
      %v1193 = vld [vmem:[#allocation2 + $0x7f8] sm:$0xff]
      %v1194 = vld [vmem:[#allocation2 + $0x800] sm:$0xff]
      %v1195 = vld [vmem:[#allocation2 + $0x808] sm:$0xff]
      %v1196 = vld [vmem:[#allocation2 + $0x810] sm:$0xff]
      %v1197 = vld [vmem:[#allocation2 + $0x818] sm:$0xff]
      %v1198 = vld [vmem:[#allocation2 + $0x820] sm:$0xff]
      %v1199 = vld [vmem:[#allocation2 + $0x828] sm:$0xff]
      %v1200 = vld [vmem:[#allocation2 + $0x830] sm:$0xff]
      %v1201 = vld [vmem:[#allocation2 + $0x838] sm:$0xff]
      %v1202 = vld [vmem:[#allocation2 + $0x840] sm:$0xff]
      %v1203 = vld [vmem:[#allocation2 + $0x848] sm:$0xff]
      %v1204 = vld [vmem:[#allocation2 + $0x850] sm:$0xff]
      %v1205 = vld [vmem:[#allocation2 + $0x858] sm:$0xff]
      %v1206 = vld [vmem:[#allocation2 + $0x860] sm:$0xff]
      %v1207 = vld [vmem:[#allocation2 + $0x868] sm:$0xff]
      %v1208 = vld [vmem:[#allocation2 + $0x870] sm:$0xff]
      %v1209 = vld [vmem:[#allocation2 + $0x878] sm:$0xff]
      %v1210 = vld [vmem:[#allocation2 + $0x880] sm:$0xff]
      %v1211 = vld [vmem:[#allocation2 + $0x888] sm:$0xff]
      %v1212 = vld [vmem:[#allocation2 + $0x890] sm:$0xff]
      %v1213 = vld [vmem:[#allocation2 + $0x898] sm:$0xff]
      %v1214 = vld [vmem:[#allocation2 + $0x8a0] sm:$0xff]
      %v1215 = vld [vmem:[#allocation2 + $0x8a8] sm:$0xff]
      %v1216 = vld [vmem:[#allocation2 + $0x8b0] sm:$0xff]
      %v1217 = vld [vmem:[#allocation2 + $0x8b8] sm:$0xff]
      %v1218 = vld [vmem:[#allocation2 + $0x8c0] sm:$0xff]
      %v1219 = vld [vmem:[#allocation2 + $0x8c8] sm:$0xff]
      %v1220 = vld [vmem:[#allocation2 + $0x8d0] sm:$0xff]
      %v1221 = vld [vmem:[#allocation2 + $0x8d8] sm:$0xff]
      %v1222 = vld [vmem:[#allocation2 + $0x8e0] sm:$0xff]
      %v1223 = vld [vmem:[#allocation2 + $0x8e8] sm:$0xff]
      %v1224 = vld [vmem:[#allocation2 + $0x8f0] sm:$0xff]
      %v1225 = vld [vmem:[#allocation2 + $0x8f8] sm:$0xff]
      %v1226 = vld [vmem:[%s2] sm:$0xff]
      %v1227 = vld [vmem:[%s2 + $0x8] sm:$0xff]
      %v1228 = vld [vmem:[%s2 + $0x10] sm:$0xff]
      %v1229 = vld [vmem:[%s2 + $0x18] sm:$0xff]
      %v1230 = vld [vmem:[%s2 + $0x20] sm:$0xff]
      %v1231 = vld [vmem:[%s2 + $0x28] sm:$0xff]
      %v1232 = vld [vmem:[%s2 + $0x30] sm:$0xff]
      %v1233 = vld [vmem:[%s2 + $0x38] sm:$0xff]
      %v1234 = vld [vmem:[%s2 + $0x40] sm:$0xff]
      %v1235 = vld [vmem:[%s2 + $0x48] sm:$0xff]
      %v1236 = vld [vmem:[%s2 + $0x50] sm:$0xff]
      %v1237 = vld [vmem:[%s2 + $0x58] sm:$0xff]
      %v1238 = vld [vmem:[%s2 + $0x60] sm:$0xff]
      %v1239 = vld [vmem:[%s2 + $0x68] sm:$0xff]
      %v1240 = vld [vmem:[%s2 + $0x70] sm:$0xff]
      %v1241 = vld [vmem:[%s2 + $0x78] sm:$0xff]
      %v1242 = vld [vmem:[%s2 + $0x80] sm:$0xff]
      %v1243 = vld [vmem:[%s2 + $0x88] sm:$0xff]
      %v1244 = vld [vmem:[%s2 + $0x90] sm:$0xff]
      %v1245 = vld [vmem:[%s2 + $0x98] sm:$0xff]
      %v1246 = vld [vmem:[%s2 + $0xa0] sm:$0xff]
      %v1247 = vld [vmem:[%s2 + $0xa8] sm:$0xff]
      %v1248 = vld [vmem:[%s2 + $0xb0] sm:$0xff]
      %v1249 = vld [vmem:[%s2 + $0xb8] sm:$0xff]
      %v1250 = vld [vmem:[%s2 + $0xc0] sm:$0xff]
      %v1251 = vld [vmem:[%s2 + $0xc8] sm:$0xff]
      %v1252 = vld [vmem:[%s2 + $0xd0] sm:$0xff]
      %v1253 = vld [vmem:[%s2 + $0xd8] sm:$0xff]
      %v1254 = vld [vmem:[%s2 + $0xe0] sm:$0xff]
      %v1255 = vld [vmem:[%s2 + $0xe8] sm:$0xff]
      %v1256 = vld [vmem:[%s2 + $0xf0] sm:$0xff]
      %v1257 = vld [vmem:[%s2 + $0xf8] sm:$0xff]
      %v1258 = vld [vmem:[%s2 + $0x100] sm:$0xff]
      %v1259 = vld [vmem:[%s2 + $0x108] sm:$0xff]
      %v1260 = vld [vmem:[%s2 + $0x110] sm:$0xff]
      %v1261 = vld [vmem:[%s2 + $0x118] sm:$0xff]
      %v1262 = vld [vmem:[%s2 + $0x120] sm:$0xff]
      %v1263 = vld [vmem:[%s2 + $0x128] sm:$0xff]
      %v1264 = vld [vmem:[%s2 + $0x130] sm:$0xff]
      %v1265 = vld [vmem:[%s2 + $0x138] sm:$0xff]
      %v1266 = vld [vmem:[%s2 + $0x140] sm:$0xff]
      %v1267 = vld [vmem:[%s2 + $0x148] sm:$0xff]
      %v1268 = vld [vmem:[%s2 + $0x150] sm:$0xff]
      %v1269 = vld [vmem:[%s2 + $0x158] sm:$0xff]
      %v1270 = vld [vmem:[%s2 + $0x160] sm:$0xff]
      %v1271 = vld [vmem:[%s2 + $0x168] sm:$0xff]
      %v1272 = vld [vmem:[%s2 + $0x170] sm:$0xff]
      %v1273 = vld [vmem:[%s2 + $0x178] sm:$0xff]
      %v1274 = vld [vmem:[%s2 + $0x180] sm:$0xff]
      %v1275 = vld [vmem:[%s2 + $0x188] sm:$0xff]
      %v1276 = vld [vmem:[%s2 + $0x190] sm:$0xff]
      %v1277 = vld [vmem:[%s2 + $0x198] sm:$0xff]
      %v1278 = vld [vmem:[%s2 + $0x1a0] sm:$0xff]
      %v1279 = vld [vmem:[%s2 + $0x1a8] sm:$0xff]
      %v1280 = vld [vmem:[%s2 + $0x1b0] sm:$0xff]
      %v1281 = vld [vmem:[%s2 + $0x1b8] sm:$0xff]
      %v1282 = vld [vmem:[%s2 + $0x1c0] sm:$0xff]
      %v1283 = vld [vmem:[%s2 + $0x1c8] sm:$0xff]
      %v1284 = vld [vmem:[%s2 + $0x1d0] sm:$0xff]
      %v1285 = vld [vmem:[%s2 + $0x1d8] sm:$0xff]
      %v1286 = vld [vmem:[%s2 + $0x1e0] sm:$0xff]
      %v1287 = vld [vmem:[%s2 + $0x1e8] sm:$0xff]
      %v1288 = vld [vmem:[%s2 + $0x1f0] sm:$0xff]
      %v1289 = vld [vmem:[%s2 + $0x1f8] sm:$0xff]
      %v1290 = vld [vmem:[%s2 + $0x200] sm:$0xff]
      %v1291 = vld [vmem:[%s2 + $0x208] sm:$0xff]
      %v1292 = vld [vmem:[%s2 + $0x210] sm:$0xff]
      %v1293 = vld [vmem:[%s2 + $0x218] sm:$0xff]
      %v1294 = vld [vmem:[%s2 + $0x220] sm:$0xff]
      %v1295 = vld [vmem:[%s2 + $0x228] sm:$0xff]
      %v1296 = vld [vmem:[%s2 + $0x230] sm:$0xff]
      %v1297 = vld [vmem:[%s2 + $0x238] sm:$0xff]
      %v1298 = vld [vmem:[%s2 + $0x240] sm:$0xff]
      %v1299 = vld [vmem:[%s2 + $0x248] sm:$0xff]
      %v1300 = vld [vmem:[%s2 + $0x250] sm:$0xff]
      %v1301 = vld [vmem:[%s2 + $0x258] sm:$0xff]
      %v1302 = vld [vmem:[%s2 + $0x260] sm:$0xff]
      %v1303 = vld [vmem:[%s2 + $0x268] sm:$0xff]
      %v1304 = vld [vmem:[%s2 + $0x270] sm:$0xff]
      %v1305 = vld [vmem:[%s2 + $0x278] sm:$0xff]
      %v1306 = vld [vmem:[%s2 + $0x280] sm:$0xff]
      %v1307 = vld [vmem:[%s2 + $0x288] sm:$0xff]
      %v1308 = vld [vmem:[%s2 + $0x290] sm:$0xff]
      %v1309 = vld [vmem:[%s2 + $0x298] sm:$0xff]
      %v1310 = vld [vmem:[%s2 + $0x2a0] sm:$0xff]
      %v1311 = vld [vmem:[%s2 + $0x2a8] sm:$0xff]
      %v1312 = vld [vmem:[%s2 + $0x2b0] sm:$0xff]
      %v1313 = vld [vmem:[%s2 + $0x2b8] sm:$0xff]
      %v1314 = vld [vmem:[%s2 + $0x2c0] sm:$0xff]
      %v1315 = vld [vmem:[%s2 + $0x2c8] sm:$0xff]
      %v1316 = vld [vmem:[%s2 + $0x2d0] sm:$0xff]
      %v1317 = vld [vmem:[%s2 + $0x2d8] sm:$0xff]
      %v1318 = vld [vmem:[%s2 + $0x2e0] sm:$0xff]
      %v1319 = vld [vmem:[%s2 + $0x2e8] sm:$0xff]
      %v1320 = vld [vmem:[%s2 + $0x2f0] sm:$0xff]
      %v1321 = vld [vmem:[%s2 + $0x2f8] sm:$0xff]
      %v1322 = vld [vmem:[%s2 + $0x300] sm:$0xff]
      %v1323 = vld [vmem:[%s2 + $0x308] sm:$0xff]
      %v1324 = vld [vmem:[%s2 + $0x310] sm:$0xff]
      %v1325 = vld [vmem:[%s2 + $0x318] sm:$0xff]
      %v1326 = vld [vmem:[%s2 + $0x320] sm:$0xff]
      %v1327 = vld [vmem:[%s2 + $0x328] sm:$0xff]
      %v1328 = vld [vmem:[%s2 + $0x330] sm:$0xff]
      %v1329 = vld [vmem:[%s2 + $0x338] sm:$0xff]
      %v1330 = vld [vmem:[%s2 + $0x340] sm:$0xff]
      %v1331 = vld [vmem:[%s2 + $0x348] sm:$0xff]
      %v1332 = vld [vmem:[%s2 + $0x350] sm:$0xff]
      %v1333 = vld [vmem:[%s2 + $0x358] sm:$0xff]
      %v1334 = vld [vmem:[%s2 + $0x360] sm:$0xff]
      %v1335 = vld [vmem:[%s2 + $0x368] sm:$0xff]
      %v1336 = vld [vmem:[%s2 + $0x370] sm:$0xff]
      %v1337 = vld [vmem:[%s2 + $0x378] sm:$0xff]
      %v1338 = vld [vmem:[%s2 + $0x380] sm:$0xff]
      %v1339 = vld [vmem:[%s2 + $0x388] sm:$0xff]
      %v1340 = vld [vmem:[%s2 + $0x390] sm:$0xff]
      %v1341 = vld [vmem:[%s2 + $0x398] sm:$0xff]
      %v1342 = vld [vmem:[%s2 + $0x3a0] sm:$0xff]
      %v1343 = vld [vmem:[%s2 + $0x3a8] sm:$0xff]
      %v1344 = vld [vmem:[%s2 + $0x3b0] sm:$0xff]
      %v1345 = vld [vmem:[%s2 + $0x3b8] sm:$0xff]
      %v1346 = vld [vmem:[%s2 + $0x3c0] sm:$0xff]
      %v1347 = vld [vmem:[%s2 + $0x3c8] sm:$0xff]
      %v1348 = vld [vmem:[%s2 + $0x3d0] sm:$0xff]
      %v1349 = vld [vmem:[%s2 + $0x3d8] sm:$0xff]
      %v1350 = vld [vmem:[%s2 + $0x3e0] sm:$0xff]
      %v1351 = vld [vmem:[%s2 + $0x3e8] sm:$0xff]
      %v1352 = vld [vmem:[%s2 + $0x3f0] sm:$0xff]
      %v1353 = vld [vmem:[%s2 + $0x3f8] sm:$0xff]
      %v1354 = vld [vmem:[%s2 + $0x400] sm:$0xff]
      %v1355 = vld [vmem:[%s2 + $0x408] sm:$0xff]
      %v1356 = vld [vmem:[%s2 + $0x410] sm:$0xff]
      %v1357 = vld [vmem:[%s2 + $0x418] sm:$0xff]
      %v1358 = vld [vmem:[%s2 + $0x420] sm:$0xff]
      %v1359 = vld [vmem:[%s2 + $0x428] sm:$0xff]
      %v1360 = vld [vmem:[%s2 + $0x430] sm:$0xff]
      %v1361 = vld [vmem:[%s2 + $0x438] sm:$0xff]
      %v1362 = vld [vmem:[%s2 + $0x440] sm:$0xff]
      %v1363 = vld [vmem:[%s2 + $0x448] sm:$0xff]
      %v1364 = vld [vmem:[%s2 + $0x450] sm:$0xff]
      %v1365 = vld [vmem:[%s2 + $0x458] sm:$0xff]
      %v1366 = vld [vmem:[%s2 + $0x460] sm:$0xff]
      %v1367 = vld [vmem:[%s2 + $0x468] sm:$0xff]
      %v1368 = vld [vmem:[%s2 + $0x470] sm:$0xff]
      %v1369 = vld [vmem:[%s2 + $0x478] sm:$0xff]
      %v1370 = vld [vmem:[%s3] sm:$0x1]
      %v1372 = vlaneseq
      %v1373 = vshrl.u32 %v1372, 7
      %v1374 = vsub.s32 0, %v1373
      %v1375 = vrot.slane %v1370, %v1374
      %1377 = vmatprep.subr.mxu0 0.0
      %1378 = vmatpush1.msra.mxu0 %v1226
      %1379 = vmatprep.subr.mxu0 0.0
      %1380 = vmatpush1.msra.mxu0 %v1227
      %1381 = vmatprep.subr.mxu0 0.0
      %1382 = vmatpush1.msra.mxu0 %v1228
      %1383 = vmatprep.subr.mxu0 0.0
      %1384 = vmatpush1.msra.mxu0 %v1229
      %1385 = vmatprep.subr.mxu0 0.0
      %1386 = vmatpush1.msra.mxu0 %v1230
      %1387 = vmatprep.subr.mxu0 0.0
      %1388 = vmatpush1.msra.mxu0 %v1231
      %1389 = vmatprep.subr.mxu0 0.0
      %1390 = vmatpush1.msra.mxu0 %v1232
      %1391 = vmatprep.subr.mxu0 0.0
      %1392 = vmatpush1.msra.mxu0 %v1233
      %1393 = vmatprep.subr.mxu0 0.0
      %1394 = vmatpush1.msra.mxu0 %v1234
      %1395 = vmatprep.subr.mxu0 0.0
      %1396 = vmatpush1.msra.mxu0 %v1235
      %1397 = vmatprep.subr.mxu0 0.0
      %1398 = vmatpush1.msra.mxu0 %v1236
      %1399 = vmatprep.subr.mxu0 0.0
      %1400 = vmatpush1.msra.mxu0 %v1237
      %1401 = vmatprep.subr.mxu0 0.0
      %1402 = vmatpush1.msra.mxu0 %v1238
      %1403 = vmatprep.subr.mxu0 0.0
      %1404 = vmatpush1.msra.mxu0 %v1239
      %1405 = vmatprep.subr.mxu0 0.0
      %1406 = vmatpush1.msra.mxu0 %v1240
      %1407 = vmatprep.subr.mxu0 0.0
      %1408 = vmatpush1.msra.mxu0 %v1241
      %1409 = vmatprep.subr.mxu0 0.0
      %1410 = vmatpush1.msra.mxu0 %v1242
      %1411 = vmatprep.subr.mxu0 0.0
      %1412 = vmatpush1.msra.mxu0 %v1243
      %1413 = vmatprep.subr.mxu0 0.0
      %1414 = vmatpush1.msra.mxu0 %v1244
      %1415 = vmatprep.subr.mxu0 0.0
      %1416 = vmatpush1.msra.mxu0 %v1245
      %1417 = vmatprep.subr.mxu0 0.0
      %1418 = vmatpush1.msra.mxu0 %v1246
      %1419 = vmatprep.subr.mxu0 0.0
      %1420 = vmatpush1.msra.mxu0 %v1247
      %1421 = vmatprep.subr.mxu0 0.0
      %1422 = vmatpush1.msra.mxu0 %v1248
      %1423 = vmatprep.subr.mxu0 0.0
      %1424 = vmatpush1.msra.mxu0 %v1249
      %1425 = vmatprep.subr.mxu0 0.0
      %1426 = vmatpush1.msra.mxu0 %v1250
      %1427 = vmatprep.subr.mxu0 0.0
      %1428 = vmatpush1.msra.mxu0 %v1251
      %1429 = vmatprep.subr.mxu0 0.0
      %1430 = vmatpush1.msra.mxu0 %v1252
      %1431 = vmatprep.subr.mxu0 0.0
      %1432 = vmatpush1.msra.mxu0 %v1253
      %1433 = vmatprep.subr.mxu0 0.0
      %1434 = vmatpush1.msra.mxu0 %v1254
      %1435 = vmatprep.subr.mxu0 0.0
      %1436 = vmatpush1.msra.mxu0 %v1255
      %1437 = vmatprep.subr.mxu0 0.0
      %1438 = vmatpush1.msra.mxu0 %v1256
      %1439 = vmatprep.subr.mxu0 0.0
      %1440 = vmatpush1.msra.mxu0 %v1257
      %1441 = vmatprep.mubr.f32.mxu0 %v939
      %1442 = vmatmul.mubr.f32.gmra.mrb[0].mxu0 %v938
      %v1443 = vpop.f32.mrb[0].mxu0
      %v1444 = vadd.f32 %v1375, %v1443
      %v1445 = vpop.f32.mrb[0].mxu0
      %1446 = vmatprep.mubr.f32.mxu0 %v948
      %1447 = vmatmul.mubr.f32.gmra.mrb[0].mxu0 %v947
      %v1448 = vpop.f32.mrb[0].mxu0
      %v1449 = vadd.f32 %v1375, %v1448
      %v1450 = vpop.f32.mrb[0].mxu0
      %1451 = vmatprep.mubr.f32.mxu0 %v957
      %1452 = vmatmul.mubr.f32.gmra.mrb[0].mxu0 %v956
      %v1453 = vpop.f32.mrb[0].mxu0
      %v1454 = vadd.f32 %v1375, %v1453
      %v1455 = vpop.f32.mrb[0].mxu0
      %1456 = vmatprep.mubr.f32.mxu0 %v966
      %1457 = vmatmul.mubr.f32.gmra.mrb[0].mxu0 %v965
      %v1458 = vpop.f32.mrb[0].mxu0
      %v1459 = vadd.f32 %v1375, %v1458
      %v1460 = vpop.f32.mrb[0].mxu0
      %1461 = vmatprep.mubr.f32.mxu0 %v975
      %1462 = vmatmul.mubr.f32.gmra.mrb[0].mxu0 %v974
      %v1463 = vpop.f32.mrb[0].mxu0
      %v1464 = vadd.f32 %v1375, %v1463
      %v1465 = vpop.f32.mrb[0].mxu0
      %1466 = vmatprep.mubr.f32.mxu0 %v984
      %1467 = vmatmul.mubr.f32.gmra.mrb[0].mxu0 %v983
      %v1468 = vpop.f32.mrb[0].mxu0
      %v1469 = vadd.f32 %v1375, %v1468
      %v1470 = vpop.f32.mrb[0].mxu0
      %1471 = vmatprep.mubr.f32.mxu0 %v993
      %1472 = vmatmul.mubr.f32.gmra.mrb[0].mxu0 %v992
      %v1473 = vpop.f32.mrb[0].mxu0
      %v1474 = vadd.f32 %v1375, %v1473
      %v1475 = vpop.f32.mrb[0].mxu0
      %1476 = vmatprep.mubr.f32.mxu0 %v1002
      %1477 = vmatmul.mubr.f32.gmra.mrb[0].mxu0 %v1001
      %v1478 = vpop.f32.mrb[0].mxu0
      %v1479 = vadd.f32 %v1375, %v1478
      %v1480 = vpop.f32.mrb[0].mxu0
      %1481 = vmatprep.mubr.f32.mxu0 %v1011
      %1482 = vmatmul.mubr.f32.gmra.mrb[0].mxu0 %v1010
      %v1483 = vpop.f32.mrb[0].mxu0
      %v1484 = vadd.f32 %v1375, %v1483
      %v1485 = vpop.f32.mrb[0].mxu0
      %1486 = vmatprep.mubr.f32.mxu0 %v1020
      %1487 = vmatmul.mubr.f32.gmra.mrb[0].mxu0 %v1019
      %v1488 = vpop.f32.mrb[0].mxu0
      %v1489 = vadd.f32 %v1375, %v1488
      %v1490 = vpop.f32.mrb[0].mxu0
      %1491 = vmatprep.mubr.f32.mxu0 %v1029
      %1492 = vmatmul.mubr.f32.gmra.mrb[0].mxu0 %v1028
      %v1493 = vpop.f32.mrb[0].mxu0
      %v1494 = vadd.f32 %v1375, %v1493
      %v1495 = vpop.f32.mrb[0].mxu0
      %1496 = vmatprep.mubr.f32.mxu0 %v1038
      %1497 = vmatmul.mubr.f32.gmra.mrb[0].mxu0 %v1037
      %v1498 = vpop.f32.mrb[0].mxu0
      %v1499 = vadd.f32 %v1375, %v1498
      %v1500 = vpop.f32.mrb[0].mxu0
      %1501 = vmatprep.mubr.f32.mxu0 %v1047
      %1502 = vmatmul.mubr.f32.gmra.mrb[0].mxu0 %v1046
      %v1503 = vpop.f32.mrb[0].mxu0
      %v1504 = vadd.f32 %v1375, %v1503
      %v1505 = vpop.f32.mrb[0].mxu0
      %1506 = vmatprep.mubr.f32.mxu0 %v1056
      %1507 = vmatmul.mubr.f32.gmra.mrb[0].mxu0 %v1055
      %v1508 = vpop.f32.mrb[0].mxu0
      %v1509 = vadd.f32 %v1375, %v1508
      %v1510 = vpop.f32.mrb[0].mxu0
      %1511 = vmatprep.mubr.f32.mxu0 %v1065
      %1512 = vmatmul.mubr.f32.gmra.mrb[0].mxu0 %v1064
      %v1513 = vpop.f32.mrb[0].mxu0
      %v1514 = vadd.f32 %v1375, %v1513
      %v1515 = vpop.f32.mrb[0].mxu0
      %1516 = vmatprep.mubr.f32.mxu0 %v1074
      %1517 = vmatmul.mubr.f32.gmra.mrb[0].mxu0 %v1073
      %v1518 = vpop.f32.mrb[0].mxu0
      %v1519 = vadd.f32 %v1375, %v1518
      %v1520 = vpop.f32.mrb[0].mxu0
      %1521 = vmatprep.mubr.f32.mxu0 %v1083
      %1522 = vmatmul.mubr.f32.gmra.mrb[0].mxu0 %v1082
      %v1523 = vpop.f32.mrb[0].mxu0
      %v1524 = vadd.f32 %v1375, %v1523
      %v1525 = vpop.f32.mrb[0].mxu0
      %1526 = vmatprep.mubr.f32.mxu0 %v1092
      %1527 = vmatmul.mubr.f32.gmra.mrb[0].mxu0 %v1091
      %v1528 = vpop.f32.mrb[0].mxu0
      %v1529 = vadd.f32 %v1375, %v1528
      %v1530 = vpop.f32.mrb[0].mxu0
      %1531 = vmatprep.mubr.f32.mxu0 %v1101
      %1532 = vmatmul.mubr.f32.gmra.mrb[0].mxu0 %v1100
      %v1533 = vpop.f32.mrb[0].mxu0
      %v1534 = vadd.f32 %v1375, %v1533
      %v1535 = vpop.f32.mrb[0].mxu0
      %1536 = vmatprep.mubr.f32.mxu0 %v1110
      %1537 = vmatmul.mubr.f32.gmra.mrb[0].mxu0 %v1109
      %v1538 = vpop.f32.mrb[0].mxu0
      %v1539 = vadd.f32 %v1375, %v1538
      %v1540 = vpop.f32.mrb[0].mxu0
      %1541 = vmatprep.mubr.f32.mxu0 %v1119
      %1542 = vmatmul.mubr.f32.gmra.mrb[0].mxu0 %v1118
      %v1543 = vpop.f32.mrb[0].mxu0
      %v1544 = vadd.f32 %v1375, %v1543
      %v1545 = vpop.f32.mrb[0].mxu0
      %1546 = vmatprep.mubr.f32.mxu0 %v1128
      %1547 = vmatmul.mubr.f32.gmra.mrb[0].mxu0 %v1127
      %v1548 = vpop.f32.mrb[0].mxu0
      %v1549 = vadd.f32 %v1375, %v1548
      %v1550 = vpop.f32.mrb[0].mxu0
      %1551 = vmatprep.mubr.f32.mxu0 %v1137
      %1552 = vmatmul.mubr.f32.gmra.mrb[0].mxu0 %v1136
      %v1553 = vpop.f32.mrb[0].mxu0
      %v1554 = vadd.f32 %v1375, %v1553
      %v1555 = vpop.f32.mrb[0].mxu0
      %1556 = vmatprep.mubr.f32.mxu0 %v1146
      %1557 = vmatmul.mubr.f32.gmra.mrb[0].mxu0 %v1145
      %v1558 = vpop.f32.mrb[0].mxu0
      %v1559 = vadd.f32 %v1375, %v1558
      %v1560 = vpop.f32.mrb[0].mxu0
      %1561 = vmatprep.mubr.f32.mxu0 %v1155
      %1562 = vmatmul.mubr.f32.gmra.mrb[0].mxu0 %v1154
      %v1563 = vpop.f32.mrb[0].mxu0
      %v1564 = vadd.f32 %v1375, %v1563
      %v1565 = vpop.f32.mrb[0].mxu0
      %1566 = vmatprep.mubr.f32.mxu0 %v1164
      %1567 = vmatmul.mubr.f32.gmra.mrb[0].mxu0 %v1163
      %v1568 = vpop.f32.mrb[0].mxu0
      %v1569 = vadd.f32 %v1375, %v1568
      %v1570 = vpop.f32.mrb[0].mxu0
      %1571 = vmatprep.mubr.f32.mxu0 %v1173
      %1572 = vmatmul.mubr.f32.gmra.mrb[0].mxu0 %v1172
      %v1573 = vpop.f32.mrb[0].mxu0
      %v1574 = vadd.f32 %v1375, %v1573
      %v1575 = vpop.f32.mrb[0].mxu0
      %1576 = vmatprep.mubr.f32.mxu0 %v1182
      %1577 = vmatmul.mubr.f32.gmra.mrb[0].mxu0 %v1181
      %v1578 = vpop.f32.mrb[0].mxu0
      %v1579 = vadd.f32 %v1375, %v1578
      %v1580 = vpop.f32.mrb[0].mxu0
      %1581 = vmatprep.mubr.f32.mxu0 %v1191
      %1582 = vmatmul.mubr.f32.gmra.mrb[0].mxu0 %v1190
      %v1583 = vpop.f32.mrb[0].mxu0
      %v1584 = vadd.f32 %v1375, %v1583
      %v1585 = vpop.f32.mrb[0].mxu0
      %1586 = vmatprep.mubr.f32.mxu0 %v1200
      %1587 = vmatmul.mubr.f32.gmra.mrb[0].mxu0 %v1199
      %v1588 = vpop.f32.mrb[0].mxu0
      %v1589 = vadd.f32 %v1375, %v1588
      %v1590 = vpop.f32.mrb[0].mxu0
      %1591 = vmatprep.mubr.f32.mxu0 %v1209
      %1592 = vmatmul.mubr.f32.gmra.mrb[0].mxu0 %v1208
      %v1593 = vpop.f32.mrb[0].mxu0
      %v1594 = vadd.f32 %v1375, %v1593
      %v1595 = vpop.f32.mrb[0].mxu0
      %1596 = vmatprep.mubr.f32.mxu0 %v1218
      %1597 = vmatmul.mubr.f32.gmra.mrb[0].mxu0 %v1217
      %v1598 = vpop.f32.mrb[0].mxu0
      %v1599 = vadd.f32 %v1375, %v1598
      %v1600 = vpop.f32.mrb[0].mxu0
      %1601 = vdwg.mxu0
      %1602 = vmatprep.subr.mxu0 0.0
      %1603 = vmatpush1.msra.mxu0 %v1258
      %1604 = vmatprep.subr.mxu0 0.0
      %1605 = vmatpush1.msra.mxu0 %v1259
      %1606 = vmatprep.subr.mxu0 0.0
      %1607 = vmatpush1.msra.mxu0 %v1260
      %1608 = vmatprep.subr.mxu0 0.0
      %1609 = vmatpush1.msra.mxu0 %v1261
      %1610 = vmatprep.subr.mxu0 0.0
      %1611 = vmatpush1.msra.mxu0 %v1262
      %1612 = vmatprep.subr.mxu0 0.0
      %1613 = vmatpush1.msra.mxu0 %v1263
      %1614 = vmatprep.subr.mxu0 0.0
      %1615 = vmatpush1.msra.mxu0 %v1264
      %1616 = vmatprep.subr.mxu0 0.0
      %1617 = vmatpush1.msra.mxu0 %v1265
      %1618 = vmatprep.subr.mxu0 0.0
      %1619 = vmatpush1.msra.mxu0 %v1266
      %1620 = vmatprep.subr.mxu0 0.0
      %1621 = vmatpush1.msra.mxu0 %v1267
      %1622 = vmatprep.subr.mxu0 0.0
      %1623 = vmatpush1.msra.mxu0 %v1268
      %1624 = vmatprep.subr.mxu0 0.0
      %1625 = vmatpush1.msra.mxu0 %v1269
      %1626 = vmatprep.subr.mxu0 0.0
      %1627 = vmatpush1.msra.mxu0 %v1270
      %1628 = vmatprep.subr.mxu0 0.0
      %1629 = vmatpush1.msra.mxu0 %v1271
      %1630 = vmatprep.subr.mxu0 0.0
      %1631 = vmatpush1.msra.mxu0 %v1272
      %1632 = vmatprep.subr.mxu0 0.0
      %1633 = vmatpush1.msra.mxu0 %v1273
      %1634 = vmatprep.subr.mxu0 0.0
      %1635 = vmatpush1.msra.mxu0 %v1274
      %1636 = vmatprep.subr.mxu0 0.0
      %1637 = vmatpush1.msra.mxu0 %v1275
      %1638 = vmatprep.subr.mxu0 0.0
      %1639 = vmatpush1.msra.mxu0 %v1276
      %1640 = vmatprep.subr.mxu0 0.0
      %1641 = vmatpush1.msra.mxu0 %v1277
      %1642 = vmatprep.subr.mxu0 0.0
      %1643 = vmatpush1.msra.mxu0 %v1278
      %1644 = vmatprep.subr.mxu0 0.0
      %1645 = vmatpush1.msra.mxu0 %v1279
      %1646 = vmatprep.subr.mxu0 0.0
      %1647 = vmatpush1.msra.mxu0 %v1280
      %1648 = vmatprep.subr.mxu0 0.0
      %1649 = vmatpush1.msra.mxu0 %v1281
      %1650 = vmatprep.subr.mxu0 0.0
      %1651 = vmatpush1.msra.mxu0 %v1282
      %1652 = vmatprep.subr.mxu0 0.0
      %1653 = vmatpush1.msra.mxu0 %v1283
      %1654 = vmatprep.subr.mxu0 0.0
      %1655 = vmatpush1.msra.mxu0 %v1284
      %1656 = vmatprep.subr.mxu0 0.0
      %1657 = vmatpush1.msra.mxu0 %v1285
      %1658 = vmatprep.subr.mxu0 0.0
      %1659 = vmatpush1.msra.mxu0 %v1286
      %1660 = vmatprep.subr.mxu0 0.0
      %1661 = vmatpush1.msra.mxu0 %v1287
      %1662 = vmatprep.subr.mxu0 0.0
      %1663 = vmatpush1.msra.mxu0 %v1288
      %1664 = vmatprep.subr.mxu0 0.0
      %1665 = vmatpush1.msra.mxu0 %v1289
      %1666 = vmatprep.mubr.f32.mxu0 %v941
      %1667 = vmatmul.mubr.f32.gmra.mrb[0].mxu0 %v940
      %v1668 = vpop.f32.mrb[0].mxu0
      %v1669 = vadd.f32 %v1444, %v1668
      %v1670 = vpop.f32.mrb[0].mxu0
      %1671 = vmatprep.mubr.f32.mxu0 %v950
      %1672 = vmatmul.mubr.f32.gmra.mrb[0].mxu0 %v949
      %v1673 = vpop.f32.mrb[0].mxu0
      %v1674 = vadd.f32 %v1449, %v1673
      %v1675 = vpop.f32.mrb[0].mxu0
      %1676 = vmatprep.mubr.f32.mxu0 %v959
      %1677 = vmatmul.mubr.f32.gmra.mrb[0].mxu0 %v958
      %v1678 = vpop.f32.mrb[0].mxu0
      %v1679 = vadd.f32 %v1454, %v1678
      %v1680 = vpop.f32.mrb[0].mxu0
      %1681 = vmatprep.mubr.f32.mxu0 %v968
      %1682 = vmatmul.mubr.f32.gmra.mrb[0].mxu0 %v967
      %v1683 = vpop.f32.mrb[0].mxu0
      %v1684 = vadd.f32 %v1459, %v1683
      %v1685 = vpop.f32.mrb[0].mxu0
      %1686 = vmatprep.mubr.f32.mxu0 %v977
      %1687 = vmatmul.mubr.f32.gmra.mrb[0].mxu0 %v976
      %v1688 = vpop.f32.mrb[0].mxu0
      %v1689 = vadd.f32 %v1464, %v1688
      %v1690 = vpop.f32.mrb[0].mxu0
      %1691 = vmatprep.mubr.f32.mxu0 %v986
      %1692 = vmatmul.mubr.f32.gmra.mrb[0].mxu0 %v985
      %v1693 = vpop.f32.mrb[0].mxu0
      %v1694 = vadd.f32 %v1469, %v1693
      %v1695 = vpop.f32.mrb[0].mxu0
      %1696 = vmatprep.mubr.f32.mxu0 %v995
      %1697 = vmatmul.mubr.f32.gmra.mrb[0].mxu0 %v994
      %v1698 = vpop.f32.mrb[0].mxu0
      %v1699 = vadd.f32 %v1474, %v1698
      %v1700 = vpop.f32.mrb[0].mxu0
      %1701 = vmatprep.mubr.f32.mxu0 %v1004
      %1702 = vmatmul.mubr.f32.gmra.mrb[0].mxu0 %v1003
      %v1703 = vpop.f32.mrb[0].mxu0
      %v1704 = vadd.f32 %v1479, %v1703
      %v1705 = vpop.f32.mrb[0].mxu0
      %1706 = vmatprep.mubr.f32.mxu0 %v1013
      %1707 = vmatmul.mubr.f32.gmra.mrb[0].mxu0 %v1012
      %v1708 = vpop.f32.mrb[0].mxu0
      %v1709 = vadd.f32 %v1484, %v1708
      %v1710 = vpop.f32.mrb[0].mxu0
      %1711 = vmatprep.mubr.f32.mxu0 %v1022
      %1712 = vmatmul.mubr.f32.gmra.mrb[0].mxu0 %v1021
      %v1713 = vpop.f32.mrb[0].mxu0
      %v1714 = vadd.f32 %v1489, %v1713
      %v1715 = vpop.f32.mrb[0].mxu0
      %1716 = vmatprep.mubr.f32.mxu0 %v1031
      %1717 = vmatmul.mubr.f32.gmra.mrb[0].mxu0 %v1030
      %v1718 = vpop.f32.mrb[0].mxu0
      %v1719 = vadd.f32 %v1494, %v1718
      %v1720 = vpop.f32.mrb[0].mxu0
      %1721 = vmatprep.mubr.f32.mxu0 %v1040
      %1722 = vmatmul.mubr.f32.gmra.mrb[0].mxu0 %v1039
      %v1723 = vpop.f32.mrb[0].mxu0
      %v1724 = vadd.f32 %v1499, %v1723
      %v1725 = vpop.f32.mrb[0].mxu0
      %1726 = vmatprep.mubr.f32.mxu0 %v1049
      %1727 = vmatmul.mubr.f32.gmra.mrb[0].mxu0 %v1048
      %v1728 = vpop.f32.mrb[0].mxu0
      %v1729 = vadd.f32 %v1504, %v1728
      %v1730 = vpop.f32.mrb[0].mxu0
      %1731 = vmatprep.mubr.f32.mxu0 %v1058
      %1732 = vmatmul.mubr.f32.gmra.mrb[0].mxu0 %v1057
      %v1733 = vpop.f32.mrb[0].mxu0
      %v1734 = vadd.f32 %v1509, %v1733
      %v1735 = vpop.f32.mrb[0].mxu0
      %1736 = vmatprep.mubr.f32.mxu0 %v1067
      %1737 = vmatmul.mubr.f32.gmra.mrb[0].mxu0 %v1066
      %v1738 = vpop.f32.mrb[0].mxu0
      %v1739 = vadd.f32 %v1514, %v1738
      %v1740 = vpop.f32.mrb[0].mxu0
      %1741 = vmatprep.mubr.f32.mxu0 %v1076
      %1742 = vmatmul.mubr.f32.gmra.mrb[0].mxu0 %v1075
      %v1743 = vpop.f32.mrb[0].mxu0
      %v1744 = vadd.f32 %v1519, %v1743
      %v1745 = vpop.f32.mrb[0].mxu0
      %1746 = vmatprep.mubr.f32.mxu0 %v1085
      %1747 = vmatmul.mubr.f32.gmra.mrb[0].mxu0 %v1084
      %v1748 = vpop.f32.mrb[0].mxu0
      %v1749 = vadd.f32 %v1524, %v1748
      %v1750 = vpop.f32.mrb[0].mxu0
      %1751 = vmatprep.mubr.f32.mxu0 %v1094
      %1752 = vmatmul.mubr.f32.gmra.mrb[0].mxu0 %v1093
      %v1753 = vpop.f32.mrb[0].mxu0
      %v1754 = vadd.f32 %v1529, %v1753
      %v1755 = vpop.f32.mrb[0].mxu0
      %1756 = vmatprep.mubr.f32.mxu0 %v1103
      %1757 = vmatmul.mubr.f32.gmra.mrb[0].mxu0 %v1102
      %v1758 = vpop.f32.mrb[0].mxu0
      %v1759 = vadd.f32 %v1534, %v1758
      %v1760 = vpop.f32.mrb[0].mxu0
      %1761 = vmatprep.mubr.f32.mxu0 %v1112
      %1762 = vmatmul.mubr.f32.gmra.mrb[0].mxu0 %v1111
      %v1763 = vpop.f32.mrb[0].mxu0
      %v1764 = vadd.f32 %v1539, %v1763
      %v1765 = vpop.f32.mrb[0].mxu0
      %1766 = vmatprep.mubr.f32.mxu0 %v1121
      %1767 = vmatmul.mubr.f32.gmra.mrb[0].mxu0 %v1120
      %v1768 = vpop.f32.mrb[0].mxu0
      %v1769 = vadd.f32 %v1544, %v1768
      %v1770 = vpop.f32.mrb[0].mxu0
      %1771 = vmatprep.mubr.f32.mxu0 %v1130
      %1772 = vmatmul.mubr.f32.gmra.mrb[0].mxu0 %v1129
      %v1773 = vpop.f32.mrb[0].mxu0
      %v1774 = vadd.f32 %v1549, %v1773
      %v1775 = vpop.f32.mrb[0].mxu0
      %1776 = vmatprep.mubr.f32.mxu0 %v1139
      %1777 = vmatmul.mubr.f32.gmra.mrb[0].mxu0 %v1138
      %v1778 = vpop.f32.mrb[0].mxu0
      %v1779 = vadd.f32 %v1554, %v1778
      %v1780 = vpop.f32.mrb[0].mxu0
      %1781 = vmatprep.mubr.f32.mxu0 %v1148
      %1782 = vmatmul.mubr.f32.gmra.mrb[0].mxu0 %v1147
      %v1783 = vpop.f32.mrb[0].mxu0
      %v1784 = vadd.f32 %v1559, %v1783
      %v1785 = vpop.f32.mrb[0].mxu0
      %1786 = vmatprep.mubr.f32.mxu0 %v1157
      %1787 = vmatmul.mubr.f32.gmra.mrb[0].mxu0 %v1156
      %v1788 = vpop.f32.mrb[0].mxu0
      %v1789 = vadd.f32 %v1564, %v1788
      %v1790 = vpop.f32.mrb[0].mxu0
      %1791 = vmatprep.mubr.f32.mxu0 %v1166
      %1792 = vmatmul.mubr.f32.gmra.mrb[0].mxu0 %v1165
      %v1793 = vpop.f32.mrb[0].mxu0
      %v1794 = vadd.f32 %v1569, %v1793
      %v1795 = vpop.f32.mrb[0].mxu0
      %1796 = vmatprep.mubr.f32.mxu0 %v1175
      %1797 = vmatmul.mubr.f32.gmra.mrb[0].mxu0 %v1174
      %v1798 = vpop.f32.mrb[0].mxu0
      %v1799 = vadd.f32 %v1574, %v1798
      %v1800 = vpop.f32.mrb[0].mxu0
      %1801 = vmatprep.mubr.f32.mxu0 %v1184
      %1802 = vmatmul.mubr.f32.gmra.mrb[0].mxu0 %v1183
      %v1803 = vpop.f32.mrb[0].mxu0
      %v1804 = vadd.f32 %v1579, %v1803
      %v1805 = vpop.f32.mrb[0].mxu0
      %1806 = vmatprep.mubr.f32.mxu0 %v1193
      %1807 = vmatmul.mubr.f32.gmra.mrb[0].mxu0 %v1192
      %v1808 = vpop.f32.mrb[0].mxu0
      %v1809 = vadd.f32 %v1584, %v1808
      %v1810 = vpop.f32.mrb[0].mxu0
      %1811 = vmatprep.mubr.f32.mxu0 %v1202
      %1812 = vmatmul.mubr.f32.gmra.mrb[0].mxu0 %v1201
      %v1813 = vpop.f32.mrb[0].mxu0
      %v1814 = vadd.f32 %v1589, %v1813
      %v1815 = vpop.f32.mrb[0].mxu0
      %1816 = vmatprep.mubr.f32.mxu0 %v1211
      %1817 = vmatmul.mubr.f32.gmra.mrb[0].mxu0 %v1210
      %v1818 = vpop.f32.mrb[0].mxu0
      %v1819 = vadd.f32 %v1594, %v1818
      %v1820 = vpop.f32.mrb[0].mxu0
      %1821 = vmatprep.mubr.f32.mxu0 %v1220
      %1822 = vmatmul.mubr.f32.gmra.mrb[0].mxu0 %v1219
      %v1823 = vpop.f32.mrb[0].mxu0
      %v1824 = vadd.f32 %v1599, %v1823
      %v1825 = vpop.f32.mrb[0].mxu0
      %1826 = vdwg.mxu0
      %1827 = vmatprep.subr.mxu0 0.0
      %1828 = vmatpush1.msra.mxu0 %v1290
      %1829 = vmatprep.subr.mxu0 0.0
      %1830 = vmatpush1.msra.mxu0 %v1291
      %1831 = vmatprep.subr.mxu0 0.0
      %1832 = vmatpush1.msra.mxu0 %v1292
      %1833 = vmatprep.subr.mxu0 0.0
      %1834 = vmatpush1.msra.mxu0 %v1293
      %1835 = vmatprep.subr.mxu0 0.0
      %1836 = vmatpush1.msra.mxu0 %v1294
      %1837 = vmatprep.subr.mxu0 0.0
      %1838 = vmatpush1.msra.mxu0 %v1295
      %1839 = vmatprep.subr.mxu0 0.0
      %1840 = vmatpush1.msra.mxu0 %v1296
      %1841 = vmatprep.subr.mxu0 0.0
      %1842 = vmatpush1.msra.mxu0 %v1297
      %1843 = vmatprep.subr.mxu0 0.0
      %1844 = vmatpush1.msra.mxu0 %v1298
      %1845 = vmatprep.subr.mxu0 0.0
      %1846 = vmatpush1.msra.mxu0 %v1299
      %1847 = vmatprep.subr.mxu0 0.0
      %1848 = vmatpush1.msra.mxu0 %v1300
      %1849 = vmatprep.subr.mxu0 0.0
      %1850 = vmatpush1.msra.mxu0 %v1301
      %1851 = vmatprep.subr.mxu0 0.0
      %1852 = vmatpush1.msra.mxu0 %v1302
      %1853 = vmatprep.subr.mxu0 0.0
      %1854 = vmatpush1.msra.mxu0 %v1303
      %1855 = vmatprep.subr.mxu0 0.0
      %1856 = vmatpush1.msra.mxu0 %v1304
      %1857 = vmatprep.subr.mxu0 0.0
      %1858 = vmatpush1.msra.mxu0 %v1305
      %1859 = vmatprep.subr.mxu0 0.0
      %1860 = vmatpush1.msra.mxu0 %v1306
      %1861 = vmatprep.subr.mxu0 0.0
      %1862 = vmatpush1.msra.mxu0 %v1307
      %1863 = vmatprep.subr.mxu0 0.0
      %1864 = vmatpush1.msra.mxu0 %v1308
      %1865 = vmatprep.subr.mxu0 0.0
      %1866 = vmatpush1.msra.mxu0 %v1309
      %1867 = vmatprep.subr.mxu0 0.0
      %1868 = vmatpush1.msra.mxu0 %v1310
      %1869 = vmatprep.subr.mxu0 0.0
      %1870 = vmatpush1.msra.mxu0 %v1311
      %1871 = vmatprep.subr.mxu0 0.0
      %1872 = vmatpush1.msra.mxu0 %v1312
      %1873 = vmatprep.subr.mxu0 0.0
      %1874 = vmatpush1.msra.mxu0 %v1313
      %1875 = vmatprep.subr.mxu0 0.0
      %1876 = vmatpush1.msra.mxu0 %v1314
      %1877 = vmatprep.subr.mxu0 0.0
      %1878 = vmatpush1.msra.mxu0 %v1315
      %1879 = vmatprep.subr.mxu0 0.0
      %1880 = vmatpush1.msra.mxu0 %v1316
      %1881 = vmatprep.subr.mxu0 0.0
      %1882 = vmatpush1.msra.mxu0 %v1317
      %1883 = vmatprep.subr.mxu0 0.0
      %1884 = vmatpush1.msra.mxu0 %v1318
      %1885 = vmatprep.subr.mxu0 0.0
      %1886 = vmatpush1.msra.mxu0 %v1319
      %1887 = vmatprep.subr.mxu0 0.0
      %1888 = vmatpush1.msra.mxu0 %v1320
      %1889 = vmatprep.subr.mxu0 0.0
      %1890 = vmatpush1.msra.mxu0 %v1321
      %1891 = vmatprep.mubr.f32.mxu0 %v943
      %1892 = vmatmul.mubr.f32.gmra.mrb[0].mxu0 %v942
      %v1893 = vpop.f32.mrb[0].mxu0
      %v1894 = vadd.f32 %v1669, %v1893
      %v1895 = vpop.f32.mrb[0].mxu0
      %1896 = vmatprep.mubr.f32.mxu0 %v952
      %1897 = vmatmul.mubr.f32.gmra.mrb[0].mxu0 %v951
      %v1898 = vpop.f32.mrb[0].mxu0
      %v1899 = vadd.f32 %v1674, %v1898
      %v1900 = vpop.f32.mrb[0].mxu0
      %1901 = vmatprep.mubr.f32.mxu0 %v961
      %1902 = vmatmul.mubr.f32.gmra.mrb[0].mxu0 %v960
      %v1903 = vpop.f32.mrb[0].mxu0
      %v1904 = vadd.f32 %v1679, %v1903
      %v1905 = vpop.f32.mrb[0].mxu0
      %1906 = vmatprep.mubr.f32.mxu0 %v970
      %1907 = vmatmul.mubr.f32.gmra.mrb[0].mxu0 %v969
      %v1908 = vpop.f32.mrb[0].mxu0
      %v1909 = vadd.f32 %v1684, %v1908
      %v1910 = vpop.f32.mrb[0].mxu0
      %1911 = vmatprep.mubr.f32.mxu0 %v979
      %1912 = vmatmul.mubr.f32.gmra.mrb[0].mxu0 %v978
      %v1913 = vpop.f32.mrb[0].mxu0
      %v1914 = vadd.f32 %v1689, %v1913
      %v1915 = vpop.f32.mrb[0].mxu0
      %1916 = vmatprep.mubr.f32.mxu0 %v988
      %1917 = vmatmul.mubr.f32.gmra.mrb[0].mxu0 %v987
      %v1918 = vpop.f32.mrb[0].mxu0
      %v1919 = vadd.f32 %v1694, %v1918
      %v1920 = vpop.f32.mrb[0].mxu0
      %1921 = vmatprep.mubr.f32.mxu0 %v997
      %1922 = vmatmul.mubr.f32.gmra.mrb[0].mxu0 %v996
      %v1923 = vpop.f32.mrb[0].mxu0
      %v1924 = vadd.f32 %v1699, %v1923
      %v1925 = vpop.f32.mrb[0].mxu0
      %1926 = vmatprep.mubr.f32.mxu0 %v1006
      %1927 = vmatmul.mubr.f32.gmra.mrb[0].mxu0 %v1005
      %v1928 = vpop.f32.mrb[0].mxu0
      %v1929 = vadd.f32 %v1704, %v1928
      %v1930 = vpop.f32.mrb[0].mxu0
      %1931 = vmatprep.mubr.f32.mxu0 %v1015
      %1932 = vmatmul.mubr.f32.gmra.mrb[0].mxu0 %v1014
      %v1933 = vpop.f32.mrb[0].mxu0
      %v1934 = vadd.f32 %v1709, %v1933
      %v1935 = vpop.f32.mrb[0].mxu0
      %1936 = vmatprep.mubr.f32.mxu0 %v1024
      %1937 = vmatmul.mubr.f32.gmra.mrb[0].mxu0 %v1023
      %v1938 = vpop.f32.mrb[0].mxu0
      %v1939 = vadd.f32 %v1714, %v1938
      %v1940 = vpop.f32.mrb[0].mxu0
      %1941 = vmatprep.mubr.f32.mxu0 %v1033
      %1942 = vmatmul.mubr.f32.gmra.mrb[0].mxu0 %v1032
      %v1943 = vpop.f32.mrb[0].mxu0
      %v1944 = vadd.f32 %v1719, %v1943
      %v1945 = vpop.f32.mrb[0].mxu0
      %1946 = vmatprep.mubr.f32.mxu0 %v1042
      %1947 = vmatmul.mubr.f32.gmra.mrb[0].mxu0 %v1041
      %v1948 = vpop.f32.mrb[0].mxu0
      %v1949 = vadd.f32 %v1724, %v1948
      %v1950 = vpop.f32.mrb[0].mxu0
      %1951 = vmatprep.mubr.f32.mxu0 %v1051
      %1952 = vmatmul.mubr.f32.gmra.mrb[0].mxu0 %v1050
      %v1953 = vpop.f32.mrb[0].mxu0
      %v1954 = vadd.f32 %v1729, %v1953
      %v1955 = vpop.f32.mrb[0].mxu0
      %1956 = vmatprep.mubr.f32.mxu0 %v1060
      %1957 = vmatmul.mubr.f32.gmra.mrb[0].mxu0 %v1059
      %v1958 = vpop.f32.mrb[0].mxu0
      %v1959 = vadd.f32 %v1734, %v1958
      %v1960 = vpop.f32.mrb[0].mxu0
      %1961 = vmatprep.mubr.f32.mxu0 %v1069
      %1962 = vmatmul.mubr.f32.gmra.mrb[0].mxu0 %v1068
      %v1963 = vpop.f32.mrb[0].mxu0
      %v1964 = vadd.f32 %v1739, %v1963
      %v1965 = vpop.f32.mrb[0].mxu0
      %1966 = vmatprep.mubr.f32.mxu0 %v1078
      %1967 = vmatmul.mubr.f32.gmra.mrb[0].mxu0 %v1077
      %v1968 = vpop.f32.mrb[0].mxu0
      %v1969 = vadd.f32 %v1744, %v1968
      %v1970 = vpop.f32.mrb[0].mxu0
      %1971 = vmatprep.mubr.f32.mxu0 %v1087
      %1972 = vmatmul.mubr.f32.gmra.mrb[0].mxu0 %v1086
      %v1973 = vpop.f32.mrb[0].mxu0
      %v1974 = vadd.f32 %v1749, %v1973
      %v1975 = vpop.f32.mrb[0].mxu0
      %1976 = vmatprep.mubr.f32.mxu0 %v1096
      %1977 = vmatmul.mubr.f32.gmra.mrb[0].mxu0 %v1095
      %v1978 = vpop.f32.mrb[0].mxu0
      %v1979 = vadd.f32 %v1754, %v1978
      %v1980 = vpop.f32.mrb[0].mxu0
      %1981 = vmatprep.mubr.f32.mxu0 %v1105
      %1982 = vmatmul.mubr.f32.gmra.mrb[0].mxu0 %v1104
      %v1983 = vpop.f32.mrb[0].mxu0
      %v1984 = vadd.f32 %v1759, %v1983
      %v1985 = vpop.f32.mrb[0].mxu0
      %1986 = vmatprep.mubr.f32.mxu0 %v1114
      %1987 = vmatmul.mubr.f32.gmra.mrb[0].mxu0 %v1113
      %v1988 = vpop.f32.mrb[0].mxu0
      %v1989 = vadd.f32 %v1764, %v1988
      %v1990 = vpop.f32.mrb[0].mxu0
      %1991 = vmatprep.mubr.f32.mxu0 %v1123
      %1992 = vmatmul.mubr.f32.gmra.mrb[0].mxu0 %v1122
      %v1993 = vpop.f32.mrb[0].mxu0
      %v1994 = vadd.f32 %v1769, %v1993
      %v1995 = vpop.f32.mrb[0].mxu0
      %1996 = vmatprep.mubr.f32.mxu0 %v1132
      %1997 = vmatmul.mubr.f32.gmra.mrb[0].mxu0 %v1131
      %v1998 = vpop.f32.mrb[0].mxu0
      %v1999 = vadd.f32 %v1774, %v1998
      %v2000 = vpop.f32.mrb[0].mxu0
      %2001 = vmatprep.mubr.f32.mxu0 %v1141
      %2002 = vmatmul.mubr.f32.gmra.mrb[0].mxu0 %v1140
      %v2003 = vpop.f32.mrb[0].mxu0
      %v2004 = vadd.f32 %v1779, %v2003
      %v2005 = vpop.f32.mrb[0].mxu0
      %2006 = vmatprep.mubr.f32.mxu0 %v1150
      %2007 = vmatmul.mubr.f32.gmra.mrb[0].mxu0 %v1149
      %v2008 = vpop.f32.mrb[0].mxu0
      %v2009 = vadd.f32 %v1784, %v2008
      %v2010 = vpop.f32.mrb[0].mxu0
      %2011 = vmatprep.mubr.f32.mxu0 %v1159
      %2012 = vmatmul.mubr.f32.gmra.mrb[0].mxu0 %v1158
      %v2013 = vpop.f32.mrb[0].mxu0
      %v2014 = vadd.f32 %v1789, %v2013
      %v2015 = vpop.f32.mrb[0].mxu0
      %2016 = vmatprep.mubr.f32.mxu0 %v1168
      %2017 = vmatmul.mubr.f32.gmra.mrb[0].mxu0 %v1167
      %v2018 = vpop.f32.mrb[0].mxu0
      %v2019 = vadd.f32 %v1794, %v2018
      %v2020 = vpop.f32.mrb[0].mxu0
      %2021 = vmatprep.mubr.f32.mxu0 %v1177
      %2022 = vmatmul.mubr.f32.gmra.mrb[0].mxu0 %v1176
      %v2023 = vpop.f32.mrb[0].mxu0
      %v2024 = vadd.f32 %v1799, %v2023
      %v2025 = vpop.f32.mrb[0].mxu0
      %2026 = vmatprep.mubr.f32.mxu0 %v1186
      %2027 = vmatmul.mubr.f32.gmra.mrb[0].mxu0 %v1185
      %v2028 = vpop.f32.mrb[0].mxu0
      %v2029 = vadd.f32 %v1804, %v2028
      %v2030 = vpop.f32.mrb[0].mxu0
      %2031 = vmatprep.mubr.f32.mxu0 %v1195
      %2032 = vmatmul.mubr.f32.gmra.mrb[0].mxu0 %v1194
      %v2033 = vpop.f32.mrb[0].mxu0
      %v2034 = vadd.f32 %v1809, %v2033
      %v2035 = vpop.f32.mrb[0].mxu0
      %2036 = vmatprep.mubr.f32.mxu0 %v1204
      %2037 = vmatmul.mubr.f32.gmra.mrb[0].mxu0 %v1203
      %v2038 = vpop.f32.mrb[0].mxu0
      %v2039 = vadd.f32 %v1814, %v2038
      %v2040 = vpop.f32.mrb[0].mxu0
      %2041 = vmatprep.mubr.f32.mxu0 %v1213
      %2042 = vmatmul.mubr.f32.gmra.mrb[0].mxu0 %v1212
      %v2043 = vpop.f32.mrb[0].mxu0
      %v2044 = vadd.f32 %v1819, %v2043
      %v2045 = vpop.f32.mrb[0].mxu0
      %2046 = vmatprep.mubr.f32.mxu0 %v1222
      %2047 = vmatmul.mubr.f32.gmra.mrb[0].mxu0 %v1221
      %v2048 = vpop.f32.mrb[0].mxu0
      %v2049 = vadd.f32 %v1824, %v2048
      %v2050 = vpop.f32.mrb[0].mxu0
      %2051 = vdwg.mxu0
      %2052 = vmatprep.subr.mxu0 0.0
      %2053 = vmatpush1.msra.mxu0 %v1322
      %2054 = vmatprep.subr.mxu0 0.0
      %2055 = vmatpush1.msra.mxu0 %v1323
      %2056 = vmatprep.subr.mxu0 0.0
      %2057 = vmatpush1.msra.mxu0 %v1324
      %2058 = vmatprep.subr.mxu0 0.0
      %2059 = vmatpush1.msra.mxu0 %v1325
      %2060 = vmatprep.subr.mxu0 0.0
      %2061 = vmatpush1.msra.mxu0 %v1326
      %2062 = vmatprep.subr.mxu0 0.0
      %2063 = vmatpush1.msra.mxu0 %v1327
      %2064 = vmatprep.subr.mxu0 0.0
      %2065 = vmatpush1.msra.mxu0 %v1328
      %2066 = vmatprep.subr.mxu0 0.0
      %2067 = vmatpush1.msra.mxu0 %v1329
      %2068 = vmatprep.subr.mxu0 0.0
      %2069 = vmatpush1.msra.mxu0 %v1330
      %2070 = vmatprep.subr.mxu0 0.0
      %2071 = vmatpush1.msra.mxu0 %v1331
      %2072 = vmatprep.subr.mxu0 0.0
      %2073 = vmatpush1.msra.mxu0 %v1332
      %2074 = vmatprep.subr.mxu0 0.0
      %2075 = vmatpush1.msra.mxu0 %v1333
      %2076 = vmatprep.subr.mxu0 0.0
      %2077 = vmatpush1.msra.mxu0 %v1334
      %2078 = vmatprep.subr.mxu0 0.0
      %2079 = vmatpush1.msra.mxu0 %v1335
      %2080 = vmatprep.subr.mxu0 0.0
      %2081 = vmatpush1.msra.mxu0 %v1336
      %2082 = vmatprep.subr.mxu0 0.0
      %2083 = vmatpush1.msra.mxu0 %v1337
      %2084 = vmatprep.subr.mxu0 0.0
      %2085 = vmatpush1.msra.mxu0 %v1338
      %2086 = vmatprep.subr.mxu0 0.0
      %2087 = vmatpush1.msra.mxu0 %v1339
      %2088 = vmatprep.subr.mxu0 0.0
      %2089 = vmatpush1.msra.mxu0 %v1340
      %2090 = vmatprep.subr.mxu0 0.0
      %2091 = vmatpush1.msra.mxu0 %v1341
      %2092 = vmatprep.subr.mxu0 0.0
      %2093 = vmatpush1.msra.mxu0 %v1342
      %2094 = vmatprep.subr.mxu0 0.0
      %2095 = vmatpush1.msra.mxu0 %v1343
      %2096 = vmatprep.subr.mxu0 0.0
      %2097 = vmatpush1.msra.mxu0 %v1344
      %2098 = vmatprep.subr.mxu0 0.0
      %2099 = vmatpush1.msra.mxu0 %v1345
      %2100 = vmatprep.subr.mxu0 0.0
      %2101 = vmatpush1.msra.mxu0 %v1346
      %2102 = vmatprep.subr.mxu0 0.0
      %2103 = vmatpush1.msra.mxu0 %v1347
      %2104 = vmatprep.subr.mxu0 0.0
      %2105 = vmatpush1.msra.mxu0 %v1348
      %2106 = vmatprep.subr.mxu0 0.0
      %2107 = vmatpush1.msra.mxu0 %v1349
      %2108 = vmatprep.subr.mxu0 0.0
      %2109 = vmatpush1.msra.mxu0 %v1350
      %2110 = vmatprep.subr.mxu0 0.0
      %2111 = vmatpush1.msra.mxu0 %v1351
      %2112 = vmatprep.subr.mxu0 0.0
      %2113 = vmatpush1.msra.mxu0 %v1352
      %2114 = vmatprep.subr.mxu0 0.0
      %2115 = vmatpush1.msra.mxu0 %v1353
      %2116 = vmatprep.mubr.f32.mxu0 %v945
      %2117 = vmatmul.mubr.f32.gmra.mrb[0].mxu0 %v944
      %v2118 = vpop.f32.mrb[0].mxu0
      %v2119 = vadd.f32 %v1894, %v2118
      %v2120 = vpop.f32.mrb[0].mxu0
      %2121 = vmatprep.mubr.f32.mxu0 %v954
      %2122 = vmatmul.mubr.f32.gmra.mrb[0].mxu0 %v953
      %v2123 = vpop.f32.mrb[0].mxu0
      %v2124 = vadd.f32 %v1899, %v2123
      %v2125 = vpop.f32.mrb[0].mxu0
      %2126 = vmatprep.mubr.f32.mxu0 %v963
      %2127 = vmatmul.mubr.f32.gmra.mrb[0].mxu0 %v962
      %v2128 = vpop.f32.mrb[0].mxu0
      %v2129 = vadd.f32 %v1904, %v2128
      %v2130 = vpop.f32.mrb[0].mxu0
      %2131 = vmatprep.mubr.f32.mxu0 %v972
      %2132 = vmatmul.mubr.f32.gmra.mrb[0].mxu0 %v971
      %v2133 = vpop.f32.mrb[0].mxu0
      %v2134 = vadd.f32 %v1909, %v2133
      %v2135 = vpop.f32.mrb[0].mxu0
      %2136 = vmatprep.mubr.f32.mxu0 %v981
      %2137 = vmatmul.mubr.f32.gmra.mrb[0].mxu0 %v980
      %v2138 = vpop.f32.mrb[0].mxu0
      %v2139 = vadd.f32 %v1914, %v2138
      %v2140 = vpop.f32.mrb[0].mxu0
      %2141 = vmatprep.mubr.f32.mxu0 %v990
      %2142 = vmatmul.mubr.f32.gmra.mrb[0].mxu0 %v989
      %v2143 = vpop.f32.mrb[0].mxu0
      %v2144 = vadd.f32 %v1919, %v2143
      %v2145 = vpop.f32.mrb[0].mxu0
      %2146 = vmatprep.mubr.f32.mxu0 %v999
      %2147 = vmatmul.mubr.f32.gmra.mrb[0].mxu0 %v998
      %v2148 = vpop.f32.mrb[0].mxu0
      %v2149 = vadd.f32 %v1924, %v2148
      %v2150 = vpop.f32.mrb[0].mxu0
      %2151 = vmatprep.mubr.f32.mxu0 %v1008
      %2152 = vmatmul.mubr.f32.gmra.mrb[0].mxu0 %v1007
      %v2153 = vpop.f32.mrb[0].mxu0
      %v2154 = vadd.f32 %v1929, %v2153
      %v2155 = vpop.f32.mrb[0].mxu0
      %2156 = vmatprep.mubr.f32.mxu0 %v1017
      %2157 = vmatmul.mubr.f32.gmra.mrb[0].mxu0 %v1016
      %v2158 = vpop.f32.mrb[0].mxu0
      %v2159 = vadd.f32 %v1934, %v2158
      %v2160 = vpop.f32.mrb[0].mxu0
      %2161 = vmatprep.mubr.f32.mxu0 %v1026
      %2162 = vmatmul.mubr.f32.gmra.mrb[0].mxu0 %v1025
      %v2163 = vpop.f32.mrb[0].mxu0
      %v2164 = vadd.f32 %v1939, %v2163
      %v2165 = vpop.f32.mrb[0].mxu0
      %2166 = vmatprep.mubr.f32.mxu0 %v1035
      %2167 = vmatmul.mubr.f32.gmra.mrb[0].mxu0 %v1034
      %v2168 = vpop.f32.mrb[0].mxu0
      %v2169 = vadd.f32 %v1944, %v2168
      %v2170 = vpop.f32.mrb[0].mxu0
      %2171 = vmatprep.mubr.f32.mxu0 %v1044
      %2172 = vmatmul.mubr.f32.gmra.mrb[0].mxu0 %v1043
      %v2173 = vpop.f32.mrb[0].mxu0
      %v2174 = vadd.f32 %v1949, %v2173
      %v2175 = vpop.f32.mrb[0].mxu0
      %2176 = vmatprep.mubr.f32.mxu0 %v1053
      %2177 = vmatmul.mubr.f32.gmra.mrb[0].mxu0 %v1052
      %v2178 = vpop.f32.mrb[0].mxu0
      %v2179 = vadd.f32 %v1954, %v2178
      %v2180 = vpop.f32.mrb[0].mxu0
      %2181 = vmatprep.mubr.f32.mxu0 %v1062
      %2182 = vmatmul.mubr.f32.gmra.mrb[0].mxu0 %v1061
      %v2183 = vpop.f32.mrb[0].mxu0
      %v2184 = vadd.f32 %v1959, %v2183
      %v2185 = vpop.f32.mrb[0].mxu0
      %2186 = vmatprep.mubr.f32.mxu0 %v1071
      %2187 = vmatmul.mubr.f32.gmra.mrb[0].mxu0 %v1070
      %v2188 = vpop.f32.mrb[0].mxu0
      %v2189 = vadd.f32 %v1964, %v2188
      %v2190 = vpop.f32.mrb[0].mxu0
      %2191 = vmatprep.mubr.f32.mxu0 %v1080
      %2192 = vmatmul.mubr.f32.gmra.mrb[0].mxu0 %v1079
      %v2193 = vpop.f32.mrb[0].mxu0
      %v2194 = vadd.f32 %v1969, %v2193
      %v2195 = vpop.f32.mrb[0].mxu0
      %2196 = vmatprep.mubr.f32.mxu0 %v1089
      %2197 = vmatmul.mubr.f32.gmra.mrb[0].mxu0 %v1088
      %v2198 = vpop.f32.mrb[0].mxu0
      %v2199 = vadd.f32 %v1974, %v2198
      %v2200 = vpop.f32.mrb[0].mxu0
      %2201 = vmatprep.mubr.f32.mxu0 %v1098
      %2202 = vmatmul.mubr.f32.gmra.mrb[0].mxu0 %v1097
      %v2203 = vpop.f32.mrb[0].mxu0
      %v2204 = vadd.f32 %v1979, %v2203
      %v2205 = vpop.f32.mrb[0].mxu0
      %2206 = vmatprep.mubr.f32.mxu0 %v1107
      %2207 = vmatmul.mubr.f32.gmra.mrb[0].mxu0 %v1106
      %v2208 = vpop.f32.mrb[0].mxu0
      %v2209 = vadd.f32 %v1984, %v2208
      %v2210 = vpop.f32.mrb[0].mxu0
      %2211 = vmatprep.mubr.f32.mxu0 %v1116
      %2212 = vmatmul.mubr.f32.gmra.mrb[0].mxu0 %v1115
      %v2213 = vpop.f32.mrb[0].mxu0
      %v2214 = vadd.f32 %v1989, %v2213
      %v2215 = vpop.f32.mrb[0].mxu0
      %2216 = vmatprep.mubr.f32.mxu0 %v1125
      %2217 = vmatmul.mubr.f32.gmra.mrb[0].mxu0 %v1124
      %v2218 = vpop.f32.mrb[0].mxu0
      %v2219 = vadd.f32 %v1994, %v2218
      %v2220 = vpop.f32.mrb[0].mxu0
      %2221 = vmatprep.mubr.f32.mxu0 %v1134
      %2222 = vmatmul.mubr.f32.gmra.mrb[0].mxu0 %v1133
      %v2223 = vpop.f32.mrb[0].mxu0
      %v2224 = vadd.f32 %v1999, %v2223
      %v2225 = vpop.f32.mrb[0].mxu0
      %2226 = vmatprep.mubr.f32.mxu0 %v1143
      %2227 = vmatmul.mubr.f32.gmra.mrb[0].mxu0 %v1142
      %v2228 = vpop.f32.mrb[0].mxu0
      %v2229 = vadd.f32 %v2004, %v2228
      %v2230 = vpop.f32.mrb[0].mxu0
      %2231 = vmatprep.mubr.f32.mxu0 %v1152
      %2232 = vmatmul.mubr.f32.gmra.mrb[0].mxu0 %v1151
      %v2233 = vpop.f32.mrb[0].mxu0
      %v2234 = vadd.f32 %v2009, %v2233
      %v2235 = vpop.f32.mrb[0].mxu0
      %2236 = vmatprep.mubr.f32.mxu0 %v1161
      %2237 = vmatmul.mubr.f32.gmra.mrb[0].mxu0 %v1160
      %v2238 = vpop.f32.mrb[0].mxu0
      %v2239 = vadd.f32 %v2014, %v2238
      %v2240 = vpop.f32.mrb[0].mxu0
      %2241 = vmatprep.mubr.f32.mxu0 %v1170
      %2242 = vmatmul.mubr.f32.gmra.mrb[0].mxu0 %v1169
      %v2243 = vpop.f32.mrb[0].mxu0
      %v2244 = vadd.f32 %v2019, %v2243
      %v2245 = vpop.f32.mrb[0].mxu0
      %2246 = vmatprep.mubr.f32.mxu0 %v1179
      %2247 = vmatmul.mubr.f32.gmra.mrb[0].mxu0 %v1178
      %v2248 = vpop.f32.mrb[0].mxu0
      %v2249 = vadd.f32 %v2024, %v2248
      %v2250 = vpop.f32.mrb[0].mxu0
      %2251 = vmatprep.mubr.f32.mxu0 %v1188
      %2252 = vmatmul.mubr.f32.gmra.mrb[0].mxu0 %v1187
      %v2253 = vpop.f32.mrb[0].mxu0
      %v2254 = vadd.f32 %v2029, %v2253
      %v2255 = vpop.f32.mrb[0].mxu0
      %2256 = vmatprep.mubr.f32.mxu0 %v1197
      %2257 = vmatmul.mubr.f32.gmra.mrb[0].mxu0 %v1196
      %v2258 = vpop.f32.mrb[0].mxu0
      %v2259 = vadd.f32 %v2034, %v2258
      %v2260 = vpop.f32.mrb[0].mxu0
      %2261 = vmatprep.mubr.f32.mxu0 %v1206
      %2262 = vmatmul.mubr.f32.gmra.mrb[0].mxu0 %v1205
      %v2263 = vpop.f32.mrb[0].mxu0
      %v2264 = vadd.f32 %v2039, %v2263
      %v2265 = vpop.f32.mrb[0].mxu0
      %2266 = vmatprep.mubr.f32.mxu0 %v1215
      %2267 = vmatmul.mubr.f32.gmra.mrb[0].mxu0 %v1214
      %v2268 = vpop.f32.mrb[0].mxu0
      %v2269 = vadd.f32 %v2044, %v2268
      %v2270 = vpop.f32.mrb[0].mxu0
      %2271 = vmatprep.mubr.f32.mxu0 %v1224
      %2272 = vmatmul.mubr.f32.gmra.mrb[0].mxu0 %v1223
      %v2273 = vpop.f32.mrb[0].mxu0
      %v2274 = vadd.f32 %v2049, %v2273
      %v2275 = vpop.f32.mrb[0].mxu0
      %2276 = vdwg.mxu0
      %2277 = vmatprep.subr.mxu0 0.0
      %2278 = vmatpush1.msra.mxu0 %v1354
      %2279 = vmatprep.subr.mxu0 0.0
      %2280 = vmatpush1.msra.mxu0 %v1355
      %2281 = vmatprep.subr.mxu0 0.0
      %2282 = vmatpush1.msra.mxu0 %v1356
      %2283 = vmatprep.subr.mxu0 0.0
      %2284 = vmatpush1.msra.mxu0 %v1357
      %2285 = vmatprep.subr.mxu0 0.0
      %2286 = vmatpush1.msra.mxu0 %v1358
      %2287 = vmatprep.subr.mxu0 0.0
      %2288 = vmatpush1.msra.mxu0 %v1359
      %2289 = vmatprep.subr.mxu0 0.0
      %2290 = vmatpush1.msra.mxu0 %v1360
      %2291 = vmatprep.subr.mxu0 0.0
      %2292 = vmatpush1.msra.mxu0 %v1361
      %2293 = vmatprep.subr.mxu0 0.0
      %2294 = vmatpush1.msra.mxu0 %v1362
      %2295 = vmatprep.subr.mxu0 0.0
      %2296 = vmatpush1.msra.mxu0 %v1363
      %2297 = vmatprep.subr.mxu0 0.0
      %2298 = vmatpush1.msra.mxu0 %v1364
      %2299 = vmatprep.subr.mxu0 0.0
      %2300 = vmatpush1.msra.mxu0 %v1365
      %2301 = vmatprep.subr.mxu0 0.0
      %2302 = vmatpush1.msra.mxu0 %v1366
      %2303 = vmatprep.subr.mxu0 0.0
      %2304 = vmatpush1.msra.mxu0 %v1367
      %2305 = vmatprep.subr.mxu0 0.0
      %2306 = vmatpush1.msra.mxu0 %v1368
      %2307 = vmatprep.subr.mxu0 0.0
      %2308 = vmatpush1.msra.mxu0 %v1369
      %2309 = vmatprep.subr.mxu0 0.0
      %2310 = vmatpush1.msra.mxu0 0.0
      %2311 = vmatprep.subr.mxu0 0.0
      %2312 = vmatpush1.msra.mxu0 0.0
      %2313 = vmatprep.subr.mxu0 0.0
      %2314 = vmatpush1.msra.mxu0 0.0
      %2315 = vmatprep.subr.mxu0 0.0
      %2316 = vmatpush1.msra.mxu0 0.0
      %2317 = vmatprep.subr.mxu0 0.0
      %2318 = vmatpush1.msra.mxu0 0.0
      %2319 = vmatprep.subr.mxu0 0.0
      %2320 = vmatpush1.msra.mxu0 0.0
      %2321 = vmatprep.subr.mxu0 0.0
      %2322 = vmatpush1.msra.mxu0 0.0
      %2323 = vmatprep.subr.mxu0 0.0
      %2324 = vmatpush1.msra.mxu0 0.0
      %2325 = vmatprep.subr.mxu0 0.0
      %2326 = vmatpush1.msra.mxu0 0.0
      %2327 = vmatprep.subr.mxu0 0.0
      %2328 = vmatpush1.msra.mxu0 0.0
      %2329 = vmatprep.subr.mxu0 0.0
      %2330 = vmatpush1.msra.mxu0 0.0
      %2331 = vmatprep.subr.mxu0 0.0
      %2332 = vmatpush1.msra.mxu0 0.0
      %2333 = vmatprep.subr.mxu0 0.0
      %2334 = vmatpush1.msra.mxu0 0.0
      %2335 = vmatprep.subr.mxu0 0.0
      %2336 = vmatpush1.msra.mxu0 0.0
      %2337 = vmatprep.subr.mxu0 0.0
      %2338 = vmatpush1.msra.mxu0 0.0
      %2339 = vmatprep.subr.mxu0 0.0
      %2340 = vmatpush1.msra.mxu0 0.0
      %2341 = vmatprep.mubr.f32.mxu0 0.0
      %2342 = vmatmul.mubr.f32.gmra.mrb[0].mxu0 %v946
      %v2343 = vpop.f32.mrb[0].mxu0
      %v2344 = vadd.f32 %v2119, %v2343
      %v2345 = vpop.f32.mrb[0].mxu0
      %2346 = vmatprep.mubr.f32.mxu0 0.0
      %2347 = vmatmul.mubr.f32.gmra.mrb[0].mxu0 %v955
      %v2348 = vpop.f32.mrb[0].mxu0
      %v2349 = vadd.f32 %v2124, %v2348
      %v2350 = vpop.f32.mrb[0].mxu0
      %2351 = vmatprep.mubr.f32.mxu0 0.0
      %2352 = vmatmul.mubr.f32.gmra.mrb[0].mxu0 %v964
      %v2353 = vpop.f32.mrb[0].mxu0
      %v2354 = vadd.f32 %v2129, %v2353
      %v2355 = vpop.f32.mrb[0].mxu0
      %2356 = vmatprep.mubr.f32.mxu0 0.0
      %2357 = vmatmul.mubr.f32.gmra.mrb[0].mxu0 %v973
      %v2358 = vpop.f32.mrb[0].mxu0
      %v2359 = vadd.f32 %v2134, %v2358
      %v2360 = vpop.f32.mrb[0].mxu0
      %2361 = vmatprep.mubr.f32.mxu0 0.0
      %2362 = vmatmul.mubr.f32.gmra.mrb[0].mxu0 %v982
      %v2363 = vpop.f32.mrb[0].mxu0
      %v2364 = vadd.f32 %v2139, %v2363
      %v2365 = vpop.f32.mrb[0].mxu0
      %2366 = vmatprep.mubr.f32.mxu0 0.0
      %2367 = vmatmul.mubr.f32.gmra.mrb[0].mxu0 %v991
      %v2368 = vpop.f32.mrb[0].mxu0
      %v2369 = vadd.f32 %v2144, %v2368
      %v2370 = vpop.f32.mrb[0].mxu0
      %2371 = vmatprep.mubr.f32.mxu0 0.0
      %2372 = vmatmul.mubr.f32.gmra.mrb[0].mxu0 %v1000
      %v2373 = vpop.f32.mrb[0].mxu0
      %v2374 = vadd.f32 %v2149, %v2373
      %v2375 = vpop.f32.mrb[0].mxu0
      %2376 = vmatprep.mubr.f32.mxu0 0.0
      %2377 = vmatmul.mubr.f32.gmra.mrb[0].mxu0 %v1009
      %v2378 = vpop.f32.mrb[0].mxu0
      %v2379 = vadd.f32 %v2154, %v2378
      %v2380 = vpop.f32.mrb[0].mxu0
      %2381 = vmatprep.mubr.f32.mxu0 0.0
      %2382 = vmatmul.mubr.f32.gmra.mrb[0].mxu0 %v1018
      %v2383 = vpop.f32.mrb[0].mxu0
      %v2384 = vadd.f32 %v2159, %v2383
      %v2385 = vpop.f32.mrb[0].mxu0
      %2386 = vmatprep.mubr.f32.mxu0 0.0
      %2387 = vmatmul.mubr.f32.gmra.mrb[0].mxu0 %v1027
      %v2388 = vpop.f32.mrb[0].mxu0
      %v2389 = vadd.f32 %v2164, %v2388
      %v2390 = vpop.f32.mrb[0].mxu0
      %2391 = vmatprep.mubr.f32.mxu0 0.0
      %2392 = vmatmul.mubr.f32.gmra.mrb[0].mxu0 %v1036
      %v2393 = vpop.f32.mrb[0].mxu0
      %v2394 = vadd.f32 %v2169, %v2393
      %v2395 = vpop.f32.mrb[0].mxu0
      %2396 = vmatprep.mubr.f32.mxu0 0.0
      %2397 = vmatmul.mubr.f32.gmra.mrb[0].mxu0 %v1045
      %v2398 = vpop.f32.mrb[0].mxu0
      %v2399 = vadd.f32 %v2174, %v2398
      %v2400 = vpop.f32.mrb[0].mxu0
      %2401 = vmatprep.mubr.f32.mxu0 0.0
      %2402 = vmatmul.mubr.f32.gmra.mrb[0].mxu0 %v1054
      %v2403 = vpop.f32.mrb[0].mxu0
      %v2404 = vadd.f32 %v2179, %v2403
      %v2405 = vpop.f32.mrb[0].mxu0
      %2406 = vmatprep.mubr.f32.mxu0 0.0
      %2407 = vmatmul.mubr.f32.gmra.mrb[0].mxu0 %v1063
      %v2408 = vpop.f32.mrb[0].mxu0
      %v2409 = vadd.f32 %v2184, %v2408
      %v2410 = vpop.f32.mrb[0].mxu0
      %2411 = vmatprep.mubr.f32.mxu0 0.0
      %2412 = vmatmul.mubr.f32.gmra.mrb[0].mxu0 %v1072
      %v2413 = vpop.f32.mrb[0].mxu0
      %v2414 = vadd.f32 %v2189, %v2413
      %v2415 = vpop.f32.mrb[0].mxu0
      %2416 = vmatprep.mubr.f32.mxu0 0.0
      %2417 = vmatmul.mubr.f32.gmra.mrb[0].mxu0 %v1081
      %v2418 = vpop.f32.mrb[0].mxu0
      %v2419 = vadd.f32 %v2194, %v2418
      %v2420 = vpop.f32.mrb[0].mxu0
      %2421 = vmatprep.mubr.f32.mxu0 0.0
      %2422 = vmatmul.mubr.f32.gmra.mrb[0].mxu0 %v1090
      %v2423 = vpop.f32.mrb[0].mxu0
      %v2424 = vadd.f32 %v2199, %v2423
      %v2425 = vpop.f32.mrb[0].mxu0
      %2426 = vmatprep.mubr.f32.mxu0 0.0
      %2427 = vmatmul.mubr.f32.gmra.mrb[0].mxu0 %v1099
      %v2428 = vpop.f32.mrb[0].mxu0
      %v2429 = vadd.f32 %v2204, %v2428
      %v2430 = vpop.f32.mrb[0].mxu0
      %2431 = vmatprep.mubr.f32.mxu0 0.0
      %2432 = vmatmul.mubr.f32.gmra.mrb[0].mxu0 %v1108
      %v2433 = vpop.f32.mrb[0].mxu0
      %v2434 = vadd.f32 %v2209, %v2433
      %v2435 = vpop.f32.mrb[0].mxu0
      %2436 = vmatprep.mubr.f32.mxu0 0.0
      %2437 = vmatmul.mubr.f32.gmra.mrb[0].mxu0 %v1117
      %v2438 = vpop.f32.mrb[0].mxu0
      %v2439 = vadd.f32 %v2214, %v2438
      %v2440 = vpop.f32.mrb[0].mxu0
      %2441 = vmatprep.mubr.f32.mxu0 0.0
      %2442 = vmatmul.mubr.f32.gmra.mrb[0].mxu0 %v1126
      %v2443 = vpop.f32.mrb[0].mxu0
      %v2444 = vadd.f32 %v2219, %v2443
      %v2445 = vpop.f32.mrb[0].mxu0
      %2446 = vmatprep.mubr.f32.mxu0 0.0
      %2447 = vmatmul.mubr.f32.gmra.mrb[0].mxu0 %v1135
      %v2448 = vpop.f32.mrb[0].mxu0
      %v2449 = vadd.f32 %v2224, %v2448
      %v2450 = vpop.f32.mrb[0].mxu0
      %2451 = vmatprep.mubr.f32.mxu0 0.0
      %2452 = vmatmul.mubr.f32.gmra.mrb[0].mxu0 %v1144
      %v2453 = vpop.f32.mrb[0].mxu0
      %v2454 = vadd.f32 %v2229, %v2453
      %v2455 = vpop.f32.mrb[0].mxu0
      %2456 = vmatprep.mubr.f32.mxu0 0.0
      %2457 = vmatmul.mubr.f32.gmra.mrb[0].mxu0 %v1153
      %v2458 = vpop.f32.mrb[0].mxu0
      %v2459 = vadd.f32 %v2234, %v2458
      %v2460 = vpop.f32.mrb[0].mxu0
      %2461 = vmatprep.mubr.f32.mxu0 0.0
      %2462 = vmatmul.mubr.f32.gmra.mrb[0].mxu0 %v1162
      %v2463 = vpop.f32.mrb[0].mxu0
      %v2464 = vadd.f32 %v2239, %v2463
      %v2465 = vpop.f32.mrb[0].mxu0
      %2466 = vmatprep.mubr.f32.mxu0 0.0
      %2467 = vmatmul.mubr.f32.gmra.mrb[0].mxu0 %v1171
      %v2468 = vpop.f32.mrb[0].mxu0
      %v2469 = vadd.f32 %v2244, %v2468
      %v2470 = vpop.f32.mrb[0].mxu0
      %2471 = vmatprep.mubr.f32.mxu0 0.0
      %2472 = vmatmul.mubr.f32.gmra.mrb[0].mxu0 %v1180
      %v2473 = vpop.f32.mrb[0].mxu0
      %v2474 = vadd.f32 %v2249, %v2473
      %v2475 = vpop.f32.mrb[0].mxu0
      %2476 = vmatprep.mubr.f32.mxu0 0.0
      %2477 = vmatmul.mubr.f32.gmra.mrb[0].mxu0 %v1189
      %v2478 = vpop.f32.mrb[0].mxu0
      %v2479 = vadd.f32 %v2254, %v2478
      %v2480 = vpop.f32.mrb[0].mxu0
      %2481 = vmatprep.mubr.f32.mxu0 0.0
      %2482 = vmatmul.mubr.f32.gmra.mrb[0].mxu0 %v1198
      %v2483 = vpop.f32.mrb[0].mxu0
      %v2484 = vadd.f32 %v2259, %v2483
      %v2485 = vpop.f32.mrb[0].mxu0
      %2486 = vmatprep.mubr.f32.mxu0 0.0
      %2487 = vmatmul.mubr.f32.gmra.mrb[0].mxu0 %v1207
      %v2488 = vpop.f32.mrb[0].mxu0
      %v2489 = vadd.f32 %v2264, %v2488
      %v2490 = vpop.f32.mrb[0].mxu0
      %2491 = vmatprep.mubr.f32.mxu0 0.0
      %2492 = vmatmul.mubr.f32.gmra.mrb[0].mxu0 %v1216
      %v2493 = vpop.f32.mrb[0].mxu0
      %v2494 = vadd.f32 %v2269, %v2493
      %v2495 = vpop.f32.mrb[0].mxu0
      %2496 = vmatprep.mubr.f32.mxu0 0.0
      %2497 = vmatmul.mubr.f32.gmra.mrb[0].mxu0 %v1225
      %v2498 = vpop.f32.mrb[0].mxu0
      %v2499 = vadd.f32 %v2274, %v2498
      %v2500 = vpop.f32.mrb[0].mxu0
      %2501 = vdwg.mxu0
      %2502 = vst [vmem:[%s286] sm:$0xff] %v2344
      %2503 = vst [vmem:[%s286 + $0x8] sm:$0xff] %v2349
      %2504 = vst [vmem:[%s286 + $0x10] sm:$0xff] %v2354
      %2505 = vst [vmem:[%s286 + $0x18] sm:$0xff] %v2359
      %2506 = vst [vmem:[%s286 + $0x20] sm:$0xff] %v2364
      %2507 = vst [vmem:[%s286 + $0x28] sm:$0xff] %v2369
      %2508 = vst [vmem:[%s286 + $0x30] sm:$0xff] %v2374
      %2509 = vst [vmem:[%s286 + $0x38] sm:$0xff] %v2379
      %2510 = vst [vmem:[%s286 + $0x40] sm:$0xff] %v2384
      %2511 = vst [vmem:[%s286 + $0x48] sm:$0xff] %v2389
      %2512 = vst [vmem:[%s286 + $0x50] sm:$0xff] %v2394
      %2513 = vst [vmem:[%s286 + $0x58] sm:$0xff] %v2399
      %2514 = vst [vmem:[%s286 + $0x60] sm:$0xff] %v2404
      %2515 = vst [vmem:[%s286 + $0x68] sm:$0xff] %v2409
      %2516 = vst [vmem:[%s286 + $0x70] sm:$0xff] %v2414
      %2517 = vst [vmem:[%s286 + $0x78] sm:$0xff] %v2419
      %2518 = vst [vmem:[%s286 + $0x80] sm:$0xff] %v2424
      %2519 = vst [vmem:[%s286 + $0x88] sm:$0xff] %v2429
      %2520 = vst [vmem:[%s286 + $0x90] sm:$0xff] %v2434
      %2521 = vst [vmem:[%s286 + $0x98] sm:$0xff] %v2439
      %2522 = vst [vmem:[%s286 + $0xa0] sm:$0xff] %v2444
      %2523 = vst [vmem:[%s286 + $0xa8] sm:$0xff] %v2449
      %2524 = vst [vmem:[%s286 + $0xb0] sm:$0xff] %v2454
      %2525 = vst [vmem:[%s286 + $0xb8] sm:$0xff] %v2459
      %2526 = vst [vmem:[%s286 + $0xc0] sm:$0xff] %v2464
      %2527 = vst [vmem:[%s286 + $0xc8] sm:$0xff] %v2469
      %2528 = vst [vmem:[%s286 + $0xd0] sm:$0xff] %v2474
      %2529 = vst [vmem:[%s286 + $0xd8] sm:$0xff] %v2479
      %2530 = vst [vmem:[%s286 + $0xe0] sm:$0xff] %v2484
      %2531 = vst [vmem:[%s286 + $0xe8] sm:$0xff] %v2489
      %2532 = vst [vmem:[%s286 + $0xf0] sm:$0xff] %v2494
      %2533 = vst [vmem:[%s286 + $0xf8] sm:$0xff] %v2499
      %s2534 = smul.u32 16, %s20
      %p2535 = scmp.lt.s32.totalorder %s19, 1
      %s2536 = scalar_select %p2535, %s19, 1
      %p2537 = scmp.lt.s32.totalorder %s2534, 15
      %s2538 = scalar_select %p2537, %s2534, 15
      %s2539 = smul.addr %s2538, 2
      %s2540 = smul.addr %s2536, 32
      %s2541 = sadd.s32 %s2539, %s2540
      %s2542 = smul.addr %s2541, 8
      %s2543 = scalar_lea.vmem %s4, %s2542
      // Predicated region
      $region37: #{_lambda_.16} parent=35 // pred_check
        %p2544 = pneg %p147
      $region38: #{_lambda_.16} parent=35 // pred_check_branch
        %2546 = sbr.rel (%p2544) target = $region40
      $region39: #{_lambda_.16} parent=35 // pred_region
        %s2547 = smul.u32 16, %s20
      $region40: #{_lambda_.16} parent=35 // pred_fallthru
        _
    $region36: #{_lambda_.16} parent=5 // pred_fallthru
      _
    %p2548 = scmp.le.s32.totalorder 2, %s10
    // Predicated region
    $region41: #{_lambda_.16} parent=5 // pred_check
      %p2549 = pneg %p2548
    $region42: #{_lambda_.16} parent=5 // pred_check_branch
      %2551 = sbr.rel (%p2549) target = $region44
    $region43: #{_lambda_.16} parent=5 // pred_region
      %s2552 = ssub.s32 %s10, 2
      // Predicated region
      $region45: #{_lambda_.16} parent=43 // pred_check
        %p2553 = pneg %p153
      $region46: #{_lambda_.16} parent=43 // pred_check_branch
        %2555 = sbr.rel (%p2553) target = $region48
      $region47: #{_lambda_.16} parent=43 // pred_region
        %s2556 = smul.u32 16, %s22
        %p2557 = scmp.lt.s32.totalorder %s21, 1
        %s2558 = scalar_select %p2557, %s21, 1
        %p2559 = scmp.lt.s32.totalorder %s2556, 15
        %s2560 = scalar_select %p2559, %s2556, 15
        %s2561 = smul.addr %s2560, 2
        %s2562 = smul.addr %s2558, 32
        %s2563 = sadd.s32 %s2561, %s2562
        %s2564 = smul.addr %s2563, 8
        %s2565 = scalar_lea.vmem %s4, %s2564
      $region48: #{_lambda_.16} parent=43 // pred_fallthru
        _
    $region44: #{_lambda_.16} parent=5 // pred_fallthru
      _
  $region6: #{_lambda_.16} parent=0 // loop_footer
    %s14 = sadd.s32 1, %s10
  $region7: #{_lambda_.16} parent=0 // loop_footer_branch
    %9 = sbr.rel target = $region3
  $region8: #{_lambda_.16} parent=0 // loop_exit
    _

</llo_original>
